<compile_context>
chip_gen: v7x
topology: tpu7x:2x2x1
jax: 0.10.0
libtpu: 0.0.40
codegen_flags: <defaults>
</compile_context>

<pallas_src>
import jax
import jax.numpy as jnp
import numpy as np
from jax import lax
from jax.experimental import pallas as pl
from jax.experimental.pallas import tpu as pltpu


def _round_up(x, m):
    return ((x + m - 1) // m) * m


# --------------------------------------------------------------------------- #
# Pallas kernel: one (BN-tile, T-tile) block of 2-layer GRU + Linear + Tanh
# --------------------------------------------------------------------------- #
def _gru2_fc_kernel(x_ref,
                    wih0_ref, whh0_ref, b0_ref, bhn0_ref,
                    wih1_ref, whh1_ref, b1_ref, bhn1_ref,
                    wfc_ref, bfc_ref,
                    out_ref,
                    h0_st, h1_st, gi0_scr, h1_scr):
    """Grid: (BN blocks [parallel], T blocks [arbitrary/sequential]).

    x_ref:   [T_tile, BN_tile, F]
    wih0:    [F, 3H]   whh0: [H, 3H]   b0: [1, 3H] (r/z biases fused)   bhn0: [1, H]
    wih1:    [H, 3H]   whh1: [H, 3H]   b1: [1, 3H]                      bhn1: [1, H]
    wfc:     [H, O]    bfc:  [1, O]
    out_ref: [T_tile, BN_tile, O]
    h0_st/h1_st: [BN_tile, H] hidden-state carry across T blocks
    gi0_scr: [T_tile, BN_tile, 3H]   hoisted layer-0 input projection
    h1_scr:  [T_tile, BN_tile, H]    h1 history for the bulk output FC
    """
    t_blk = pl.program_id(1)
    Tt, BNt, F = x_ref.shape
    H = whh0_ref.shape[0]

    @pl.when(t_blk == 0)
    def _():
        h0_st[...] = jnp.zeros_like(h0_st)
        h1_st[...] = jnp.zeros_like(h1_st)

    # Hoist loop-invariant weight loads.
    whh0 = whh0_ref[...]
    wih1 = wih1_ref[...]
    whh1 = whh1_ref[...]
    bhn0 = bhn0_ref[...]
    b1 = b1_ref[...]
    bhn1 = bhn1_ref[...]

    # ---- bulk layer-0 input projection: one large MXU matmul into scratch ----
    x_flat = x_ref[...].reshape(Tt * BNt, F)
    gi0_all = jnp.dot(x_flat, wih0_ref[...],
                      preferred_element_type=jnp.float32) + b0_ref[...]
    gi0_scr[...] = gi0_all.reshape(Tt, BNt, 3 * H)

    def gru_cell(gi, h, whh, bhn):
        # gi = W_ih x + (b_ih + b_hh) for r/z and b_ih for n; bhn = b_hh_n.
        gh = jnp.dot(h, whh, preferred_element_type=jnp.float32)
        r = jax.nn.sigmoid(gi[:, :H] + gh[:, :H])
        z = jax.nn.sigmoid(gi[:, H:2 * H] + gh[:, H:2 * H])
        n = jnp.tanh(gi[:, 2 * H:] + r * (gh[:, 2 * H:] + bhn))
        return (1.0 - z) * n + z * h

    def body(t, carry):
        h0, h1 = carry
        h0 = gru_cell(gi0_scr[t], h0, whh0, bhn0)                        # layer 0
        gi1 = jnp.dot(h0, wih1, preferred_element_type=jnp.float32) + b1
        h1 = gru_cell(gi1, h1, whh1, bhn1)                               # layer 1
        h1_scr[t] = h1
        return (h0, h1)

    # Unroll the serial recurrence so the LLO scheduler can overlap MXU/EUP work.
    if Tt <= 8:
        unroll = Tt
    elif Tt % 8 == 0:
        unroll = 8
    elif Tt % 4 == 0:
        unroll = 4
    elif Tt % 2 == 0:
        unroll = 2
    else:
        unroll = 1
    h0, h1 = lax.fori_loop(0, Tt, body, (h0_st[...], h1_st[...]), unroll=unroll)
    h0_st[...] = h0
    h1_st[...] = h1

    # ---- bulk output FC + Tanh, one matmul + one store per tile -------------
    h_flat = h1_scr[...].reshape(Tt * BNt, H)
    o = jnp.tanh(jnp.dot(h_flat, wfc_ref[...],
                         preferred_element_type=jnp.float32) + bfc_ref[...])
    out_ref[...] = o.reshape(Tt, BNt, out_ref.shape[-1])


# --------------------------------------------------------------------------- #
# Wrapper: tiling, padding, pallas_call
# --------------------------------------------------------------------------- #
def gru_seq_model_pallas(x_tbf, kparams, *, bn_tile=None, t_tile=None):
    """x_tbf: [T, BN, F] float32 -> [T, BN, O] float32."""
    T, BN, F = x_tbf.shape
    H = kparams["whh0"].shape[0]
    O = kparams["wfc"].shape[1]

    if bn_tile is None:
        bn_tile = min(_round_up(BN, 8), 128)
    if t_tile is None:
        # ~16 MiB f32 budget: gi0(3H) + h1(H) scratch + double-buffered x/out tiles.
        bytes_per_frame = bn_tile * 4 * (4 * H + 2 * F + 2 * O)
        t_tile = (16 * 1024 * 1024) // max(bytes_per_frame, 1)
        t_tile = max(8, (t_tile // 8) * 8)
        t_tile = min(t_tile, _round_up(T, 8))

    T_p = _round_up(T, t_tile)
    BN_p = _round_up(BN, bn_tile)
    x_p = x_tbf
    if (T_p, BN_p) != (T, BN):
        x_p = jnp.pad(x_tbf, ((0, T_p - T), (0, BN_p - BN), (0, 0)))

    grid = (BN_p // bn_tile, T_p // t_tile)

    def wspec(shape):
        return pl.BlockSpec(shape, lambda i, j: (0, 0))

    out = pl.pallas_call(
        _gru2_fc_kernel,
        out_shape=jax.ShapeDtypeStruct((T_p, BN_p, O), jnp.float32),
        grid=grid,
        in_specs=[
            pl.BlockSpec((t_tile, bn_tile, F), lambda i, j: (j, i, 0)),
            wspec((F, 3 * H)), wspec((H, 3 * H)), wspec((1, 3 * H)), wspec((1, H)),
            wspec((H, 3 * H)), wspec((H, 3 * H)), wspec((1, 3 * H)), wspec((1, H)),
            wspec((H, O)), wspec((1, O)),
        ],
        out_specs=pl.BlockSpec((t_tile, bn_tile, O), lambda i, j: (j, i, 0)),
        scratch_shapes=[
            pltpu.VMEM((bn_tile, H), jnp.float32),               # h0 carry
            pltpu.VMEM((bn_tile, H), jnp.float32),               # h1 carry
            pltpu.VMEM((t_tile, bn_tile, 3 * H), jnp.float32),   # hoisted input proj
            pltpu.VMEM((t_tile, bn_tile, H), jnp.float32),       # h1 history
        ],
        compiler_params=pltpu.CompilerParams(
            dimension_semantics=("parallel", "arbitrary"),
            vmem_limit_bytes=40 * 1024 * 1024,
        ),
    )(x_p,
      kparams["wih0"], kparams["whh0"], kparams["b0"], kparams["bhn0"],
      kparams["wih1"], kparams["whh1"], kparams["b1"], kparams["bhn1"],
      kparams["wfc"], kparams["bfc"])

    if (T_p, BN_p) != (T, BN):
        out = out[:T, :BN, :]
    return out


def fuse_params(params):
    """PyTorch-style GRU params (separate b_ih/b_hh) -> fused kernel layout.

    b{l}   = [b_ih_r + b_hh_r, b_ih_z + b_hh_z, b_ih_n]  (added to x @ W_ih)
    bhn{l} = b_hh_n                                      (added inside the r-gated term)
    """
    H = params["whh0"].shape[0]
    out = {}
    for l in (0, 1):
        bih = params[f"bih{l}"]
        bhh = params[f"bhh{l}"]
        out[f"wih{l}"] = params[f"wih{l}"]
        out[f"whh{l}"] = params[f"whh{l}"]
        out[f"b{l}"] = jnp.concatenate(
            [bih[:, :2 * H] + bhh[:, :2 * H], bih[:, 2 * H:]], axis=1)
        out[f"bhn{l}"] = bhh[:, 2 * H:]
    out["wfc"] = params["wfc"]
    out["bfc"] = params["bfc"]
    return out


def subband_sequence_wrapper_forward(subband_input, params):
    """subband_input: [B, N, 1, F_sub, T] -> [B, 2, N*(O//2), T]."""
    B, N, C, F, T = subband_input.shape
    assert C == 1
    x = subband_input.reshape(B * N, F, T)          # [BN, F, T]
    x = jnp.transpose(x, (2, 0, 1))                 # [T, BN, F]
    o = gru_seq_model_pallas(x, fuse_params(params))  # [T, BN, O]
    o = jnp.transpose(o, (1, 2, 0))                 # [BN, O, T]
    O = o.shape[1]
    o = o.reshape(B, N, 2, O // 2, T)
    o = jnp.transpose(o, (0, 2, 1, 3, 4))           # [B, 2, N, O//2, T]
    return o.reshape(B, 2, N * (O // 2), T)


# --------------------------------------------------------------------------- #
# Params & pure-JAX reference
# --------------------------------------------------------------------------- #
def init_params(key, input_size, hidden_size, output_size):
    """Mimics PyTorch GRU/Linear uniform(-1/sqrt(H), 1/sqrt(H)).

    Weights stored pre-transposed to [in, out]; gate order (r, z, n) like torch.nn.GRU.
    """
    H, F, O = hidden_size, input_size, output_size
    k = 1.0 / np.sqrt(H)
    keys = jax.random.split(key, 11)

    def u(kk, shape):
        return jax.random.uniform(kk, shape, jnp.float32, minval=-k, maxval=k)

    return {
        "wih0": u(keys[0], (F, 3 * H)), "whh0": u(keys[1], (H, 3 * H)),
        "bih0": u(keys[2], (1, 3 * H)), "bhh0": u(keys[3], (1, 3 * H)),
        "wih1": u(keys[4], (H, 3 * H)), "whh1": u(keys[5], (H, 3 * H)),
        "bih1": u(keys[6], (1, 3 * H)), "bhh1": u(keys[7], (1, 3 * H)),
        "wfc": u(keys[8], (H, O)), "bfc": u(keys[9], (1, O)),
    }


def _reference_forward(subband_input, params):
    """Pure-JAX reference with torch.nn.GRU math (separate biases), lax.scan."""
    B, N, C, F, T = subband_input.shape
    H = params["whh0"].shape[0]
    x = subband_input.reshape(B * N, F, T)
    x = jnp.transpose(x, (2, 0, 1))                  # [T, BN, F]
    BN = x.shape[1]

    def cell(x_t, h, wih, whh, bih, bhh):
        gi = x_t @ wih + bih
        gh = h @ whh + bhh
        r = jax.nn.sigmoid(gi[:, :H] + gh[:, :H])
        z = jax.nn.sigmoid(gi[:, H:2 * H] + gh[:, H:2 * H])
        n = jnp.tanh(gi[:, 2 * H:] + r * gh[:, 2 * H:])
        return (1.0 - z) * n + z * h

    def step(carry, x_t):
        h0, h1 = carry
        h0 = cell(x_t, h0, params["wih0"], params["whh0"], params["bih0"], params["bhh0"])
        h1 = cell(h0, h1, params["wih1"], params["whh1"], params["bih1"], params["bhh1"])
        o = jnp.tanh(h1 @ params["wfc"] + params["bfc"])
        return (h0, h1), o

    h0 = jnp.zeros((BN, H), jnp.float32)
    h1 = jnp.zeros((BN, H), jnp.float32)
    _, o = lax.scan(step, (h0, h1), x)               # [T, BN, O]
    o = jnp.transpose(o, (1, 2, 0))                  # [BN, O, T]
    O = o.shape[1]
    o = o.reshape(B, N, 2, O // 2, T)
    o = jnp.transpose(o, (0, 2, 1, 3, 4))
    return o.reshape(B, 2, N * (O // 2), T)


if __name__ == "__main__":
    # SubBandSequenceWrapper(input_size=16, output_size=4, hidden_size=32,
    #                        num_layers=2, bidirectional=False,
    #                        sequence_model='GRU', output_activate_function='Tanh')
    B, N_UNITS, F_SUB, T = 2, 3, 16, 8
    HIDDEN, OUT = 32, 4

    key = jax.random.PRNGKey(0)
    k_in, k_par = jax.random.split(key)
    subband_input = jax.random.normal(k_in, (B, N_UNITS, 1, F_SUB, T), jnp.float32)
    params = init_params(k_par, F_SUB, HIDDEN, OUT)

    fwd = jax.jit(subband_sequence_wrapper_forward)
    out = jax.block_until_ready(fwd(subband_input, params))

    ref = jax.block_until_ready(_reference_forward(subband_input, params))
    assert out.shape == (B, 2, N_UNITS * (OUT // 2), T), out.shape
    np.testing.assert_allclose(np.asarray(out), np.asarray(ref), rtol=1e-5, atol=1e-5)

    print("KERNEL_OK")
</pallas_src>

<mosaic_0001>
module attributes {stable_mosaic.version = 11 : i64} {
  func.func @_gru2_fc_kernel(%arg0: i32, %arg1: i32, %arg2: memref<8x8x16xf32, #tpu.memory_space<vmem>>, %arg3: memref<16x96xf32, #tpu.memory_space<vmem>>, %arg4: memref<32x96xf32, #tpu.memory_space<vmem>>, %arg5: memref<1x96xf32, #tpu.memory_space<vmem>>, %arg6: memref<1x32xf32, #tpu.memory_space<vmem>>, %arg7: memref<32x96xf32, #tpu.memory_space<vmem>>, %arg8: memref<32x96xf32, #tpu.memory_space<vmem>>, %arg9: memref<1x96xf32, #tpu.memory_space<vmem>>, %arg10: memref<1x32xf32, #tpu.memory_space<vmem>>, %arg11: memref<32x4xf32, #tpu.memory_space<vmem>>, %arg12: memref<1x4xf32, #tpu.memory_space<vmem>>, %arg13: memref<8x8x4xf32, #tpu.memory_space<vmem>>, %arg14: memref<8x32xf32, #tpu.memory_space<vmem>>, %arg15: memref<8x32xf32, #tpu.memory_space<vmem>>, %arg16: memref<8x8x96xf32, #tpu.memory_space<vmem>>, %arg17: memref<8x8x32xf32, #tpu.memory_space<vmem>>) attributes {dimension_semantics = [#tpu.dimension_semantics<parallel>, #tpu.dimension_semantics<arbitrary>], iteration_bounds = array<i64: 1, 1>, scalar_prefetch = 0 : i64, scratch_operands = 4 : i64, tpu.core_type = #tpu.core_type<tc>, window_params = [{transform_indices = @transform_0, window_bounds = array<i64: 8, 8, 16>}, {pipeline_mode = #tpu.pipeline_mode<synchronous>, transform_indices = @transform_1, window_bounds = array<i64: 16, 96>}, {pipeline_mode = #tpu.pipeline_mode<synchronous>, transform_indices = @transform_2, window_bounds = array<i64: 32, 96>}, {pipeline_mode = #tpu.pipeline_mode<synchronous>, transform_indices = @transform_3, window_bounds = array<i64: 1, 96>}, {pipeline_mode = #tpu.pipeline_mode<synchronous>, transform_indices = @transform_4, window_bounds = array<i64: 1, 32>}, {pipeline_mode = #tpu.pipeline_mode<synchronous>, transform_indices = @transform_5, window_bounds = array<i64: 32, 96>}, {pipeline_mode = #tpu.pipeline_mode<synchronous>, transform_indices = @transform_6, window_bounds = array<i64: 32, 96>}, {pipeline_mode = #tpu.pipeline_mode<synchronous>, transform_indices = @transform_7, window_bounds = array<i64: 1, 96>}, {pipeline_mode = #tpu.pipeline_mode<synchronous>, transform_indices = @transform_8, window_bounds = array<i64: 1, 32>}, {pipeline_mode = #tpu.pipeline_mode<synchronous>, transform_indices = @transform_9, window_bounds = array<i64: 32, 4>}, {pipeline_mode = #tpu.pipeline_mode<synchronous>, transform_indices = @transform_10, window_bounds = array<i64: 1, 4>}, {transform_indices = @transform_11, window_bounds = array<i64: 8, 8, 4>}]} {
    %c0_i32 = arith.constant 0 : i32
    %0 = arith.cmpi eq, %arg1, %c0_i32 : i32
    %1 = arith.extui %0 : i1 to i32
    %c0_i32_0 = arith.constant 0 : i32
    %2 = arith.cmpi ne, %1, %c0_i32_0 : i32
    scf.if %2 {
      %cst_146 = arith.constant 0.000000e+00 : f32
      %576 = vector.broadcast %cst_146 : f32 to vector<8x32xf32>
      %c0_147 = arith.constant 0 : index
      %c0_148 = arith.constant 0 : index
      %577 = vector.load %arg14[%c0_147, %c0_148] : memref<8x32xf32, #tpu.memory_space<vmem>>, vector<8x32xf32>
      tpu.vector_store %arg14[%c0_147, %c0_148], %576 {strides = array<i32>} : memref<8x32xf32, #tpu.memory_space<vmem>>, vector<8x32xf32>,
      %cst_149 = arith.constant 0.000000e+00 : f32
      %578 = vector.broadcast %cst_149 : f32 to vector<8x32xf32>
      %c0_150 = arith.constant 0 : index
      %c0_151 = arith.constant 0 : index
      %579 = vector.load %arg15[%c0_150, %c0_151] : memref<8x32xf32, #tpu.memory_space<vmem>>, vector<8x32xf32>
      tpu.vector_store %arg15[%c0_150, %c0_151], %578 {strides = array<i32>} : memref<8x32xf32, #tpu.memory_space<vmem>>, vector<8x32xf32>,
    } else {
    }
    %c0 = arith.constant 0 : index
    %c0_1 = arith.constant 0 : index
    %3 = vector.load %arg4[%c0, %c0_1] : memref<32x96xf32, #tpu.memory_space<vmem>>, vector<32x96xf32>
    %c0_2 = arith.constant 0 : index
    %c0_3 = arith.constant 0 : index
    %4 = vector.load %arg7[%c0_2, %c0_3] : memref<32x96xf32, #tpu.memory_space<vmem>>, vector<32x96xf32>
    %c0_4 = arith.constant 0 : index
    %c0_5 = arith.constant 0 : index
    %5 = vector.load %arg8[%c0_4, %c0_5] : memref<32x96xf32, #tpu.memory_space<vmem>>, vector<32x96xf32>
    %c0_6 = arith.constant 0 : index
    %c0_7 = arith.constant 0 : index
    %6 = vector.load %arg6[%c0_6, %c0_7] : memref<1x32xf32, #tpu.memory_space<vmem>>, vector<1x32xf32>
    %c0_8 = arith.constant 0 : index
    %c0_9 = arith.constant 0 : index
    %7 = vector.load %arg9[%c0_8, %c0_9] : memref<1x96xf32, #tpu.memory_space<vmem>>, vector<1x96xf32>
    %c0_10 = arith.constant 0 : index
    %c0_11 = arith.constant 0 : index
    %8 = vector.load %arg10[%c0_10, %c0_11] : memref<1x32xf32, #tpu.memory_space<vmem>>, vector<1x32xf32>
    %c0_12 = arith.constant 0 : index
    %c0_13 = arith.constant 0 : index
    %c0_14 = arith.constant 0 : index
    %9 = vector.load %arg2[%c0_12, %c0_13, %c0_14] : memref<8x8x16xf32, #tpu.memory_space<vmem>>, vector<8x8x16xf32>
    %10 = vector.shape_cast %9 : vector<8x8x16xf32> to vector<64x16xf32>
    %c0_15 = arith.constant 0 : index
    %c0_16 = arith.constant 0 : index
    %11 = vector.load %arg3[%c0_15, %c0_16] : memref<16x96xf32, #tpu.memory_space<vmem>>, vector<16x96xf32>
    %cst = arith.constant dense<0.000000e+00> : vector<64x96xf32>
    %12 = tpu.matmul %10, %11, %cst {dimension_numbers = #tpu.dot_dimension_numbers<[1], [0], [0], [1], [0, 0, 1, 1], [], []>} : vector<64x16xf32>, vector<16x96xf32>, vector<64x96xf32> -> vector<64x96xf32>
    %c0_17 = arith.constant 0 : index
    %c0_18 = arith.constant 0 : index
    %13 = vector.load %arg5[%c0_17, %c0_18] : memref<1x96xf32, #tpu.memory_space<vmem>>, vector<1x96xf32>
    %14 = vector.broadcast %13 : vector<1x96xf32> to vector<64x96xf32>
    %15 = arith.addf %12, %14 : vector<64x96xf32>
    %16 = vector.shape_cast %15 : vector<64x96xf32> to vector<8x8x96xf32>
    %c0_19 = arith.constant 0 : index
    %c0_20 = arith.constant 0 : index
    %c0_21 = arith.constant 0 : index
    %17 = vector.load %arg16[%c0_19, %c0_20, %c0_21] : memref<8x8x96xf32, #tpu.memory_space<vmem>>, vector<8x8x96xf32>
    tpu.vector_store %arg16[%c0_19, %c0_20, %c0_21], %16 {strides = array<i32>} : memref<8x8x96xf32, #tpu.memory_space<vmem>>, vector<8x8x96xf32>,
    %c0_22 = arith.constant 0 : index
    %c0_23 = arith.constant 0 : index
    %18 = vector.load %arg14[%c0_22, %c0_23] : memref<8x32xf32, #tpu.memory_space<vmem>>, vector<8x32xf32>
    %c0_24 = arith.constant 0 : index
    %c0_25 = arith.constant 0 : index
    %19 = vector.load %arg15[%c0_24, %c0_25] : memref<8x32xf32, #tpu.memory_space<vmem>>, vector<8x32xf32>
    %c0_i32_26 = arith.constant 0 : i32
    %20 = arith.index_cast %c0_i32_26 : i32 to index
    %c0_27 = arith.constant 0 : index
    %c0_28 = arith.constant 0 : index
    %21 = vector.load %arg16[%20, %c0_27, %c0_28] : memref<8x8x96xf32, #tpu.memory_space<vmem>>, vector<1x8x96xf32>
    %22 = vector.shape_cast %21 : vector<1x8x96xf32> to vector<8x96xf32>
    %cst_29 = arith.constant dense<0.000000e+00> : vector<8x96xf32>
    %23 = tpu.matmul %18, %3, %cst_29 {dimension_numbers = #tpu.dot_dimension_numbers<[1], [0], [0], [1], [0, 0, 1, 1], [], []>} : vector<8x32xf32>, vector<32x96xf32>, vector<8x96xf32> -> vector<8x96xf32>
    %24 = vector.extract_strided_slice %22 {offsets = [0, 0], sizes = [8, 32], strides = [1, 1]} : vector<8x96xf32> to vector<8x32xf32>
    %25 = vector.extract_strided_slice %23 {offsets = [0, 0], sizes = [8, 32], strides = [1, 1]} : vector<8x96xf32> to vector<8x32xf32>
    %26 = arith.addf %24, %25 : vector<8x32xf32>
    %27 = arith.negf %26 : vector<8x32xf32>
    %28 = math.exp %27 : vector<8x32xf32>
    %cst_30 = arith.constant 1.000000e+00 : f32
    %29 = vector.broadcast %cst_30 : f32 to vector<8x32xf32>
    %30 = arith.addf %29, %28 : vector<8x32xf32>
    %31 = arith.divf %29, %30 : vector<8x32xf32>
    %32 = vector.extract_strided_slice %22 {offsets = [0, 32], sizes = [8, 32], strides = [1, 1]} : vector<8x96xf32> to vector<8x32xf32>
    %33 = vector.extract_strided_slice %23 {offsets = [0, 32], sizes = [8, 32], strides = [1, 1]} : vector<8x96xf32> to vector<8x32xf32>
    %34 = arith.addf %32, %33 : vector<8x32xf32>
    %35 = arith.negf %34 : vector<8x32xf32>
    %36 = math.exp %35 : vector<8x32xf32>
    %cst_31 = arith.constant 1.000000e+00 : f32
    %37 = vector.broadcast %cst_31 : f32 to vector<8x32xf32>
    %38 = arith.addf %37, %36 : vector<8x32xf32>
    %39 = arith.divf %37, %38 : vector<8x32xf32>
    %40 = vector.extract_strided_slice %22 {offsets = [0, 64], sizes = [8, 32], strides = [1, 1]} : vector<8x96xf32> to vector<8x32xf32>
    %41 = vector.extract_strided_slice %23 {offsets = [0, 64], sizes = [8, 32], strides = [1, 1]} : vector<8x96xf32> to vector<8x32xf32>
    %42 = vector.broadcast %6 : vector<1x32xf32> to vector<8x32xf32>
    %43 = arith.addf %41, %42 : vector<8x32xf32>
    %44 = arith.mulf %31, %43 : vector<8x32xf32>
    %45 = arith.addf %40, %44 : vector<8x32xf32>
    %46 = math.tanh %45 : vector<8x32xf32>
    %cst_32 = arith.constant 1.000000e+00 : f32
    %47 = vector.broadcast %cst_32 : f32 to vector<8x32xf32>
    %48 = arith.subf %47, %39 : vector<8x32xf32>
    %49 = arith.mulf %48, %46 : vector<8x32xf32>
    %50 = arith.mulf %39, %18 : vector<8x32xf32>
    %51 = arith.addf %49, %50 : vector<8x32xf32>
    %cst_33 = arith.constant dense<0.000000e+00> : vector<8x96xf32>
    %52 = tpu.matmul %51, %4, %cst_33 {dimension_numbers = #tpu.dot_dimension_numbers<[1], [0], [0], [1], [0, 0, 1, 1], [], []>} : vector<8x32xf32>, vector<32x96xf32>, vector<8x96xf32> -> vector<8x96xf32>
    %53 = vector.broadcast %7 : vector<1x96xf32> to vector<8x96xf32>
    %54 = arith.addf %52, %53 : vector<8x96xf32>
    %cst_34 = arith.constant dense<0.000000e+00> : vector<8x96xf32>
    %55 = tpu.matmul %19, %5, %cst_34 {dimension_numbers = #tpu.dot_dimension_numbers<[1], [0], [0], [1], [0, 0, 1, 1], [], []>} : vector<8x32xf32>, vector<32x96xf32>, vector<8x96xf32> -> vector<8x96xf32>
    %56 = vector.extract_strided_slice %54 {offsets = [0, 0], sizes = [8, 32], strides = [1, 1]} : vector<8x96xf32> to vector<8x32xf32>
    %57 = vector.extract_strided_slice %55 {offsets = [0, 0], sizes = [8, 32], strides = [1, 1]} : vector<8x96xf32> to vector<8x32xf32>
    %58 = arith.addf %56, %57 : vector<8x32xf32>
    %59 = arith.negf %58 : vector<8x32xf32>
    %60 = math.exp %59 : vector<8x32xf32>
    %cst_35 = arith.constant 1.000000e+00 : f32
    %61 = vector.broadcast %cst_35 : f32 to vector<8x32xf32>
    %62 = arith.addf %61, %60 : vector<8x32xf32>
    %63 = arith.divf %61, %62 : vector<8x32xf32>
    %64 = vector.extract_strided_slice %54 {offsets = [0, 32], sizes = [8, 32], strides = [1, 1]} : vector<8x96xf32> to vector<8x32xf32>
    %65 = vector.extract_strided_slice %55 {offsets = [0, 32], sizes = [8, 32], strides = [1, 1]} : vector<8x96xf32> to vector<8x32xf32>
    %66 = arith.addf %64, %65 : vector<8x32xf32>
    %67 = arith.negf %66 : vector<8x32xf32>
    %68 = math.exp %67 : vector<8x32xf32>
    %cst_36 = arith.constant 1.000000e+00 : f32
    %69 = vector.broadcast %cst_36 : f32 to vector<8x32xf32>
    %70 = arith.addf %69, %68 : vector<8x32xf32>
    %71 = arith.divf %69, %70 : vector<8x32xf32>
    %72 = vector.extract_strided_slice %54 {offsets = [0, 64], sizes = [8, 32], strides = [1, 1]} : vector<8x96xf32> to vector<8x32xf32>
    %73 = vector.extract_strided_slice %55 {offsets = [0, 64], sizes = [8, 32], strides = [1, 1]} : vector<8x96xf32> to vector<8x32xf32>
    %74 = vector.broadcast %8 : vector<1x32xf32> to vector<8x32xf32>
    %75 = arith.addf %73, %74 : vector<8x32xf32>
    %76 = arith.mulf %63, %75 : vector<8x32xf32>
    %77 = arith.addf %72, %76 : vector<8x32xf32>
    %78 = math.tanh %77 : vector<8x32xf32>
    %cst_37 = arith.constant 1.000000e+00 : f32
    %79 = vector.broadcast %cst_37 : f32 to vector<8x32xf32>
    %80 = arith.subf %79, %71 : vector<8x32xf32>
    %81 = arith.mulf %80, %78 : vector<8x32xf32>
    %82 = arith.mulf %71, %19 : vector<8x32xf32>
    %83 = arith.addf %81, %82 : vector<8x32xf32>
    %84 = arith.index_cast %c0_i32_26 : i32 to index
    %c0_38 = arith.constant 0 : index
    %c0_39 = arith.constant 0 : index
    %85 = vector.load %arg17[%84, %c0_38, %c0_39] : memref<8x8x32xf32, #tpu.memory_space<vmem>>, vector<1x8x32xf32>
    %86 = vector.shape_cast %85 : vector<1x8x32xf32> to vector<8x32xf32>
    %87 = vector.shape_cast %83 : vector<8x32xf32> to vector<1x8x32xf32>
    tpu.vector_store %arg17[%84, %c0_38, %c0_39], %87 {strides = array<i32>} : memref<8x8x32xf32, #tpu.memory_space<vmem>>, vector<1x8x32xf32>,
    %c1_i32 = arith.constant 1 : i32
    %88 = arith.index_cast %c1_i32 : i32 to index
    %c0_40 = arith.constant 0 : index
    %c0_41 = arith.constant 0 : index
    %89 = vector.load %arg16[%88, %c0_40, %c0_41] : memref<8x8x96xf32, #tpu.memory_space<vmem>>, vector<1x8x96xf32>
    %90 = vector.shape_cast %89 : vector<1x8x96xf32> to vector<8x96xf32>
    %cst_42 = arith.constant dense<0.000000e+00> : vector<8x96xf32>
    %91 = tpu.matmul %51, %3, %cst_42 {dimension_numbers = #tpu.dot_dimension_numbers<[1], [0], [0], [1], [0, 0, 1, 1], [], []>} : vector<8x32xf32>, vector<32x96xf32>, vector<8x96xf32> -> vector<8x96xf32>
    %92 = vector.extract_strided_slice %90 {offsets = [0, 0], sizes = [8, 32], strides = [1, 1]} : vector<8x96xf32> to vector<8x32xf32>
    %93 = vector.extract_strided_slice %91 {offsets = [0, 0], sizes = [8, 32], strides = [1, 1]} : vector<8x96xf32> to vector<8x32xf32>
    %94 = arith.addf %92, %93 : vector<8x32xf32>
    %95 = arith.negf %94 : vector<8x32xf32>
    %96 = math.exp %95 : vector<8x32xf32>
    %cst_43 = arith.constant 1.000000e+00 : f32
    %97 = vector.broadcast %cst_43 : f32 to vector<8x32xf32>
    %98 = arith.addf %97, %96 : vector<8x32xf32>
    %99 = arith.divf %97, %98 : vector<8x32xf32>
    %100 = vector.extract_strided_slice %90 {offsets = [0, 32], sizes = [8, 32], strides = [1, 1]} : vector<8x96xf32> to vector<8x32xf32>
    %101 = vector.extract_strided_slice %91 {offsets = [0, 32], sizes = [8, 32], strides = [1, 1]} : vector<8x96xf32> to vector<8x32xf32>
    %102 = arith.addf %100, %101 : vector<8x32xf32>
    %103 = arith.negf %102 : vector<8x32xf32>
    %104 = math.exp %103 : vector<8x32xf32>
    %cst_44 = arith.constant 1.000000e+00 : f32
    %105 = vector.broadcast %cst_44 : f32 to vector<8x32xf32>
    %106 = arith.addf %105, %104 : vector<8x32xf32>
    %107 = arith.divf %105, %106 : vector<8x32xf32>
    %108 = vector.extract_strided_slice %90 {offsets = [0, 64], sizes = [8, 32], strides = [1, 1]} : vector<8x96xf32> to vector<8x32xf32>
    %109 = vector.extract_strided_slice %91 {offsets = [0, 64], sizes = [8, 32], strides = [1, 1]} : vector<8x96xf32> to vector<8x32xf32>
    %110 = vector.broadcast %6 : vector<1x32xf32> to vector<8x32xf32>
    %111 = arith.addf %109, %110 : vector<8x32xf32>
    %112 = arith.mulf %99, %111 : vector<8x32xf32>
    %113 = arith.addf %108, %112 : vector<8x32xf32>
    %114 = math.tanh %113 : vector<8x32xf32>
    %cst_45 = arith.constant 1.000000e+00 : f32
    %115 = vector.broadcast %cst_45 : f32 to vector<8x32xf32>
    %116 = arith.subf %115, %107 : vector<8x32xf32>
    %117 = arith.mulf %116, %114 : vector<8x32xf32>
    %118 = arith.mulf %107, %51 : vector<8x32xf32>
    %119 = arith.addf %117, %118 : vector<8x32xf32>
    %cst_46 = arith.constant dense<0.000000e+00> : vector<8x96xf32>
    %120 = tpu.matmul %119, %4, %cst_46 {dimension_numbers = #tpu.dot_dimension_numbers<[1], [0], [0], [1], [0, 0, 1, 1], [], []>} : vector<8x32xf32>, vector<32x96xf32>, vector<8x96xf32> -> vector<8x96xf32>
    %121 = vector.broadcast %7 : vector<1x96xf32> to vector<8x96xf32>
    %122 = arith.addf %120, %121 : vector<8x96xf32>
    %cst_47 = arith.constant dense<0.000000e+00> : vector<8x96xf32>
    %123 = tpu.matmul %83, %5, %cst_47 {dimension_numbers = #tpu.dot_dimension_numbers<[1], [0], [0], [1], [0, 0, 1, 1], [], []>} : vector<8x32xf32>, vector<32x96xf32>, vector<8x96xf32> -> vector<8x96xf32>
    %124 = vector.extract_strided_slice %122 {offsets = [0, 0], sizes = [8, 32], strides = [1, 1]} : vector<8x96xf32> to vector<8x32xf32>
    %125 = vector.extract_strided_slice %123 {offsets = [0, 0], sizes = [8, 32], strides = [1, 1]} : vector<8x96xf32> to vector<8x32xf32>
    %126 = arith.addf %124, %125 : vector<8x32xf32>
    %127 = arith.negf %126 : vector<8x32xf32>
    %128 = math.exp %127 : vector<8x32xf32>
    %cst_48 = arith.constant 1.000000e+00 : f32
    %129 = vector.broadcast %cst_48 : f32 to vector<8x32xf32>
    %130 = arith.addf %129, %128 : vector<8x32xf32>
    %131 = arith.divf %129, %130 : vector<8x32xf32>
    %132 = vector.extract_strided_slice %122 {offsets = [0, 32], sizes = [8, 32], strides = [1, 1]} : vector<8x96xf32> to vector<8x32xf32>
    %133 = vector.extract_strided_slice %123 {offsets = [0, 32], sizes = [8, 32], strides = [1, 1]} : vector<8x96xf32> to vector<8x32xf32>
    %134 = arith.addf %132, %133 : vector<8x32xf32>
    %135 = arith.negf %134 : vector<8x32xf32>
    %136 = math.exp %135 : vector<8x32xf32>
    %cst_49 = arith.constant 1.000000e+00 : f32
    %137 = vector.broadcast %cst_49 : f32 to vector<8x32xf32>
    %138 = arith.addf %137, %136 : vector<8x32xf32>
    %139 = arith.divf %137, %138 : vector<8x32xf32>
    %140 = vector.extract_strided_slice %122 {offsets = [0, 64], sizes = [8, 32], strides = [1, 1]} : vector<8x96xf32> to vector<8x32xf32>
    %141 = vector.extract_strided_slice %123 {offsets = [0, 64], sizes = [8, 32], strides = [1, 1]} : vector<8x96xf32> to vector<8x32xf32>
    %142 = vector.broadcast %8 : vector<1x32xf32> to vector<8x32xf32>
    %143 = arith.addf %141, %142 : vector<8x32xf32>
    %144 = arith.mulf %131, %143 : vector<8x32xf32>
    %145 = arith.addf %140, %144 : vector<8x32xf32>
    %146 = math.tanh %145 : vector<8x32xf32>
    %cst_50 = arith.constant 1.000000e+00 : f32
    %147 = vector.broadcast %cst_50 : f32 to vector<8x32xf32>
    %148 = arith.subf %147, %139 : vector<8x32xf32>
    %149 = arith.mulf %148, %146 : vector<8x32xf32>
    %150 = arith.mulf %139, %83 : vector<8x32xf32>
    %151 = arith.addf %149, %150 : vector<8x32xf32>
    %152 = arith.index_cast %c1_i32 : i32 to index
    %c0_51 = arith.constant 0 : index
    %c0_52 = arith.constant 0 : index
    %153 = vector.load %arg17[%152, %c0_51, %c0_52] : memref<8x8x32xf32, #tpu.memory_space<vmem>>, vector<1x8x32xf32>
    %154 = vector.shape_cast %153 : vector<1x8x32xf32> to vector<8x32xf32>
    %155 = vector.shape_cast %151 : vector<8x32xf32> to vector<1x8x32xf32>
    tpu.vector_store %arg17[%152, %c0_51, %c0_52], %155 {strides = array<i32>} : memref<8x8x32xf32, #tpu.memory_space<vmem>>, vector<1x8x32xf32>,
    %c2_i32 = arith.constant 2 : i32
    %156 = arith.index_cast %c2_i32 : i32 to index
    %c0_53 = arith.constant 0 : index
    %c0_54 = arith.constant 0 : index
    %157 = vector.load %arg16[%156, %c0_53, %c0_54] : memref<8x8x96xf32, #tpu.memory_space<vmem>>, vector<1x8x96xf32>
    %158 = vector.shape_cast %157 : vector<1x8x96xf32> to vector<8x96xf32>
    %cst_55 = arith.constant dense<0.000000e+00> : vector<8x96xf32>
    %159 = tpu.matmul %119, %3, %cst_55 {dimension_numbers = #tpu.dot_dimension_numbers<[1], [0], [0], [1], [0, 0, 1, 1], [], []>} : vector<8x32xf32>, vector<32x96xf32>, vector<8x96xf32> -> vector<8x96xf32>
    %160 = vector.extract_strided_slice %158 {offsets = [0, 0], sizes = [8, 32], strides = [1, 1]} : vector<8x96xf32> to vector<8x32xf32>
    %161 = vector.extract_strided_slice %159 {offsets = [0, 0], sizes = [8, 32], strides = [1, 1]} : vector<8x96xf32> to vector<8x32xf32>
    %162 = arith.addf %160, %161 : vector<8x32xf32>
    %163 = arith.negf %162 : vector<8x32xf32>
    %164 = math.exp %163 : vector<8x32xf32>
    %cst_56 = arith.constant 1.000000e+00 : f32
    %165 = vector.broadcast %cst_56 : f32 to vector<8x32xf32>
    %166 = arith.addf %165, %164 : vector<8x32xf32>
    %167 = arith.divf %165, %166 : vector<8x32xf32>
    %168 = vector.extract_strided_slice %158 {offsets = [0, 32], sizes = [8, 32], strides = [1, 1]} : vector<8x96xf32> to vector<8x32xf32>
    %169 = vector.extract_strided_slice %159 {offsets = [0, 32], sizes = [8, 32], strides = [1, 1]} : vector<8x96xf32> to vector<8x32xf32>
    %170 = arith.addf %168, %169 : vector<8x32xf32>
    %171 = arith.negf %170 : vector<8x32xf32>
    %172 = math.exp %171 : vector<8x32xf32>
    %cst_57 = arith.constant 1.000000e+00 : f32
    %173 = vector.broadcast %cst_57 : f32 to vector<8x32xf32>
    %174 = arith.addf %173, %172 : vector<8x32xf32>
    %175 = arith.divf %173, %174 : vector<8x32xf32>
    %176 = vector.extract_strided_slice %158 {offsets = [0, 64], sizes = [8, 32], strides = [1, 1]} : vector<8x96xf32> to vector<8x32xf32>
    %177 = vector.extract_strided_slice %159 {offsets = [0, 64], sizes = [8, 32], strides = [1, 1]} : vector<8x96xf32> to vector<8x32xf32>
    %178 = vector.broadcast %6 : vector<1x32xf32> to vector<8x32xf32>
    %179 = arith.addf %177, %178 : vector<8x32xf32>
    %180 = arith.mulf %167, %179 : vector<8x32xf32>
    %181 = arith.addf %176, %180 : vector<8x32xf32>
    %182 = math.tanh %181 : vector<8x32xf32>
    %cst_58 = arith.constant 1.000000e+00 : f32
    %183 = vector.broadcast %cst_58 : f32 to vector<8x32xf32>
    %184 = arith.subf %183, %175 : vector<8x32xf32>
    %185 = arith.mulf %184, %182 : vector<8x32xf32>
    %186 = arith.mulf %175, %119 : vector<8x32xf32>
    %187 = arith.addf %185, %186 : vector<8x32xf32>
    %cst_59 = arith.constant dense<0.000000e+00> : vector<8x96xf32>
    %188 = tpu.matmul %187, %4, %cst_59 {dimension_numbers = #tpu.dot_dimension_numbers<[1], [0], [0], [1], [0, 0, 1, 1], [], []>} : vector<8x32xf32>, vector<32x96xf32>, vector<8x96xf32> -> vector<8x96xf32>
    %189 = vector.broadcast %7 : vector<1x96xf32> to vector<8x96xf32>
    %190 = arith.addf %188, %189 : vector<8x96xf32>
    %cst_60 = arith.constant dense<0.000000e+00> : vector<8x96xf32>
    %191 = tpu.matmul %151, %5, %cst_60 {dimension_numbers = #tpu.dot_dimension_numbers<[1], [0], [0], [1], [0, 0, 1, 1], [], []>} : vector<8x32xf32>, vector<32x96xf32>, vector<8x96xf32> -> vector<8x96xf32>
    %192 = vector.extract_strided_slice %190 {offsets = [0, 0], sizes = [8, 32], strides = [1, 1]} : vector<8x96xf32> to vector<8x32xf32>
    %193 = vector.extract_strided_slice %191 {offsets = [0, 0], sizes = [8, 32], strides = [1, 1]} : vector<8x96xf32> to vector<8x32xf32>
    %194 = arith.addf %192, %193 : vector<8x32xf32>
    %195 = arith.negf %194 : vector<8x32xf32>
    %196 = math.exp %195 : vector<8x32xf32>
    %cst_61 = arith.constant 1.000000e+00 : f32
    %197 = vector.broadcast %cst_61 : f32 to vector<8x32xf32>
    %198 = arith.addf %197, %196 : vector<8x32xf32>
    %199 = arith.divf %197, %198 : vector<8x32xf32>
    %200 = vector.extract_strided_slice %190 {offsets = [0, 32], sizes = [8, 32], strides = [1, 1]} : vector<8x96xf32> to vector<8x32xf32>
    %201 = vector.extract_strided_slice %191 {offsets = [0, 32], sizes = [8, 32], strides = [1, 1]} : vector<8x96xf32> to vector<8x32xf32>
    %202 = arith.addf %200, %201 : vector<8x32xf32>
    %203 = arith.negf %202 : vector<8x32xf32>
    %204 = math.exp %203 : vector<8x32xf32>
    %cst_62 = arith.constant 1.000000e+00 : f32
    %205 = vector.broadcast %cst_62 : f32 to vector<8x32xf32>
    %206 = arith.addf %205, %204 : vector<8x32xf32>
    %207 = arith.divf %205, %206 : vector<8x32xf32>
    %208 = vector.extract_strided_slice %190 {offsets = [0, 64], sizes = [8, 32], strides = [1, 1]} : vector<8x96xf32> to vector<8x32xf32>
    %209 = vector.extract_strided_slice %191 {offsets = [0, 64], sizes = [8, 32], strides = [1, 1]} : vector<8x96xf32> to vector<8x32xf32>
    %210 = vector.broadcast %8 : vector<1x32xf32> to vector<8x32xf32>
    %211 = arith.addf %209, %210 : vector<8x32xf32>
    %212 = arith.mulf %199, %211 : vector<8x32xf32>
    %213 = arith.addf %208, %212 : vector<8x32xf32>
    %214 = math.tanh %213 : vector<8x32xf32>
    %cst_63 = arith.constant 1.000000e+00 : f32
    %215 = vector.broadcast %cst_63 : f32 to vector<8x32xf32>
    %216 = arith.subf %215, %207 : vector<8x32xf32>
    %217 = arith.mulf %216, %214 : vector<8x32xf32>
    %218 = arith.mulf %207, %151 : vector<8x32xf32>
    %219 = arith.addf %217, %218 : vector<8x32xf32>
    %220 = arith.index_cast %c2_i32 : i32 to index
    %c0_64 = arith.constant 0 : index
    %c0_65 = arith.constant 0 : index
    %221 = vector.load %arg17[%220, %c0_64, %c0_65] : memref<8x8x32xf32, #tpu.memory_space<vmem>>, vector<1x8x32xf32>
    %222 = vector.shape_cast %221 : vector<1x8x32xf32> to vector<8x32xf32>
    %223 = vector.shape_cast %219 : vector<8x32xf32> to vector<1x8x32xf32>
    tpu.vector_store %arg17[%220, %c0_64, %c0_65], %223 {strides = array<i32>} : memref<8x8x32xf32, #tpu.memory_space<vmem>>, vector<1x8x32xf32>,
    %c3_i32 = arith.constant 3 : i32
    %224 = arith.index_cast %c3_i32 : i32 to index
    %c0_66 = arith.constant 0 : index
    %c0_67 = arith.constant 0 : index
    %225 = vector.load %arg16[%224, %c0_66, %c0_67] : memref<8x8x96xf32, #tpu.memory_space<vmem>>, vector<1x8x96xf32>
    %226 = vector.shape_cast %225 : vector<1x8x96xf32> to vector<8x96xf32>
    %cst_68 = arith.constant dense<0.000000e+00> : vector<8x96xf32>
    %227 = tpu.matmul %187, %3, %cst_68 {dimension_numbers = #tpu.dot_dimension_numbers<[1], [0], [0], [1], [0, 0, 1, 1], [], []>} : vector<8x32xf32>, vector<32x96xf32>, vector<8x96xf32> -> vector<8x96xf32>
    %228 = vector.extract_strided_slice %226 {offsets = [0, 0], sizes = [8, 32], strides = [1, 1]} : vector<8x96xf32> to vector<8x32xf32>
    %229 = vector.extract_strided_slice %227 {offsets = [0, 0], sizes = [8, 32], strides = [1, 1]} : vector<8x96xf32> to vector<8x32xf32>
    %230 = arith.addf %228, %229 : vector<8x32xf32>
    %231 = arith.negf %230 : vector<8x32xf32>
    %232 = math.exp %231 : vector<8x32xf32>
    %cst_69 = arith.constant 1.000000e+00 : f32
    %233 = vector.broadcast %cst_69 : f32 to vector<8x32xf32>
    %234 = arith.addf %233, %232 : vector<8x32xf32>
    %235 = arith.divf %233, %234 : vector<8x32xf32>
    %236 = vector.extract_strided_slice %226 {offsets = [0, 32], sizes = [8, 32], strides = [1, 1]} : vector<8x96xf32> to vector<8x32xf32>
    %237 = vector.extract_strided_slice %227 {offsets = [0, 32], sizes = [8, 32], strides = [1, 1]} : vector<8x96xf32> to vector<8x32xf32>
    %238 = arith.addf %236, %237 : vector<8x32xf32>
    %239 = arith.negf %238 : vector<8x32xf32>
    %240 = math.exp %239 : vector<8x32xf32>
    %cst_70 = arith.constant 1.000000e+00 : f32
    %241 = vector.broadcast %cst_70 : f32 to vector<8x32xf32>
    %242 = arith.addf %241, %240 : vector<8x32xf32>
    %243 = arith.divf %241, %242 : vector<8x32xf32>
    %244 = vector.extract_strided_slice %226 {offsets = [0, 64], sizes = [8, 32], strides = [1, 1]} : vector<8x96xf32> to vector<8x32xf32>
    %245 = vector.extract_strided_slice %227 {offsets = [0, 64], sizes = [8, 32], strides = [1, 1]} : vector<8x96xf32> to vector<8x32xf32>
    %246 = vector.broadcast %6 : vector<1x32xf32> to vector<8x32xf32>
    %247 = arith.addf %245, %246 : vector<8x32xf32>
    %248 = arith.mulf %235, %247 : vector<8x32xf32>
    %249 = arith.addf %244, %248 : vector<8x32xf32>
    %250 = math.tanh %249 : vector<8x32xf32>
    %cst_71 = arith.constant 1.000000e+00 : f32
    %251 = vector.broadcast %cst_71 : f32 to vector<8x32xf32>
    %252 = arith.subf %251, %243 : vector<8x32xf32>
    %253 = arith.mulf %252, %250 : vector<8x32xf32>
    %254 = arith.mulf %243, %187 : vector<8x32xf32>
    %255 = arith.addf %253, %254 : vector<8x32xf32>
    %cst_72 = arith.constant dense<0.000000e+00> : vector<8x96xf32>
    %256 = tpu.matmul %255, %4, %cst_72 {dimension_numbers = #tpu.dot_dimension_numbers<[1], [0], [0], [1], [0, 0, 1, 1], [], []>} : vector<8x32xf32>, vector<32x96xf32>, vector<8x96xf32> -> vector<8x96xf32>
    %257 = vector.broadcast %7 : vector<1x96xf32> to vector<8x96xf32>
    %258 = arith.addf %256, %257 : vector<8x96xf32>
    %cst_73 = arith.constant dense<0.000000e+00> : vector<8x96xf32>
    %259 = tpu.matmul %219, %5, %cst_73 {dimension_numbers = #tpu.dot_dimension_numbers<[1], [0], [0], [1], [0, 0, 1, 1], [], []>} : vector<8x32xf32>, vector<32x96xf32>, vector<8x96xf32> -> vector<8x96xf32>
    %260 = vector.extract_strided_slice %258 {offsets = [0, 0], sizes = [8, 32], strides = [1, 1]} : vector<8x96xf32> to vector<8x32xf32>
    %261 = vector.extract_strided_slice %259 {offsets = [0, 0], sizes = [8, 32], strides = [1, 1]} : vector<8x96xf32> to vector<8x32xf32>
    %262 = arith.addf %260, %261 : vector<8x32xf32>
    %263 = arith.negf %262 : vector<8x32xf32>
    %264 = math.exp %263 : vector<8x32xf32>
    %cst_74 = arith.constant 1.000000e+00 : f32
    %265 = vector.broadcast %cst_74 : f32 to vector<8x32xf32>
    %266 = arith.addf %265, %264 : vector<8x32xf32>
    %267 = arith.divf %265, %266 : vector<8x32xf32>
    %268 = vector.extract_strided_slice %258 {offsets = [0, 32], sizes = [8, 32], strides = [1, 1]} : vector<8x96xf32> to vector<8x32xf32>
    %269 = vector.extract_strided_slice %259 {offsets = [0, 32], sizes = [8, 32], strides = [1, 1]} : vector<8x96xf32> to vector<8x32xf32>
    %270 = arith.addf %268, %269 : vector<8x32xf32>
    %271 = arith.negf %270 : vector<8x32xf32>
    %272 = math.exp %271 : vector<8x32xf32>
    %cst_75 = arith.constant 1.000000e+00 : f32
    %273 = vector.broadcast %cst_75 : f32 to vector<8x32xf32>
    %274 = arith.addf %273, %272 : vector<8x32xf32>
    %275 = arith.divf %273, %274 : vector<8x32xf32>
    %276 = vector.extract_strided_slice %258 {offsets = [0, 64], sizes = [8, 32], strides = [1, 1]} : vector<8x96xf32> to vector<8x32xf32>
    %277 = vector.extract_strided_slice %259 {offsets = [0, 64], sizes = [8, 32], strides = [1, 1]} : vector<8x96xf32> to vector<8x32xf32>
    %278 = vector.broadcast %8 : vector<1x32xf32> to vector<8x32xf32>
    %279 = arith.addf %277, %278 : vector<8x32xf32>
    %280 = arith.mulf %267, %279 : vector<8x32xf32>
    %281 = arith.addf %276, %280 : vector<8x32xf32>
    %282 = math.tanh %281 : vector<8x32xf32>
    %cst_76 = arith.constant 1.000000e+00 : f32
    %283 = vector.broadcast %cst_76 : f32 to vector<8x32xf32>
    %284 = arith.subf %283, %275 : vector<8x32xf32>
    %285 = arith.mulf %284, %282 : vector<8x32xf32>
    %286 = arith.mulf %275, %219 : vector<8x32xf32>
    %287 = arith.addf %285, %286 : vector<8x32xf32>
    %288 = arith.index_cast %c3_i32 : i32 to index
    %c0_77 = arith.constant 0 : index
    %c0_78 = arith.constant 0 : index
    %289 = vector.load %arg17[%288, %c0_77, %c0_78] : memref<8x8x32xf32, #tpu.memory_space<vmem>>, vector<1x8x32xf32>
    %290 = vector.shape_cast %289 : vector<1x8x32xf32> to vector<8x32xf32>
    %291 = vector.shape_cast %287 : vector<8x32xf32> to vector<1x8x32xf32>
    tpu.vector_store %arg17[%288, %c0_77, %c0_78], %291 {strides = array<i32>} : memref<8x8x32xf32, #tpu.memory_space<vmem>>, vector<1x8x32xf32>,
    %c4_i32 = arith.constant 4 : i32
    %292 = arith.index_cast %c4_i32 : i32 to index
    %c0_79 = arith.constant 0 : index
    %c0_80 = arith.constant 0 : index
    %293 = vector.load %arg16[%292, %c0_79, %c0_80] : memref<8x8x96xf32, #tpu.memory_space<vmem>>, vector<1x8x96xf32>
    %294 = vector.shape_cast %293 : vector<1x8x96xf32> to vector<8x96xf32>
    %cst_81 = arith.constant dense<0.000000e+00> : vector<8x96xf32>
    %295 = tpu.matmul %255, %3, %cst_81 {dimension_numbers = #tpu.dot_dimension_numbers<[1], [0], [0], [1], [0, 0, 1, 1], [], []>} : vector<8x32xf32>, vector<32x96xf32>, vector<8x96xf32> -> vector<8x96xf32>
    %296 = vector.extract_strided_slice %294 {offsets = [0, 0], sizes = [8, 32], strides = [1, 1]} : vector<8x96xf32> to vector<8x32xf32>
    %297 = vector.extract_strided_slice %295 {offsets = [0, 0], sizes = [8, 32], strides = [1, 1]} : vector<8x96xf32> to vector<8x32xf32>
    %298 = arith.addf %296, %297 : vector<8x32xf32>
    %299 = arith.negf %298 : vector<8x32xf32>
    %300 = math.exp %299 : vector<8x32xf32>
    %cst_82 = arith.constant 1.000000e+00 : f32
    %301 = vector.broadcast %cst_82 : f32 to vector<8x32xf32>
    %302 = arith.addf %301, %300 : vector<8x32xf32>
    %303 = arith.divf %301, %302 : vector<8x32xf32>
    %304 = vector.extract_strided_slice %294 {offsets = [0, 32], sizes = [8, 32], strides = [1, 1]} : vector<8x96xf32> to vector<8x32xf32>
    %305 = vector.extract_strided_slice %295 {offsets = [0, 32], sizes = [8, 32], strides = [1, 1]} : vector<8x96xf32> to vector<8x32xf32>
    %306 = arith.addf %304, %305 : vector<8x32xf32>
    %307 = arith.negf %306 : vector<8x32xf32>
    %308 = math.exp %307 : vector<8x32xf32>
    %cst_83 = arith.constant 1.000000e+00 : f32
    %309 = vector.broadcast %cst_83 : f32 to vector<8x32xf32>
    %310 = arith.addf %309, %308 : vector<8x32xf32>
    %311 = arith.divf %309, %310 : vector<8x32xf32>
    %312 = vector.extract_strided_slice %294 {offsets = [0, 64], sizes = [8, 32], strides = [1, 1]} : vector<8x96xf32> to vector<8x32xf32>
    %313 = vector.extract_strided_slice %295 {offsets = [0, 64], sizes = [8, 32], strides = [1, 1]} : vector<8x96xf32> to vector<8x32xf32>
    %314 = vector.broadcast %6 : vector<1x32xf32> to vector<8x32xf32>
    %315 = arith.addf %313, %314 : vector<8x32xf32>
    %316 = arith.mulf %303, %315 : vector<8x32xf32>
    %317 = arith.addf %312, %316 : vector<8x32xf32>
    %318 = math.tanh %317 : vector<8x32xf32>
    %cst_84 = arith.constant 1.000000e+00 : f32
    %319 = vector.broadcast %cst_84 : f32 to vector<8x32xf32>
    %320 = arith.subf %319, %311 : vector<8x32xf32>
    %321 = arith.mulf %320, %318 : vector<8x32xf32>
    %322 = arith.mulf %311, %255 : vector<8x32xf32>
    %323 = arith.addf %321, %322 : vector<8x32xf32>
    %cst_85 = arith.constant dense<0.000000e+00> : vector<8x96xf32>
    %324 = tpu.matmul %323, %4, %cst_85 {dimension_numbers = #tpu.dot_dimension_numbers<[1], [0], [0], [1], [0, 0, 1, 1], [], []>} : vector<8x32xf32>, vector<32x96xf32>, vector<8x96xf32> -> vector<8x96xf32>
    %325 = vector.broadcast %7 : vector<1x96xf32> to vector<8x96xf32>
    %326 = arith.addf %324, %325 : vector<8x96xf32>
    %cst_86 = arith.constant dense<0.000000e+00> : vector<8x96xf32>
    %327 = tpu.matmul %287, %5, %cst_86 {dimension_numbers = #tpu.dot_dimension_numbers<[1], [0], [0], [1], [0, 0, 1, 1], [], []>} : vector<8x32xf32>, vector<32x96xf32>, vector<8x96xf32> -> vector<8x96xf32>
    %328 = vector.extract_strided_slice %326 {offsets = [0, 0], sizes = [8, 32], strides = [1, 1]} : vector<8x96xf32> to vector<8x32xf32>
    %329 = vector.extract_strided_slice %327 {offsets = [0, 0], sizes = [8, 32], strides = [1, 1]} : vector<8x96xf32> to vector<8x32xf32>
    %330 = arith.addf %328, %329 : vector<8x32xf32>
    %331 = arith.negf %330 : vector<8x32xf32>
    %332 = math.exp %331 : vector<8x32xf32>
    %cst_87 = arith.constant 1.000000e+00 : f32
    %333 = vector.broadcast %cst_87 : f32 to vector<8x32xf32>
    %334 = arith.addf %333, %332 : vector<8x32xf32>
    %335 = arith.divf %333, %334 : vector<8x32xf32>
    %336 = vector.extract_strided_slice %326 {offsets = [0, 32], sizes = [8, 32], strides = [1, 1]} : vector<8x96xf32> to vector<8x32xf32>
    %337 = vector.extract_strided_slice %327 {offsets = [0, 32], sizes = [8, 32], strides = [1, 1]} : vector<8x96xf32> to vector<8x32xf32>
    %338 = arith.addf %336, %337 : vector<8x32xf32>
    %339 = arith.negf %338 : vector<8x32xf32>
    %340 = math.exp %339 : vector<8x32xf32>
    %cst_88 = arith.constant 1.000000e+00 : f32
    %341 = vector.broadcast %cst_88 : f32 to vector<8x32xf32>
    %342 = arith.addf %341, %340 : vector<8x32xf32>
    %343 = arith.divf %341, %342 : vector<8x32xf32>
    %344 = vector.extract_strided_slice %326 {offsets = [0, 64], sizes = [8, 32], strides = [1, 1]} : vector<8x96xf32> to vector<8x32xf32>
    %345 = vector.extract_strided_slice %327 {offsets = [0, 64], sizes = [8, 32], strides = [1, 1]} : vector<8x96xf32> to vector<8x32xf32>
    %346 = vector.broadcast %8 : vector<1x32xf32> to vector<8x32xf32>
    %347 = arith.addf %345, %346 : vector<8x32xf32>
    %348 = arith.mulf %335, %347 : vector<8x32xf32>
    %349 = arith.addf %344, %348 : vector<8x32xf32>
    %350 = math.tanh %349 : vector<8x32xf32>
    %cst_89 = arith.constant 1.000000e+00 : f32
    %351 = vector.broadcast %cst_89 : f32 to vector<8x32xf32>
    %352 = arith.subf %351, %343 : vector<8x32xf32>
    %353 = arith.mulf %352, %350 : vector<8x32xf32>
    %354 = arith.mulf %343, %287 : vector<8x32xf32>
    %355 = arith.addf %353, %354 : vector<8x32xf32>
    %356 = arith.index_cast %c4_i32 : i32 to index
    %c0_90 = arith.constant 0 : index
    %c0_91 = arith.constant 0 : index
    %357 = vector.load %arg17[%356, %c0_90, %c0_91] : memref<8x8x32xf32, #tpu.memory_space<vmem>>, vector<1x8x32xf32>
    %358 = vector.shape_cast %357 : vector<1x8x32xf32> to vector<8x32xf32>
    %359 = vector.shape_cast %355 : vector<8x32xf32> to vector<1x8x32xf32>
    tpu.vector_store %arg17[%356, %c0_90, %c0_91], %359 {strides = array<i32>} : memref<8x8x32xf32, #tpu.memory_space<vmem>>, vector<1x8x32xf32>,
    %c5_i32 = arith.constant 5 : i32
    %360 = arith.index_cast %c5_i32 : i32 to index
    %c0_92 = arith.constant 0 : index
    %c0_93 = arith.constant 0 : index
    %361 = vector.load %arg16[%360, %c0_92, %c0_93] : memref<8x8x96xf32, #tpu.memory_space<vmem>>, vector<1x8x96xf32>
    %362 = vector.shape_cast %361 : vector<1x8x96xf32> to vector<8x96xf32>
    %cst_94 = arith.constant dense<0.000000e+00> : vector<8x96xf32>
    %363 = tpu.matmul %323, %3, %cst_94 {dimension_numbers = #tpu.dot_dimension_numbers<[1], [0], [0], [1], [0, 0, 1, 1], [], []>} : vector<8x32xf32>, vector<32x96xf32>, vector<8x96xf32> -> vector<8x96xf32>
    %364 = vector.extract_strided_slice %362 {offsets = [0, 0], sizes = [8, 32], strides = [1, 1]} : vector<8x96xf32> to vector<8x32xf32>
    %365 = vector.extract_strided_slice %363 {offsets = [0, 0], sizes = [8, 32], strides = [1, 1]} : vector<8x96xf32> to vector<8x32xf32>
    %366 = arith.addf %364, %365 : vector<8x32xf32>
    %367 = arith.negf %366 : vector<8x32xf32>
    %368 = math.exp %367 : vector<8x32xf32>
    %cst_95 = arith.constant 1.000000e+00 : f32
    %369 = vector.broadcast %cst_95 : f32 to vector<8x32xf32>
    %370 = arith.addf %369, %368 : vector<8x32xf32>
    %371 = arith.divf %369, %370 : vector<8x32xf32>
    %372 = vector.extract_strided_slice %362 {offsets = [0, 32], sizes = [8, 32], strides = [1, 1]} : vector<8x96xf32> to vector<8x32xf32>
    %373 = vector.extract_strided_slice %363 {offsets = [0, 32], sizes = [8, 32], strides = [1, 1]} : vector<8x96xf32> to vector<8x32xf32>
    %374 = arith.addf %372, %373 : vector<8x32xf32>
    %375 = arith.negf %374 : vector<8x32xf32>
    %376 = math.exp %375 : vector<8x32xf32>
    %cst_96 = arith.constant 1.000000e+00 : f32
    %377 = vector.broadcast %cst_96 : f32 to vector<8x32xf32>
    %378 = arith.addf %377, %376 : vector<8x32xf32>
    %379 = arith.divf %377, %378 : vector<8x32xf32>
    %380 = vector.extract_strided_slice %362 {offsets = [0, 64], sizes = [8, 32], strides = [1, 1]} : vector<8x96xf32> to vector<8x32xf32>
    %381 = vector.extract_strided_slice %363 {offsets = [0, 64], sizes = [8, 32], strides = [1, 1]} : vector<8x96xf32> to vector<8x32xf32>
    %382 = vector.broadcast %6 : vector<1x32xf32> to vector<8x32xf32>
    %383 = arith.addf %381, %382 : vector<8x32xf32>
    %384 = arith.mulf %371, %383 : vector<8x32xf32>
    %385 = arith.addf %380, %384 : vector<8x32xf32>
    %386 = math.tanh %385 : vector<8x32xf32>
    %cst_97 = arith.constant 1.000000e+00 : f32
    %387 = vector.broadcast %cst_97 : f32 to vector<8x32xf32>
    %388 = arith.subf %387, %379 : vector<8x32xf32>
    %389 = arith.mulf %388, %386 : vector<8x32xf32>
    %390 = arith.mulf %379, %323 : vector<8x32xf32>
    %391 = arith.addf %389, %390 : vector<8x32xf32>
    %cst_98 = arith.constant dense<0.000000e+00> : vector<8x96xf32>
    %392 = tpu.matmul %391, %4, %cst_98 {dimension_numbers = #tpu.dot_dimension_numbers<[1], [0], [0], [1], [0, 0, 1, 1], [], []>} : vector<8x32xf32>, vector<32x96xf32>, vector<8x96xf32> -> vector<8x96xf32>
    %393 = vector.broadcast %7 : vector<1x96xf32> to vector<8x96xf32>
    %394 = arith.addf %392, %393 : vector<8x96xf32>
    %cst_99 = arith.constant dense<0.000000e+00> : vector<8x96xf32>
    %395 = tpu.matmul %355, %5, %cst_99 {dimension_numbers = #tpu.dot_dimension_numbers<[1], [0], [0], [1], [0, 0, 1, 1], [], []>} : vector<8x32xf32>, vector<32x96xf32>, vector<8x96xf32> -> vector<8x96xf32>
    %396 = vector.extract_strided_slice %394 {offsets = [0, 0], sizes = [8, 32], strides = [1, 1]} : vector<8x96xf32> to vector<8x32xf32>
    %397 = vector.extract_strided_slice %395 {offsets = [0, 0], sizes = [8, 32], strides = [1, 1]} : vector<8x96xf32> to vector<8x32xf32>
    %398 = arith.addf %396, %397 : vector<8x32xf32>
    %399 = arith.negf %398 : vector<8x32xf32>
    %400 = math.exp %399 : vector<8x32xf32>
    %cst_100 = arith.constant 1.000000e+00 : f32
    %401 = vector.broadcast %cst_100 : f32 to vector<8x32xf32>
    %402 = arith.addf %401, %400 : vector<8x32xf32>
    %403 = arith.divf %401, %402 : vector<8x32xf32>
    %404 = vector.extract_strided_slice %394 {offsets = [0, 32], sizes = [8, 32], strides = [1, 1]} : vector<8x96xf32> to vector<8x32xf32>
    %405 = vector.extract_strided_slice %395 {offsets = [0, 32], sizes = [8, 32], strides = [1, 1]} : vector<8x96xf32> to vector<8x32xf32>
    %406 = arith.addf %404, %405 : vector<8x32xf32>
    %407 = arith.negf %406 : vector<8x32xf32>
    %408 = math.exp %407 : vector<8x32xf32>
    %cst_101 = arith.constant 1.000000e+00 : f32
    %409 = vector.broadcast %cst_101 : f32 to vector<8x32xf32>
    %410 = arith.addf %409, %408 : vector<8x32xf32>
    %411 = arith.divf %409, %410 : vector<8x32xf32>
    %412 = vector.extract_strided_slice %394 {offsets = [0, 64], sizes = [8, 32], strides = [1, 1]} : vector<8x96xf32> to vector<8x32xf32>
    %413 = vector.extract_strided_slice %395 {offsets = [0, 64], sizes = [8, 32], strides = [1, 1]} : vector<8x96xf32> to vector<8x32xf32>
    %414 = vector.broadcast %8 : vector<1x32xf32> to vector<8x32xf32>
    %415 = arith.addf %413, %414 : vector<8x32xf32>
    %416 = arith.mulf %403, %415 : vector<8x32xf32>
    %417 = arith.addf %412, %416 : vector<8x32xf32>
    %418 = math.tanh %417 : vector<8x32xf32>
    %cst_102 = arith.constant 1.000000e+00 : f32
    %419 = vector.broadcast %cst_102 : f32 to vector<8x32xf32>
    %420 = arith.subf %419, %411 : vector<8x32xf32>
    %421 = arith.mulf %420, %418 : vector<8x32xf32>
    %422 = arith.mulf %411, %355 : vector<8x32xf32>
    %423 = arith.addf %421, %422 : vector<8x32xf32>
    %424 = arith.index_cast %c5_i32 : i32 to index
    %c0_103 = arith.constant 0 : index
    %c0_104 = arith.constant 0 : index
    %425 = vector.load %arg17[%424, %c0_103, %c0_104] : memref<8x8x32xf32, #tpu.memory_space<vmem>>, vector<1x8x32xf32>
    %426 = vector.shape_cast %425 : vector<1x8x32xf32> to vector<8x32xf32>
    %427 = vector.shape_cast %423 : vector<8x32xf32> to vector<1x8x32xf32>
    tpu.vector_store %arg17[%424, %c0_103, %c0_104], %427 {strides = array<i32>} : memref<8x8x32xf32, #tpu.memory_space<vmem>>, vector<1x8x32xf32>,
    %c6_i32 = arith.constant 6 : i32
    %428 = arith.index_cast %c6_i32 : i32 to index
    %c0_105 = arith.constant 0 : index
    %c0_106 = arith.constant 0 : index
    %429 = vector.load %arg16[%428, %c0_105, %c0_106] : memref<8x8x96xf32, #tpu.memory_space<vmem>>, vector<1x8x96xf32>
    %430 = vector.shape_cast %429 : vector<1x8x96xf32> to vector<8x96xf32>
    %cst_107 = arith.constant dense<0.000000e+00> : vector<8x96xf32>
    %431 = tpu.matmul %391, %3, %cst_107 {dimension_numbers = #tpu.dot_dimension_numbers<[1], [0], [0], [1], [0, 0, 1, 1], [], []>} : vector<8x32xf32>, vector<32x96xf32>, vector<8x96xf32> -> vector<8x96xf32>
    %432 = vector.extract_strided_slice %430 {offsets = [0, 0], sizes = [8, 32], strides = [1, 1]} : vector<8x96xf32> to vector<8x32xf32>
    %433 = vector.extract_strided_slice %431 {offsets = [0, 0], sizes = [8, 32], strides = [1, 1]} : vector<8x96xf32> to vector<8x32xf32>
    %434 = arith.addf %432, %433 : vector<8x32xf32>
    %435 = arith.negf %434 : vector<8x32xf32>
    %436 = math.exp %435 : vector<8x32xf32>
    %cst_108 = arith.constant 1.000000e+00 : f32
    %437 = vector.broadcast %cst_108 : f32 to vector<8x32xf32>
    %438 = arith.addf %437, %436 : vector<8x32xf32>
    %439 = arith.divf %437, %438 : vector<8x32xf32>
    %440 = vector.extract_strided_slice %430 {offsets = [0, 32], sizes = [8, 32], strides = [1, 1]} : vector<8x96xf32> to vector<8x32xf32>
    %441 = vector.extract_strided_slice %431 {offsets = [0, 32], sizes = [8, 32], strides = [1, 1]} : vector<8x96xf32> to vector<8x32xf32>
    %442 = arith.addf %440, %441 : vector<8x32xf32>
    %443 = arith.negf %442 : vector<8x32xf32>
    %444 = math.exp %443 : vector<8x32xf32>
    %cst_109 = arith.constant 1.000000e+00 : f32
    %445 = vector.broadcast %cst_109 : f32 to vector<8x32xf32>
    %446 = arith.addf %445, %444 : vector<8x32xf32>
    %447 = arith.divf %445, %446 : vector<8x32xf32>
    %448 = vector.extract_strided_slice %430 {offsets = [0, 64], sizes = [8, 32], strides = [1, 1]} : vector<8x96xf32> to vector<8x32xf32>
    %449 = vector.extract_strided_slice %431 {offsets = [0, 64], sizes = [8, 32], strides = [1, 1]} : vector<8x96xf32> to vector<8x32xf32>
    %450 = vector.broadcast %6 : vector<1x32xf32> to vector<8x32xf32>
    %451 = arith.addf %449, %450 : vector<8x32xf32>
    %452 = arith.mulf %439, %451 : vector<8x32xf32>
    %453 = arith.addf %448, %452 : vector<8x32xf32>
    %454 = math.tanh %453 : vector<8x32xf32>
    %cst_110 = arith.constant 1.000000e+00 : f32
    %455 = vector.broadcast %cst_110 : f32 to vector<8x32xf32>
    %456 = arith.subf %455, %447 : vector<8x32xf32>
    %457 = arith.mulf %456, %454 : vector<8x32xf32>
    %458 = arith.mulf %447, %391 : vector<8x32xf32>
    %459 = arith.addf %457, %458 : vector<8x32xf32>
    %cst_111 = arith.constant dense<0.000000e+00> : vector<8x96xf32>
    %460 = tpu.matmul %459, %4, %cst_111 {dimension_numbers = #tpu.dot_dimension_numbers<[1], [0], [0], [1], [0, 0, 1, 1], [], []>} : vector<8x32xf32>, vector<32x96xf32>, vector<8x96xf32> -> vector<8x96xf32>
    %461 = vector.broadcast %7 : vector<1x96xf32> to vector<8x96xf32>
    %462 = arith.addf %460, %461 : vector<8x96xf32>
    %cst_112 = arith.constant dense<0.000000e+00> : vector<8x96xf32>
    %463 = tpu.matmul %423, %5, %cst_112 {dimension_numbers = #tpu.dot_dimension_numbers<[1], [0], [0], [1], [0, 0, 1, 1], [], []>} : vector<8x32xf32>, vector<32x96xf32>, vector<8x96xf32> -> vector<8x96xf32>
    %464 = vector.extract_strided_slice %462 {offsets = [0, 0], sizes = [8, 32], strides = [1, 1]} : vector<8x96xf32> to vector<8x32xf32>
    %465 = vector.extract_strided_slice %463 {offsets = [0, 0], sizes = [8, 32], strides = [1, 1]} : vector<8x96xf32> to vector<8x32xf32>
    %466 = arith.addf %464, %465 : vector<8x32xf32>
    %467 = arith.negf %466 : vector<8x32xf32>
    %468 = math.exp %467 : vector<8x32xf32>
    %cst_113 = arith.constant 1.000000e+00 : f32
    %469 = vector.broadcast %cst_113 : f32 to vector<8x32xf32>
    %470 = arith.addf %469, %468 : vector<8x32xf32>
    %471 = arith.divf %469, %470 : vector<8x32xf32>
    %472 = vector.extract_strided_slice %462 {offsets = [0, 32], sizes = [8, 32], strides = [1, 1]} : vector<8x96xf32> to vector<8x32xf32>
    %473 = vector.extract_strided_slice %463 {offsets = [0, 32], sizes = [8, 32], strides = [1, 1]} : vector<8x96xf32> to vector<8x32xf32>
    %474 = arith.addf %472, %473 : vector<8x32xf32>
    %475 = arith.negf %474 : vector<8x32xf32>
    %476 = math.exp %475 : vector<8x32xf32>
    %cst_114 = arith.constant 1.000000e+00 : f32
    %477 = vector.broadcast %cst_114 : f32 to vector<8x32xf32>
    %478 = arith.addf %477, %476 : vector<8x32xf32>
    %479 = arith.divf %477, %478 : vector<8x32xf32>
    %480 = vector.extract_strided_slice %462 {offsets = [0, 64], sizes = [8, 32], strides = [1, 1]} : vector<8x96xf32> to vector<8x32xf32>
    %481 = vector.extract_strided_slice %463 {offsets = [0, 64], sizes = [8, 32], strides = [1, 1]} : vector<8x96xf32> to vector<8x32xf32>
    %482 = vector.broadcast %8 : vector<1x32xf32> to vector<8x32xf32>
    %483 = arith.addf %481, %482 : vector<8x32xf32>
    %484 = arith.mulf %471, %483 : vector<8x32xf32>
    %485 = arith.addf %480, %484 : vector<8x32xf32>
    %486 = math.tanh %485 : vector<8x32xf32>
    %cst_115 = arith.constant 1.000000e+00 : f32
    %487 = vector.broadcast %cst_115 : f32 to vector<8x32xf32>
    %488 = arith.subf %487, %479 : vector<8x32xf32>
    %489 = arith.mulf %488, %486 : vector<8x32xf32>
    %490 = arith.mulf %479, %423 : vector<8x32xf32>
    %491 = arith.addf %489, %490 : vector<8x32xf32>
    %492 = arith.index_cast %c6_i32 : i32 to index
    %c0_116 = arith.constant 0 : index
    %c0_117 = arith.constant 0 : index
    %493 = vector.load %arg17[%492, %c0_116, %c0_117] : memref<8x8x32xf32, #tpu.memory_space<vmem>>, vector<1x8x32xf32>
    %494 = vector.shape_cast %493 : vector<1x8x32xf32> to vector<8x32xf32>
    %495 = vector.shape_cast %491 : vector<8x32xf32> to vector<1x8x32xf32>
    tpu.vector_store %arg17[%492, %c0_116, %c0_117], %495 {strides = array<i32>} : memref<8x8x32xf32, #tpu.memory_space<vmem>>, vector<1x8x32xf32>,
    %c7_i32 = arith.constant 7 : i32
    %496 = arith.index_cast %c7_i32 : i32 to index
    %c0_118 = arith.constant 0 : index
    %c0_119 = arith.constant 0 : index
    %497 = vector.load %arg16[%496, %c0_118, %c0_119] : memref<8x8x96xf32, #tpu.memory_space<vmem>>, vector<1x8x96xf32>
    %498 = vector.shape_cast %497 : vector<1x8x96xf32> to vector<8x96xf32>
    %cst_120 = arith.constant dense<0.000000e+00> : vector<8x96xf32>
    %499 = tpu.matmul %459, %3, %cst_120 {dimension_numbers = #tpu.dot_dimension_numbers<[1], [0], [0], [1], [0, 0, 1, 1], [], []>} : vector<8x32xf32>, vector<32x96xf32>, vector<8x96xf32> -> vector<8x96xf32>
    %500 = vector.extract_strided_slice %498 {offsets = [0, 0], sizes = [8, 32], strides = [1, 1]} : vector<8x96xf32> to vector<8x32xf32>
    %501 = vector.extract_strided_slice %499 {offsets = [0, 0], sizes = [8, 32], strides = [1, 1]} : vector<8x96xf32> to vector<8x32xf32>
    %502 = arith.addf %500, %501 : vector<8x32xf32>
    %503 = arith.negf %502 : vector<8x32xf32>
    %504 = math.exp %503 : vector<8x32xf32>
    %cst_121 = arith.constant 1.000000e+00 : f32
    %505 = vector.broadcast %cst_121 : f32 to vector<8x32xf32>
    %506 = arith.addf %505, %504 : vector<8x32xf32>
    %507 = arith.divf %505, %506 : vector<8x32xf32>
    %508 = vector.extract_strided_slice %498 {offsets = [0, 32], sizes = [8, 32], strides = [1, 1]} : vector<8x96xf32> to vector<8x32xf32>
    %509 = vector.extract_strided_slice %499 {offsets = [0, 32], sizes = [8, 32], strides = [1, 1]} : vector<8x96xf32> to vector<8x32xf32>
    %510 = arith.addf %508, %509 : vector<8x32xf32>
    %511 = arith.negf %510 : vector<8x32xf32>
    %512 = math.exp %511 : vector<8x32xf32>
    %cst_122 = arith.constant 1.000000e+00 : f32
    %513 = vector.broadcast %cst_122 : f32 to vector<8x32xf32>
    %514 = arith.addf %513, %512 : vector<8x32xf32>
    %515 = arith.divf %513, %514 : vector<8x32xf32>
    %516 = vector.extract_strided_slice %498 {offsets = [0, 64], sizes = [8, 32], strides = [1, 1]} : vector<8x96xf32> to vector<8x32xf32>
    %517 = vector.extract_strided_slice %499 {offsets = [0, 64], sizes = [8, 32], strides = [1, 1]} : vector<8x96xf32> to vector<8x32xf32>
    %518 = vector.broadcast %6 : vector<1x32xf32> to vector<8x32xf32>
    %519 = arith.addf %517, %518 : vector<8x32xf32>
    %520 = arith.mulf %507, %519 : vector<8x32xf32>
    %521 = arith.addf %516, %520 : vector<8x32xf32>
    %522 = math.tanh %521 : vector<8x32xf32>
    %cst_123 = arith.constant 1.000000e+00 : f32
    %523 = vector.broadcast %cst_123 : f32 to vector<8x32xf32>
    %524 = arith.subf %523, %515 : vector<8x32xf32>
    %525 = arith.mulf %524, %522 : vector<8x32xf32>
    %526 = arith.mulf %515, %459 : vector<8x32xf32>
    %527 = arith.addf %525, %526 : vector<8x32xf32>
    %cst_124 = arith.constant dense<0.000000e+00> : vector<8x96xf32>
    %528 = tpu.matmul %527, %4, %cst_124 {dimension_numbers = #tpu.dot_dimension_numbers<[1], [0], [0], [1], [0, 0, 1, 1], [], []>} : vector<8x32xf32>, vector<32x96xf32>, vector<8x96xf32> -> vector<8x96xf32>
    %529 = vector.broadcast %7 : vector<1x96xf32> to vector<8x96xf32>
    %530 = arith.addf %528, %529 : vector<8x96xf32>
    %cst_125 = arith.constant dense<0.000000e+00> : vector<8x96xf32>
    %531 = tpu.matmul %491, %5, %cst_125 {dimension_numbers = #tpu.dot_dimension_numbers<[1], [0], [0], [1], [0, 0, 1, 1], [], []>} : vector<8x32xf32>, vector<32x96xf32>, vector<8x96xf32> -> vector<8x96xf32>
    %532 = vector.extract_strided_slice %530 {offsets = [0, 0], sizes = [8, 32], strides = [1, 1]} : vector<8x96xf32> to vector<8x32xf32>
    %533 = vector.extract_strided_slice %531 {offsets = [0, 0], sizes = [8, 32], strides = [1, 1]} : vector<8x96xf32> to vector<8x32xf32>
    %534 = arith.addf %532, %533 : vector<8x32xf32>
    %535 = arith.negf %534 : vector<8x32xf32>
    %536 = math.exp %535 : vector<8x32xf32>
    %cst_126 = arith.constant 1.000000e+00 : f32
    %537 = vector.broadcast %cst_126 : f32 to vector<8x32xf32>
    %538 = arith.addf %537, %536 : vector<8x32xf32>
    %539 = arith.divf %537, %538 : vector<8x32xf32>
    %540 = vector.extract_strided_slice %530 {offsets = [0, 32], sizes = [8, 32], strides = [1, 1]} : vector<8x96xf32> to vector<8x32xf32>
    %541 = vector.extract_strided_slice %531 {offsets = [0, 32], sizes = [8, 32], strides = [1, 1]} : vector<8x96xf32> to vector<8x32xf32>
    %542 = arith.addf %540, %541 : vector<8x32xf32>
    %543 = arith.negf %542 : vector<8x32xf32>
    %544 = math.exp %543 : vector<8x32xf32>
    %cst_127 = arith.constant 1.000000e+00 : f32
    %545 = vector.broadcast %cst_127 : f32 to vector<8x32xf32>
    %546 = arith.addf %545, %544 : vector<8x32xf32>
    %547 = arith.divf %545, %546 : vector<8x32xf32>
    %548 = vector.extract_strided_slice %530 {offsets = [0, 64], sizes = [8, 32], strides = [1, 1]} : vector<8x96xf32> to vector<8x32xf32>
    %549 = vector.extract_strided_slice %531 {offsets = [0, 64], sizes = [8, 32], strides = [1, 1]} : vector<8x96xf32> to vector<8x32xf32>
    %550 = vector.broadcast %8 : vector<1x32xf32> to vector<8x32xf32>
    %551 = arith.addf %549, %550 : vector<8x32xf32>
    %552 = arith.mulf %539, %551 : vector<8x32xf32>
    %553 = arith.addf %548, %552 : vector<8x32xf32>
    %554 = math.tanh %553 : vector<8x32xf32>
    %cst_128 = arith.constant 1.000000e+00 : f32
    %555 = vector.broadcast %cst_128 : f32 to vector<8x32xf32>
    %556 = arith.subf %555, %547 : vector<8x32xf32>
    %557 = arith.mulf %556, %554 : vector<8x32xf32>
    %558 = arith.mulf %547, %491 : vector<8x32xf32>
    %559 = arith.addf %557, %558 : vector<8x32xf32>
    %560 = arith.index_cast %c7_i32 : i32 to index
    %c0_129 = arith.constant 0 : index
    %c0_130 = arith.constant 0 : index
    %561 = vector.load %arg17[%560, %c0_129, %c0_130] : memref<8x8x32xf32, #tpu.memory_space<vmem>>, vector<1x8x32xf32>
    %562 = vector.shape_cast %561 : vector<1x8x32xf32> to vector<8x32xf32>
    %563 = vector.shape_cast %559 : vector<8x32xf32> to vector<1x8x32xf32>
    tpu.vector_store %arg17[%560, %c0_129, %c0_130], %563 {strides = array<i32>} : memref<8x8x32xf32, #tpu.memory_space<vmem>>, vector<1x8x32xf32>,
    %c8_i32 = arith.constant 8 : i32
    %c0_131 = arith.constant 0 : index
    %c0_132 = arith.constant 0 : index
    %564 = vector.load %arg14[%c0_131, %c0_132] : memref<8x32xf32, #tpu.memory_space<vmem>>, vector<8x32xf32>
    tpu.vector_store %arg14[%c0_131, %c0_132], %527 {strides = array<i32>} : memref<8x32xf32, #tpu.memory_space<vmem>>, vector<8x32xf32>,
    %c0_133 = arith.constant 0 : index
    %c0_134 = arith.constant 0 : index
    %565 = vector.load %arg15[%c0_133, %c0_134] : memref<8x32xf32, #tpu.memory_space<vmem>>, vector<8x32xf32>
    tpu.vector_store %arg15[%c0_133, %c0_134], %559 {strides = array<i32>} : memref<8x32xf32, #tpu.memory_space<vmem>>, vector<8x32xf32>,
    %c0_135 = arith.constant 0 : index
    %c0_136 = arith.constant 0 : index
    %c0_137 = arith.constant 0 : index
    %566 = vector.load %arg17[%c0_135, %c0_136, %c0_137] : memref<8x8x32xf32, #tpu.memory_space<vmem>>, vector<8x8x32xf32>
    %567 = vector.shape_cast %566 : vector<8x8x32xf32> to vector<64x32xf32>
    %c0_138 = arith.constant 0 : index
    %c0_139 = arith.constant 0 : index
    %568 = vector.load %arg11[%c0_138, %c0_139] : memref<32x4xf32, #tpu.memory_space<vmem>>, vector<32x4xf32>
    %cst_140 = arith.constant dense<0.000000e+00> : vector<64x4xf32>
    %569 = tpu.matmul %567, %568, %cst_140 {dimension_numbers = #tpu.dot_dimension_numbers<[1], [0], [0], [1], [0, 0, 1, 1], [], []>} : vector<64x32xf32>, vector<32x4xf32>, vector<64x4xf32> -> vector<64x4xf32>
    %c0_141 = arith.constant 0 : index
    %c0_142 = arith.constant 0 : index
    %570 = vector.load %arg12[%c0_141, %c0_142] : memref<1x4xf32, #tpu.memory_space<vmem>>, vector<1x4xf32>
    %571 = vector.broadcast %570 : vector<1x4xf32> to vector<64x4xf32>
    %572 = arith.addf %569, %571 : vector<64x4xf32>
    %573 = math.tanh %572 : vector<64x4xf32>
    %574 = vector.shape_cast %573 : vector<64x4xf32> to vector<8x8x4xf32>
    %c0_143 = arith.constant 0 : index
    %c0_144 = arith.constant 0 : index
    %c0_145 = arith.constant 0 : index
    %575 = vector.load %arg13[%c0_143, %c0_144, %c0_145] : memref<8x8x4xf32, #tpu.memory_space<vmem>>, vector<8x8x4xf32>
    tpu.vector_store %arg13[%c0_143, %c0_144, %c0_145], %574 {strides = array<i32>} : memref<8x8x4xf32, #tpu.memory_space<vmem>>, vector<8x8x4xf32>,
    return
  }
  func.func @transform_0(%arg0: i32, %arg1: i32) -> (i32, i32, i32) {
    %c0_i32 = arith.constant 0 : i32
    %c0_i32_0 = arith.constant 0 : i32
    return %arg1, %arg0, %c0_i32 : i32, i32, i32
  }
  func.func @transform_1(%arg0: i32, %arg1: i32) -> (i32, i32) {
    %c0_i32 = arith.constant 0 : i32
    %c0_i32_0 = arith.constant 0 : i32
    %c0_i32_1 = arith.constant 0 : i32
    return %c0_i32, %c0_i32_0 : i32, i32
  }
  func.func @transform_2(%arg0: i32, %arg1: i32) -> (i32, i32) {
    %c0_i32 = arith.constant 0 : i32
    %c0_i32_0 = arith.constant 0 : i32
    %c0_i32_1 = arith.constant 0 : i32
    return %c0_i32, %c0_i32_0 : i32, i32
  }
  func.func @transform_3(%arg0: i32, %arg1: i32) -> (i32, i32) {
    %c0_i32 = arith.constant 0 : i32
    %c0_i32_0 = arith.constant 0 : i32
    %c0_i32_1 = arith.constant 0 : i32
    return %c0_i32, %c0_i32_0 : i32, i32
  }
  func.func @transform_4(%arg0: i32, %arg1: i32) -> (i32, i32) {
    %c0_i32 = arith.constant 0 : i32
    %c0_i32_0 = arith.constant 0 : i32
    %c0_i32_1 = arith.constant 0 : i32
    return %c0_i32, %c0_i32_0 : i32, i32
  }
  func.func @transform_5(%arg0: i32, %arg1: i32) -> (i32, i32) {
    %c0_i32 = arith.constant 0 : i32
    %c0_i32_0 = arith.constant 0 : i32
    %c0_i32_1 = arith.constant 0 : i32
    return %c0_i32, %c0_i32_0 : i32, i32
  }
  func.func @transform_6(%arg0: i32, %arg1: i32) -> (i32, i32) {
    %c0_i32 = arith.constant 0 : i32
    %c0_i32_0 = arith.constant 0 : i32
    %c0_i32_1 = arith.constant 0 : i32
    return %c0_i32, %c0_i32_0 : i32, i32
  }
  func.func @transform_7(%arg0: i32, %arg1: i32) -> (i32, i32) {
    %c0_i32 = arith.constant 0 : i32
    %c0_i32_0 = arith.constant 0 : i32
    %c0_i32_1 = arith.constant 0 : i32
    return %c0_i32, %c0_i32_0 : i32, i32
  }
  func.func @transform_8(%arg0: i32, %arg1: i32) -> (i32, i32) {
    %c0_i32 = arith.constant 0 : i32
    %c0_i32_0 = arith.constant 0 : i32
    %c0_i32_1 = arith.constant 0 : i32
    return %c0_i32, %c0_i32_0 : i32, i32
  }
  func.func @transform_9(%arg0: i32, %arg1: i32) -> (i32, i32) {
    %c0_i32 = arith.constant 0 : i32
    %c0_i32_0 = arith.constant 0 : i32
    %c0_i32_1 = arith.constant 0 : i32
    return %c0_i32, %c0_i32_0 : i32, i32
  }
  func.func @transform_10(%arg0: i32, %arg1: i32) -> (i32, i32) {
    %c0_i32 = arith.constant 0 : i32
    %c0_i32_0 = arith.constant 0 : i32
    %c0_i32_1 = arith.constant 0 : i32
    return %c0_i32, %c0_i32_0 : i32, i32
  }
  func.func @transform_11(%arg0: i32, %arg1: i32) -> (i32, i32, i32) {
    %c0_i32 = arith.constant 0 : i32
    %c0_i32_0 = arith.constant 0 : i32
    return %arg1, %arg0, %c0_i32 : i32, i32, i32
  }
}

</mosaic_0001>

<llo_original>
// kernel: subband_sequence_wrapper_forward.1
$region0: #{subband_sequence_wrapper_forward.1}
  #allocation0 [shape = 'u32[]', space=smem, size = 0x4, offset = 0x4, fixed_abs, tag = 'smem constant byte address 0x4 - core index']
  #allocation1 [shape = 'u32[144,128]{1,0:T(1,128)}', space=vmem, size = 0x12000, scoped, tag = 'internal scratch']
  #allocation2 [shape = 'f32[8,32]{1,0:T(8,128)}', space=vmem, size = 0x1000, scoped, tag = 'scratch operand']
  #allocation3 [shape = 'f32[8,32]{1,0:T(8,128)}', space=vmem, size = 0x1000, scoped, tag = 'scratch operand']
  #allocation4 [shape = 'f32[8,8,96]{2,1,0:T(8,128)}', space=vmem, size = 0x8000, scoped, tag = 'scratch operand']
  #allocation5 [shape = 'f32[8,8,32]{2,1,0:T(8,128)}', space=vmem, size = 0x8000, scoped, tag = 'scratch operand']
  %s0 = inlined_call_operand.vmem [shape: f32[8,8,16], index: 0, kind: input, shape index: {}]
  %s1 = inlined_call_operand.vmem [shape: f32[16,96], index: 1, kind: input, shape index: {}]
  %s2 = inlined_call_operand.vmem [shape: f32[32,96], index: 2, kind: input, shape index: {}]
  %s3 = inlined_call_operand.vmem [shape: f32[1,96], index: 3, kind: input, shape index: {}]
  %s4 = inlined_call_operand.vmem [shape: f32[1,32], index: 4, kind: input, shape index: {}]
  %s5 = inlined_call_operand.vmem [shape: f32[32,96], index: 5, kind: input, shape index: {}]
  %s6 = inlined_call_operand.vmem [shape: f32[32,96], index: 6, kind: input, shape index: {}]
  %s7 = inlined_call_operand.vmem [shape: f32[1,96], index: 7, kind: input, shape index: {}]
  %s8 = inlined_call_operand.vmem [shape: f32[1,32], index: 8, kind: input, shape index: {}]
  %s9 = inlined_call_operand.vmem [shape: f32[32,4], index: 9, kind: input, shape index: {}]
  %s10 = inlined_call_operand.vmem [shape: f32[1,4], index: 10, kind: input, shape index: {}]
  %s11 = inlined_call_operand.vmem [shape: f32[8,8,4], index: 11, kind: output, shape index: {}]
  %s12 = sld [smem:[#allocation0]]
  $region58: #{subband_sequence_wrapper_forward.1} parent=0
    _
  %s14 = ssub.s32 1, %s12
  %s15 = scalar_select 0, %s14, %s12
  // Predicated region
  $region2: #{subband_sequence_wrapper_forward.1} parent=0 // pred_check
    _
  $region3: #{subband_sequence_wrapper_forward.1} parent=0 // pred_check_branch
    %17 = sbr.rel (0) target = $region5
  $region4: #{subband_sequence_wrapper_forward.1} parent=0 // pred_region
    _
  $region5: #{subband_sequence_wrapper_forward.1} parent=0 // pred_fallthru
    _
  // Predicated region
  $region6: #{subband_sequence_wrapper_forward.1} parent=0 // pred_check
    _
  $region7: #{subband_sequence_wrapper_forward.1} parent=0 // pred_check_branch
    %19 = sbr.rel (0) target = $region9
  $region8: #{subband_sequence_wrapper_forward.1} parent=0 // pred_region
    _
  $region9: #{subband_sequence_wrapper_forward.1} parent=0 // pred_fallthru
    _
  // Predicated region
  $region10: #{subband_sequence_wrapper_forward.1} parent=0 // pred_check
    _
  $region11: #{subband_sequence_wrapper_forward.1} parent=0 // pred_check_branch
    %21 = sbr.rel (0) target = $region13
  $region12: #{subband_sequence_wrapper_forward.1} parent=0 // pred_region
    _
  $region13: #{subband_sequence_wrapper_forward.1} parent=0 // pred_fallthru
    _
  // Predicated region
  $region14: #{subband_sequence_wrapper_forward.1} parent=0 // pred_check
    _
  $region15: #{subband_sequence_wrapper_forward.1} parent=0 // pred_check_branch
    %23 = sbr.rel (0) target = $region17
  $region16: #{subband_sequence_wrapper_forward.1} parent=0 // pred_region
    _
  $region17: #{subband_sequence_wrapper_forward.1} parent=0 // pred_fallthru
    _
  // Predicated region
  $region18: #{subband_sequence_wrapper_forward.1} parent=0 // pred_check
    _
  $region19: #{subband_sequence_wrapper_forward.1} parent=0 // pred_check_branch
    %25 = sbr.rel (0) target = $region21
  $region20: #{subband_sequence_wrapper_forward.1} parent=0 // pred_region
    _
  $region21: #{subband_sequence_wrapper_forward.1} parent=0 // pred_fallthru
    _
  // Predicated region
  $region22: #{subband_sequence_wrapper_forward.1} parent=0 // pred_check
    _
  $region23: #{subband_sequence_wrapper_forward.1} parent=0 // pred_check_branch
    %27 = sbr.rel (0) target = $region25
  $region24: #{subband_sequence_wrapper_forward.1} parent=0 // pred_region
    _
  $region25: #{subband_sequence_wrapper_forward.1} parent=0 // pred_fallthru
    _
  // Predicated region
  $region26: #{subband_sequence_wrapper_forward.1} parent=0 // pred_check
    _
  $region27: #{subband_sequence_wrapper_forward.1} parent=0 // pred_check_branch
    %29 = sbr.rel (0) target = $region29
  $region28: #{subband_sequence_wrapper_forward.1} parent=0 // pred_region
    _
  $region29: #{subband_sequence_wrapper_forward.1} parent=0 // pred_fallthru
    _
  // Predicated region
  $region30: #{subband_sequence_wrapper_forward.1} parent=0 // pred_check
    _
  $region31: #{subband_sequence_wrapper_forward.1} parent=0 // pred_check_branch
    %31 = sbr.rel (0) target = $region33
  $region32: #{subband_sequence_wrapper_forward.1} parent=0 // pred_region
    _
  $region33: #{subband_sequence_wrapper_forward.1} parent=0 // pred_fallthru
    _
  // Predicated region
  $region34: #{subband_sequence_wrapper_forward.1} parent=0 // pred_check
    _
  $region35: #{subband_sequence_wrapper_forward.1} parent=0 // pred_check_branch
    %33 = sbr.rel (0) target = $region37
  $region36: #{subband_sequence_wrapper_forward.1} parent=0 // pred_region
    _
  $region37: #{subband_sequence_wrapper_forward.1} parent=0 // pred_fallthru
    _
  // Predicated region
  $region38: #{subband_sequence_wrapper_forward.1} parent=0 // pred_check
    _
  $region39: #{subband_sequence_wrapper_forward.1} parent=0 // pred_check_branch
    %35 = sbr.rel (0) target = $region41
  $region40: #{subband_sequence_wrapper_forward.1} parent=0 // pred_region
    _
  $region41: #{subband_sequence_wrapper_forward.1} parent=0 // pred_fallthru
    _
  // Predicated region
  $region42: #{subband_sequence_wrapper_forward.1} parent=0 // pred_check
    _
  $region43: #{subband_sequence_wrapper_forward.1} parent=0 // pred_check_branch
    %37 = sbr.rel (0) target = $region45
  $region44: #{subband_sequence_wrapper_forward.1} parent=0 // pred_region
    _
  $region45: #{subband_sequence_wrapper_forward.1} parent=0 // pred_fallthru
    _
  %p38 = scmp.eq.s32.totalorder 0, 0
  // Predicated region
  $region46: #{subband_sequence_wrapper_forward.1} parent=0 // pred_check
    %p39 = pneg %p38
  $region47: #{subband_sequence_wrapper_forward.1} parent=0 // pred_check_branch
    %41 = sbr.rel (%p39) target = $region49
  $region48: #{subband_sequence_wrapper_forward.1} parent=0 // pred_region
    %vm42 = vcmask 261120
    %43 = vst.msk [vmem:[#allocation2] sm:$0xff] %vm42, 0.0
    %44 = vst.msk [vmem:[#allocation3] sm:$0xff] %vm42, 0.0
  $region49: #{subband_sequence_wrapper_forward.1} parent=0 // pred_fallthru
    _
  %v45 = vld [vmem:[%s2] sm:$0xff]
  %v46 = vld [vmem:[%s2 + $0x8] sm:$0xff]
  %v47 = vld [vmem:[%s2 + $0x10] sm:$0xff]
  %v48 = vld [vmem:[%s2 + $0x18] sm:$0xff]
  %v49 = vld [vmem:[%s5] sm:$0xff]
  %v50 = vld [vmem:[%s5 + $0x8] sm:$0xff]
  %v51 = vld [vmem:[%s5 + $0x10] sm:$0xff]
  %v52 = vld [vmem:[%s5 + $0x18] sm:$0xff]
  %v53 = vld [vmem:[%s6] sm:$0xff]
  %v54 = vld [vmem:[%s6 + $0x8] sm:$0xff]
  %v55 = vld [vmem:[%s6 + $0x10] sm:$0xff]
  %v56 = vld [vmem:[%s6 + $0x18] sm:$0xff]
  %v57 = vld [vmem:[%s4] sm:$0x1]
  %v58 = vld [vmem:[%s7] sm:$0x1]
  %v59 = vld [vmem:[%s8] sm:$0x1]
  %v60 = vld [vmem:[%s0] sm:$0xff]
  %v61 = vld [vmem:[%s0 + $0x8] sm:$0xff]
  %v62 = vld [vmem:[%s0 + $0x10] sm:$0xff]
  %v63 = vld [vmem:[%s0 + $0x18] sm:$0xff]
  %v64 = vld [vmem:[%s0 + $0x20] sm:$0xff]
  %v65 = vld [vmem:[%s0 + $0x28] sm:$0xff]
  %v66 = vld [vmem:[%s0 + $0x30] sm:$0xff]
  %v67 = vld [vmem:[%s0 + $0x38] sm:$0xff]
  %v68 = vld [vmem:[%s1] sm:$0xff]
  %v69 = vld [vmem:[%s1 + $0x8] sm:$0xff]
  %v70 = vld [vmem:[%s3] sm:$0x1]
  %v72 = vlaneseq
  %v73 = vshrl.u32 %v72, 7
  %v74 = vsub.s32 0, %v73
  %v75 = vrot.slane %v70, %v74
  %vm77 = vcmask 130048
  %v79 = vsel %vm77, %v60, 0
  %v82 = vsel %vm77, %v61, 0
  %v85 = vsel %vm77, %v62, 0
  %v88 = vsel %vm77, %v63, 0
  %v91 = vsel %vm77, %v64, 0
  %v94 = vsel %vm77, %v65, 0
  %v97 = vsel %vm77, %v66, 0
  %v100 = vsel %vm77, %v67, 0
  %102 = vmatprep.subr.mxu0 0.0
  %103 = vmatpush1.msra.mxu0 %v68
  %104 = vmatprep.subr.mxu0 0.0
  %105 = vmatpush1.msra.mxu0 %v69
  %106 = vmatprep.subr.mxu0 0.0
  %107 = vmatpush1.msra.mxu0 0.0
  %108 = vmatprep.subr.mxu0 0.0
  %109 = vmatpush1.msra.mxu0 0.0
  %110 = vmatprep.subr.mxu0 0.0
  %111 = vmatpush1.msra.mxu0 0.0
  %112 = vmatprep.subr.mxu0 0.0
  %113 = vmatpush1.msra.mxu0 0.0
  %114 = vmatprep.subr.mxu0 0.0
  %115 = vmatpush1.msra.mxu0 0.0
  %116 = vmatprep.subr.mxu0 0.0
  %117 = vmatpush1.msra.mxu0 0.0
  %118 = vmatprep.subr.mxu0 0.0
  %119 = vmatpush1.msra.mxu0 0.0
  %120 = vmatprep.subr.mxu0 0.0
  %121 = vmatpush1.msra.mxu0 0.0
  %122 = vmatprep.subr.mxu0 0.0
  %123 = vmatpush1.msra.mxu0 0.0
  %124 = vmatprep.subr.mxu0 0.0
  %125 = vmatpush1.msra.mxu0 0.0
  %126 = vmatprep.subr.mxu0 0.0
  %127 = vmatpush1.msra.mxu0 0.0
  %128 = vmatprep.subr.mxu0 0.0
  %129 = vmatpush1.msra.mxu0 0.0
  %130 = vmatprep.subr.mxu0 0.0
  %131 = vmatpush1.msra.mxu0 0.0
  %132 = vmatprep.subr.mxu0 0.0
  %133 = vmatpush1.msra.mxu0 0.0
  %134 = vmatprep.subr.mxu0 0.0
  %135 = vmatpush1.msra.mxu0 0.0
  %136 = vmatprep.subr.mxu0 0.0
  %137 = vmatpush1.msra.mxu0 0.0
  %138 = vmatprep.subr.mxu0 0.0
  %139 = vmatpush1.msra.mxu0 0.0
  %140 = vmatprep.subr.mxu0 0.0
  %141 = vmatpush1.msra.mxu0 0.0
  %142 = vmatprep.subr.mxu0 0.0
  %143 = vmatpush1.msra.mxu0 0.0
  %144 = vmatprep.subr.mxu0 0.0
  %145 = vmatpush1.msra.mxu0 0.0
  %146 = vmatprep.subr.mxu0 0.0
  %147 = vmatpush1.msra.mxu0 0.0
  %148 = vmatprep.subr.mxu0 0.0
  %149 = vmatpush1.msra.mxu0 0.0
  %150 = vmatprep.subr.mxu0 0.0
  %151 = vmatpush1.msra.mxu0 0.0
  %152 = vmatprep.subr.mxu0 0.0
  %153 = vmatpush1.msra.mxu0 0.0
  %154 = vmatprep.subr.mxu0 0.0
  %155 = vmatpush1.msra.mxu0 0.0
  %156 = vmatprep.subr.mxu0 0.0
  %157 = vmatpush1.msra.mxu0 0.0
  %158 = vmatprep.subr.mxu0 0.0
  %159 = vmatpush1.msra.mxu0 0.0
  %160 = vmatprep.subr.mxu0 0.0
  %161 = vmatpush1.msra.mxu0 0.0
  %162 = vmatprep.subr.mxu0 0.0
  %163 = vmatpush1.msra.mxu0 0.0
  %164 = vmatprep.subr.mxu0 0.0
  %165 = vmatpush1.msra.mxu0 0.0
  %166 = vmatprep.mubr.f32.mxu0 0.0
  %167 = vmatmul.mubr.f32.gmra.mrb[0].mxu0 %v79
  %v168 = vpop.f32.mrb[0].mxu0
  %v169 = vadd.f32 %v75, %v168
  %v170 = vpop.f32.mrb[0].mxu0
  %171 = vmatprep.mubr.f32.mxu0 0.0
  %172 = vmatmul.mubr.f32.gmra.mrb[0].mxu0 %v82
  %v173 = vpop.f32.mrb[0].mxu0
  %v174 = vadd.f32 %v75, %v173
  %v175 = vpop.f32.mrb[0].mxu0
  %176 = vmatprep.mubr.f32.mxu0 0.0
  %177 = vmatmul.mubr.f32.gmra.mrb[0].mxu0 %v85
  %v178 = vpop.f32.mrb[0].mxu0
  %v179 = vadd.f32 %v75, %v178
  %v180 = vpop.f32.mrb[0].mxu0
  %181 = vmatprep.mubr.f32.mxu0 0.0
  %182 = vmatmul.mubr.f32.gmra.mrb[0].mxu0 %v88
  %v183 = vpop.f32.mrb[0].mxu0
  %v184 = vadd.f32 %v75, %v183
  %v185 = vpop.f32.mrb[0].mxu0
  %186 = vmatprep.mubr.f32.mxu0 0.0
  %187 = vmatmul.mubr.f32.gmra.mrb[0].mxu0 %v91
  %v188 = vpop.f32.mrb[0].mxu0
  %v189 = vadd.f32 %v75, %v188
  %v190 = vpop.f32.mrb[0].mxu0
  %191 = vmatprep.mubr.f32.mxu0 0.0
  %192 = vmatmul.mubr.f32.gmra.mrb[0].mxu0 %v94
  %v193 = vpop.f32.mrb[0].mxu0
  %v194 = vadd.f32 %v75, %v193
  %v195 = vpop.f32.mrb[0].mxu0
  %196 = vmatprep.mubr.f32.mxu0 0.0
  %197 = vmatmul.mubr.f32.gmra.mrb[0].mxu0 %v97
  %v198 = vpop.f32.mrb[0].mxu0
  %v199 = vadd.f32 %v75, %v198
  %v200 = vpop.f32.mrb[0].mxu0
  %201 = vmatprep.mubr.f32.mxu0 0.0
  %202 = vmatmul.mubr.f32.gmra.mrb[0].mxu0 %v100
  %v203 = vpop.f32.mrb[0].mxu0
  %v204 = vadd.f32 %v75, %v203
  %v205 = vpop.f32.mrb[0].mxu0
  %206 = vdwg.mxu0
  %vm207 = vcmask 785408
  %208 = vst.msk [vmem:[#allocation4] sm:$0xff] %vm207, %v169
  %209 = vst.msk [vmem:[#allocation4 + $0x8] sm:$0xff] %vm207, %v174
  %210 = vst.msk [vmem:[#allocation4 + $0x10] sm:$0xff] %vm207, %v179
  %211 = vst.msk [vmem:[#allocation4 + $0x18] sm:$0xff] %vm207, %v184
  %212 = vst.msk [vmem:[#allocation4 + $0x20] sm:$0xff] %vm207, %v189
  %213 = vst.msk [vmem:[#allocation4 + $0x28] sm:$0xff] %vm207, %v194
  %214 = vst.msk [vmem:[#allocation4 + $0x30] sm:$0xff] %vm207, %v199
  %215 = vst.msk [vmem:[#allocation4 + $0x38] sm:$0xff] %vm207, %v204
  %v216 = vld [vmem:[#allocation2] sm:$0xff]
  %v217 = vld [vmem:[#allocation3] sm:$0xff]
  %v218 = vld [vmem:[#allocation4] sm:$0xff]
  %vm219 = vcmask 261120
  %v221 = vsel %vm219, %v216, 0
  %223 = vmatprep.subr.mxu0 0.0
  %224 = vmatpush1.msra.mxu0 %v45
  %225 = vmatprep.subr.mxu0 0.0
  %226 = vmatpush1.msra.mxu0 %v46
  %227 = vmatprep.subr.mxu0 0.0
  %228 = vmatpush1.msra.mxu0 %v47
  %229 = vmatprep.subr.mxu0 0.0
  %230 = vmatpush1.msra.mxu0 %v48
  %231 = vmatprep.subr.mxu0 0.0
  %232 = vmatpush1.msra.mxu0 0.0
  %233 = vmatprep.subr.mxu0 0.0
  %234 = vmatpush1.msra.mxu0 0.0
  %235 = vmatprep.subr.mxu0 0.0
  %236 = vmatpush1.msra.mxu0 0.0
  %237 = vmatprep.subr.mxu0 0.0
  %238 = vmatpush1.msra.mxu0 0.0
  %239 = vmatprep.subr.mxu0 0.0
  %240 = vmatpush1.msra.mxu0 0.0
  %241 = vmatprep.subr.mxu0 0.0
  %242 = vmatpush1.msra.mxu0 0.0
  %243 = vmatprep.subr.mxu0 0.0
  %244 = vmatpush1.msra.mxu0 0.0
  %245 = vmatprep.subr.mxu0 0.0
  %246 = vmatpush1.msra.mxu0 0.0
  %247 = vmatprep.subr.mxu0 0.0
  %248 = vmatpush1.msra.mxu0 0.0
  %249 = vmatprep.subr.mxu0 0.0
  %250 = vmatpush1.msra.mxu0 0.0
  %251 = vmatprep.subr.mxu0 0.0
  %252 = vmatpush1.msra.mxu0 0.0
  %253 = vmatprep.subr.mxu0 0.0
  %254 = vmatpush1.msra.mxu0 0.0
  %255 = vmatprep.subr.mxu0 0.0
  %256 = vmatpush1.msra.mxu0 0.0
  %257 = vmatprep.subr.mxu0 0.0
  %258 = vmatpush1.msra.mxu0 0.0
  %259 = vmatprep.subr.mxu0 0.0
  %260 = vmatpush1.msra.mxu0 0.0
  %261 = vmatprep.subr.mxu0 0.0
  %262 = vmatpush1.msra.mxu0 0.0
  %263 = vmatprep.subr.mxu0 0.0
  %264 = vmatpush1.msra.mxu0 0.0
  %265 = vmatprep.subr.mxu0 0.0
  %266 = vmatpush1.msra.mxu0 0.0
  %267 = vmatprep.subr.mxu0 0.0
  %268 = vmatpush1.msra.mxu0 0.0
  %269 = vmatprep.subr.mxu0 0.0
  %270 = vmatpush1.msra.mxu0 0.0
  %271 = vmatprep.subr.mxu0 0.0
  %272 = vmatpush1.msra.mxu0 0.0
  %273 = vmatprep.subr.mxu0 0.0
  %274 = vmatpush1.msra.mxu0 0.0
  %275 = vmatprep.subr.mxu0 0.0
  %276 = vmatpush1.msra.mxu0 0.0
  %277 = vmatprep.subr.mxu0 0.0
  %278 = vmatpush1.msra.mxu0 0.0
  %279 = vmatprep.subr.mxu0 0.0
  %280 = vmatpush1.msra.mxu0 0.0
  %281 = vmatprep.subr.mxu0 0.0
  %282 = vmatpush1.msra.mxu0 0.0
  %283 = vmatprep.subr.mxu0 0.0
  %284 = vmatpush1.msra.mxu0 0.0
  %285 = vmatprep.subr.mxu0 0.0
  %286 = vmatpush1.msra.mxu0 0.0
  %287 = vmatprep.mubr.f32.mxu0 0.0
  %288 = vmatmul.mubr.f32.gmra.mrb[0].mxu0 %v221
  %v289 = vpop.f32.mrb[0].mxu0
  %v290 = vadd.f32 0.0, %v289
  %v291 = vpop.f32.mrb[0].mxu0
  %292 = vdwg.mxu0
  %v293 = vadd.f32 %v218, %v290
  %v294 = vxor.u32 %v293, 2147483648
  %v295 = vmul.f32 %v294, 1.442695
  %v296 = vpow.pop %v295
  %v297 = vadd.f32 %v296, 1.0
  %v298 = vrcp.pop %v297
  %v299 = vmul.f32 1.0, %v298
  %v301 = vlaneseq
  %v302 = vshrl.u32 %v301, 7
  %v303 = vsub.s32 0, %v302
  %v304 = vrot.slane %v57, %v303
  %305 = vrot.lane.b32.xlu0 %v304, 64
  %v306 = vpop.permute.xlu0 %305
  %v308 = vadd.f32 %v290, %v306
  %310 = vrot.lane.b32.xlu0 %v308, 64
  %v311 = vpop.permute.xlu0 %310
  %v313 = vmul.f32 %v299, %v311
  %315 = vrot.lane.b32.xlu0 %v313, 64
  %v316 = vpop.permute.xlu0 %315
  %v318 = vadd.f32 %v218, %v316
  %v319 = vtanh.pop %v318
  %v320 = vsub.f32 1.0, %v299
  %322 = vrot.lane.b32.xlu0 %v319, 96
  %v323 = vpop.permute.xlu0 %322
  %v325 = vmul.f32 %v320, %v323
  %326 = vrot.lane.b32.xlu0 %v216, 32
  %v327 = vpop.permute.xlu0 %326
  %v329 = vmul.f32 %v299, %v327
  %v330 = vadd.f32 %v325, %v329
  %v332 = vlaneseq
  %v333 = vshrl.u32 %v332, 7
  %v334 = vsub.s32 0, %v333
  %v335 = vrot.slane %v58, %v334
  %338 = vrot.lane.b32.xlu0 %v330, 96
  %v339 = vpop.permute.xlu0 %338
  %v340 = vsel %vm219, %v339, 0
  %342 = vmatprep.subr.mxu0 0.0
  %343 = vmatpush1.msra.mxu0 %v49
  %344 = vmatprep.subr.mxu0 0.0
  %345 = vmatpush1.msra.mxu0 %v50
  %346 = vmatprep.subr.mxu0 0.0
  %347 = vmatpush1.msra.mxu0 %v51
  %348 = vmatprep.subr.mxu0 0.0
  %349 = vmatpush1.msra.mxu0 %v52
  %350 = vmatprep.subr.mxu0 0.0
  %351 = vmatpush1.msra.mxu0 0.0
  %352 = vmatprep.subr.mxu0 0.0
  %353 = vmatpush1.msra.mxu0 0.0
  %354 = vmatprep.subr.mxu0 0.0
  %355 = vmatpush1.msra.mxu0 0.0
  %356 = vmatprep.subr.mxu0 0.0
  %357 = vmatpush1.msra.mxu0 0.0
  %358 = vmatprep.subr.mxu0 0.0
  %359 = vmatpush1.msra.mxu0 0.0
  %360 = vmatprep.subr.mxu0 0.0
  %361 = vmatpush1.msra.mxu0 0.0
  %362 = vmatprep.subr.mxu0 0.0
  %363 = vmatpush1.msra.mxu0 0.0
  %364 = vmatprep.subr.mxu0 0.0
  %365 = vmatpush1.msra.mxu0 0.0
  %366 = vmatprep.subr.mxu0 0.0
  %367 = vmatpush1.msra.mxu0 0.0
  %368 = vmatprep.subr.mxu0 0.0
  %369 = vmatpush1.msra.mxu0 0.0
  %370 = vmatprep.subr.mxu0 0.0
  %371 = vmatpush1.msra.mxu0 0.0
  %372 = vmatprep.subr.mxu0 0.0
  %373 = vmatpush1.msra.mxu0 0.0
  %374 = vmatprep.subr.mxu0 0.0
  %375 = vmatpush1.msra.mxu0 0.0
  %376 = vmatprep.subr.mxu0 0.0
  %377 = vmatpush1.msra.mxu0 0.0
  %378 = vmatprep.subr.mxu0 0.0
  %379 = vmatpush1.msra.mxu0 0.0
  %380 = vmatprep.subr.mxu0 0.0
  %381 = vmatpush1.msra.mxu0 0.0
  %382 = vmatprep.subr.mxu0 0.0
  %383 = vmatpush1.msra.mxu0 0.0
  %384 = vmatprep.subr.mxu0 0.0
  %385 = vmatpush1.msra.mxu0 0.0
  %386 = vmatprep.subr.mxu0 0.0
  %387 = vmatpush1.msra.mxu0 0.0
  %388 = vmatprep.subr.mxu0 0.0
  %389 = vmatpush1.msra.mxu0 0.0
  %390 = vmatprep.subr.mxu0 0.0
  %391 = vmatpush1.msra.mxu0 0.0
  %392 = vmatprep.subr.mxu0 0.0
  %393 = vmatpush1.msra.mxu0 0.0
  %394 = vmatprep.subr.mxu0 0.0
  %395 = vmatpush1.msra.mxu0 0.0
  %396 = vmatprep.subr.mxu0 0.0
  %397 = vmatpush1.msra.mxu0 0.0
  %398 = vmatprep.subr.mxu0 0.0
  %399 = vmatpush1.msra.mxu0 0.0
  %400 = vmatprep.subr.mxu0 0.0
  %401 = vmatpush1.msra.mxu0 0.0
  %402 = vmatprep.subr.mxu0 0.0
  %403 = vmatpush1.msra.mxu0 0.0
  %404 = vmatprep.subr.mxu0 0.0
  %405 = vmatpush1.msra.mxu0 0.0
  %406 = vmatprep.mubr.f32.mxu0 0.0
  %407 = vmatmul.mubr.f32.gmra.mrb[0].mxu0 %v340
  %v408 = vpop.f32.mrb[0].mxu0
  %v409 = vadd.f32 %v335, %v408
  %v410 = vpop.f32.mrb[0].mxu0
  %411 = vdwg.mxu0
  %v413 = vsel %vm219, %v217, 0
  %415 = vmatprep.subr.mxu0 0.0
  %416 = vmatpush1.msra.mxu0 %v53
  %417 = vmatprep.subr.mxu0 0.0
  %418 = vmatpush1.msra.mxu0 %v54
  %419 = vmatprep.subr.mxu0 0.0
  %420 = vmatpush1.msra.mxu0 %v55
  %421 = vmatprep.subr.mxu0 0.0
  %422 = vmatpush1.msra.mxu0 %v56
  %423 = vmatprep.subr.mxu0 0.0
  %424 = vmatpush1.msra.mxu0 0.0
  %425 = vmatprep.subr.mxu0 0.0
  %426 = vmatpush1.msra.mxu0 0.0
  %427 = vmatprep.subr.mxu0 0.0
  %428 = vmatpush1.msra.mxu0 0.0
  %429 = vmatprep.subr.mxu0 0.0
  %430 = vmatpush1.msra.mxu0 0.0
  %431 = vmatprep.subr.mxu0 0.0
  %432 = vmatpush1.msra.mxu0 0.0
  %433 = vmatprep.subr.mxu0 0.0
  %434 = vmatpush1.msra.mxu0 0.0
  %435 = vmatprep.subr.mxu0 0.0
  %436 = vmatpush1.msra.mxu0 0.0
  %437 = vmatprep.subr.mxu0 0.0
  %438 = vmatpush1.msra.mxu0 0.0
  %439 = vmatprep.subr.mxu0 0.0
  %440 = vmatpush1.msra.mxu0 0.0
  %441 = vmatprep.subr.mxu0 0.0
  %442 = vmatpush1.msra.mxu0 0.0
  %443 = vmatprep.subr.mxu0 0.0
  %444 = vmatpush1.msra.mxu0 0.0
  %445 = vmatprep.subr.mxu0 0.0
  %446 = vmatpush1.msra.mxu0 0.0
  %447 = vmatprep.subr.mxu0 0.0
  %448 = vmatpush1.msra.mxu0 0.0
  %449 = vmatprep.subr.mxu0 0.0
  %450 = vmatpush1.msra.mxu0 0.0
  %451 = vmatprep.subr.mxu0 0.0
  %452 = vmatpush1.msra.mxu0 0.0
  %453 = vmatprep.subr.mxu0 0.0
  %454 = vmatpush1.msra.mxu0 0.0
  %455 = vmatprep.subr.mxu0 0.0
  %456 = vmatpush1.msra.mxu0 0.0
  %457 = vmatprep.subr.mxu0 0.0
  %458 = vmatpush1.msra.mxu0 0.0
  %459 = vmatprep.subr.mxu0 0.0
  %460 = vmatpush1.msra.mxu0 0.0
  %461 = vmatprep.subr.mxu0 0.0
  %462 = vmatpush1.msra.mxu0 0.0
  %463 = vmatprep.subr.mxu0 0.0
  %464 = vmatpush1.msra.mxu0 0.0
  %465 = vmatprep.subr.mxu0 0.0
  %466 = vmatpush1.msra.mxu0 0.0
  %467 = vmatprep.subr.mxu0 0.0
  %468 = vmatpush1.msra.mxu0 0.0
  %469 = vmatprep.subr.mxu0 0.0
  %470 = vmatpush1.msra.mxu0 0.0
  %471 = vmatprep.subr.mxu0 0.0
  %472 = vmatpush1.msra.mxu0 0.0
  %473 = vmatprep.subr.mxu0 0.0
  %474 = vmatpush1.msra.mxu0 0.0
  %475 = vmatprep.subr.mxu0 0.0
  %476 = vmatpush1.msra.mxu0 0.0
  %477 = vmatprep.subr.mxu0 0.0
  %478 = vmatpush1.msra.mxu0 0.0
  %479 = vmatprep.mubr.f32.mxu0 0.0
  %480 = vmatmul.mubr.f32.gmra.mrb[0].mxu0 %v413
  %v481 = vpop.f32.mrb[0].mxu0
  %v482 = vadd.f32 0.0, %v481
  %v483 = vpop.f32.mrb[0].mxu0
  %484 = vdwg.mxu0
  %v485 = vadd.f32 %v409, %v482
  %v486 = vxor.u32 %v485, 2147483648
  %v487 = vmul.f32 %v486, 1.442695
  %v488 = vpow.pop %v487
  %v489 = vadd.f32 %v488, 1.0
  %v490 = vrcp.pop %v489
  %v491 = vmul.f32 1.0, %v490
  %v493 = vlaneseq
  %v494 = vshrl.u32 %v493, 7
  %v495 = vsub.s32 0, %v494
  %v496 = vrot.slane %v59, %v495
  %497 = vrot.lane.b32.xlu0 %v496, 64
  %v498 = vpop.permute.xlu0 %497
  %v500 = vadd.f32 %v482, %v498
  %502 = vrot.lane.b32.xlu0 %v500, 64
  %v503 = vpop.permute.xlu0 %502
  %v505 = vmul.f32 %v491, %v503
  %507 = vrot.lane.b32.xlu0 %v505, 64
  %v508 = vpop.permute.xlu0 %507
  %v510 = vadd.f32 %v409, %v508
  %v511 = vtanh.pop %v510
  %v512 = vsub.f32 1.0, %v491
  %514 = vrot.lane.b32.xlu0 %v511, 96
  %v515 = vpop.permute.xlu0 %514
  %v517 = vmul.f32 %v512, %v515
  %518 = vrot.lane.b32.xlu0 %v217, 32
  %v519 = vpop.permute.xlu0 %518
  %v521 = vmul.f32 %v491, %v519
  %v522 = vadd.f32 %v517, %v521
  %524 = vrot.lane.b32.xlu0 %v522, 96
  %v525 = vpop.permute.xlu0 %524
  %527 = vst.msk [vmem:[#allocation5] sm:$0xff] %vm219, %v525
  %s528 = scalar_lea.vmem [#allocation4], 8
  %v529 = vld [vmem:[%s528] sm:$0xff]
  %530 = vmatprep.subr.mxu0 0.0
  %531 = vmatpush1.msra.mxu0 %v45
  %532 = vmatprep.subr.mxu0 0.0
  %533 = vmatpush1.msra.mxu0 %v46
  %534 = vmatprep.subr.mxu0 0.0
  %535 = vmatpush1.msra.mxu0 %v47
  %536 = vmatprep.subr.mxu0 0.0
  %537 = vmatpush1.msra.mxu0 %v48
  %538 = vmatprep.subr.mxu0 0.0
  %539 = vmatpush1.msra.mxu0 0.0
  %540 = vmatprep.subr.mxu0 0.0
  %541 = vmatpush1.msra.mxu0 0.0
  %542 = vmatprep.subr.mxu0 0.0
  %543 = vmatpush1.msra.mxu0 0.0
  %544 = vmatprep.subr.mxu0 0.0
  %545 = vmatpush1.msra.mxu0 0.0
  %546 = vmatprep.subr.mxu0 0.0
  %547 = vmatpush1.msra.mxu0 0.0
  %548 = vmatprep.subr.mxu0 0.0
  %549 = vmatpush1.msra.mxu0 0.0
  %550 = vmatprep.subr.mxu0 0.0
  %551 = vmatpush1.msra.mxu0 0.0
  %552 = vmatprep.subr.mxu0 0.0
  %553 = vmatpush1.msra.mxu0 0.0
  %554 = vmatprep.subr.mxu0 0.0
  %555 = vmatpush1.msra.mxu0 0.0
  %556 = vmatprep.subr.mxu0 0.0
  %557 = vmatpush1.msra.mxu0 0.0
  %558 = vmatprep.subr.mxu0 0.0
  %559 = vmatpush1.msra.mxu0 0.0
  %560 = vmatprep.subr.mxu0 0.0
  %561 = vmatpush1.msra.mxu0 0.0
  %562 = vmatprep.subr.mxu0 0.0
  %563 = vmatpush1.msra.mxu0 0.0
  %564 = vmatprep.subr.mxu0 0.0
  %565 = vmatpush1.msra.mxu0 0.0
  %566 = vmatprep.subr.mxu0 0.0
  %567 = vmatpush1.msra.mxu0 0.0
  %568 = vmatprep.subr.mxu0 0.0
  %569 = vmatpush1.msra.mxu0 0.0
  %570 = vmatprep.subr.mxu0 0.0
  %571 = vmatpush1.msra.mxu0 0.0
  %572 = vmatprep.subr.mxu0 0.0
  %573 = vmatpush1.msra.mxu0 0.0
  %574 = vmatprep.subr.mxu0 0.0
  %575 = vmatpush1.msra.mxu0 0.0
  %576 = vmatprep.subr.mxu0 0.0
  %577 = vmatpush1.msra.mxu0 0.0
  %578 = vmatprep.subr.mxu0 0.0
  %579 = vmatpush1.msra.mxu0 0.0
  %580 = vmatprep.subr.mxu0 0.0
  %581 = vmatpush1.msra.mxu0 0.0
  %582 = vmatprep.subr.mxu0 0.0
  %583 = vmatpush1.msra.mxu0 0.0
  %584 = vmatprep.subr.mxu0 0.0
  %585 = vmatpush1.msra.mxu0 0.0
  %586 = vmatprep.subr.mxu0 0.0
  %587 = vmatpush1.msra.mxu0 0.0
  %588 = vmatprep.subr.mxu0 0.0
  %589 = vmatpush1.msra.mxu0 0.0
  %590 = vmatprep.subr.mxu0 0.0
  %591 = vmatpush1.msra.mxu0 0.0
  %592 = vmatprep.subr.mxu0 0.0
  %593 = vmatpush1.msra.mxu0 0.0
  %594 = vmatprep.mubr.f32.mxu0 0.0
  %595 = vmatmul.mubr.f32.gmra.mrb[0].mxu0 %v340
  %v596 = vpop.f32.mrb[0].mxu0
  %v597 = vadd.f32 0.0, %v596
  %v598 = vpop.f32.mrb[0].mxu0
  %599 = vdwg.mxu0
  %v600 = vadd.f32 %v529, %v597
  %v601 = vxor.u32 %v600, 2147483648
  %v602 = vmul.f32 %v601, 1.442695
  %v603 = vpow.pop %v602
  %v604 = vadd.f32 %v603, 1.0
  %v605 = vrcp.pop %v604
  %v606 = vmul.f32 1.0, %v605
  %v607 = vadd.f32 %v597, %v306
  %609 = vrot.lane.b32.xlu0 %v607, 64
  %v610 = vpop.permute.xlu0 %609
  %v612 = vmul.f32 %v606, %v610
  %614 = vrot.lane.b32.xlu0 %v612, 64
  %v615 = vpop.permute.xlu0 %614
  %v617 = vadd.f32 %v529, %v615
  %v618 = vtanh.pop %v617
  %v619 = vsub.f32 1.0, %v606
  %621 = vrot.lane.b32.xlu0 %v618, 96
  %v622 = vpop.permute.xlu0 %621
  %v624 = vmul.f32 %v619, %v622
  %v625 = vmul.f32 %v606, %v330
  %v626 = vadd.f32 %v624, %v625
  %628 = vrot.lane.b32.xlu0 %v626, 96
  %v629 = vpop.permute.xlu0 %628
  %v630 = vsel %vm219, %v629, 0
  %632 = vmatprep.subr.mxu0 0.0
  %633 = vmatpush1.msra.mxu0 %v49
  %634 = vmatprep.subr.mxu0 0.0
  %635 = vmatpush1.msra.mxu0 %v50
  %636 = vmatprep.subr.mxu0 0.0
  %637 = vmatpush1.msra.mxu0 %v51
  %638 = vmatprep.subr.mxu0 0.0
  %639 = vmatpush1.msra.mxu0 %v52
  %640 = vmatprep.subr.mxu0 0.0
  %641 = vmatpush1.msra.mxu0 0.0
  %642 = vmatprep.subr.mxu0 0.0
  %643 = vmatpush1.msra.mxu0 0.0
  %644 = vmatprep.subr.mxu0 0.0
  %645 = vmatpush1.msra.mxu0 0.0
  %646 = vmatprep.subr.mxu0 0.0
  %647 = vmatpush1.msra.mxu0 0.0
  %648 = vmatprep.subr.mxu0 0.0
  %649 = vmatpush1.msra.mxu0 0.0
  %650 = vmatprep.subr.mxu0 0.0
  %651 = vmatpush1.msra.mxu0 0.0
  %652 = vmatprep.subr.mxu0 0.0
  %653 = vmatpush1.msra.mxu0 0.0
  %654 = vmatprep.subr.mxu0 0.0
  %655 = vmatpush1.msra.mxu0 0.0
  %656 = vmatprep.subr.mxu0 0.0
  %657 = vmatpush1.msra.mxu0 0.0
  %658 = vmatprep.subr.mxu0 0.0
  %659 = vmatpush1.msra.mxu0 0.0
  %660 = vmatprep.subr.mxu0 0.0
  %661 = vmatpush1.msra.mxu0 0.0
  %662 = vmatprep.subr.mxu0 0.0
  %663 = vmatpush1.msra.mxu0 0.0
  %664 = vmatprep.subr.mxu0 0.0
  %665 = vmatpush1.msra.mxu0 0.0
  %666 = vmatprep.subr.mxu0 0.0
  %667 = vmatpush1.msra.mxu0 0.0
  %668 = vmatprep.subr.mxu0 0.0
  %669 = vmatpush1.msra.mxu0 0.0
  %670 = vmatprep.subr.mxu0 0.0
  %671 = vmatpush1.msra.mxu0 0.0
  %672 = vmatprep.subr.mxu0 0.0
  %673 = vmatpush1.msra.mxu0 0.0
  %674 = vmatprep.subr.mxu0 0.0
  %675 = vmatpush1.msra.mxu0 0.0
  %676 = vmatprep.subr.mxu0 0.0
  %677 = vmatpush1.msra.mxu0 0.0
  %678 = vmatprep.subr.mxu0 0.0
  %679 = vmatpush1.msra.mxu0 0.0
  %680 = vmatprep.subr.mxu0 0.0
  %681 = vmatpush1.msra.mxu0 0.0
  %682 = vmatprep.subr.mxu0 0.0
  %683 = vmatpush1.msra.mxu0 0.0
  %684 = vmatprep.subr.mxu0 0.0
  %685 = vmatpush1.msra.mxu0 0.0
  %686 = vmatprep.subr.mxu0 0.0
  %687 = vmatpush1.msra.mxu0 0.0
  %688 = vmatprep.subr.mxu0 0.0
  %689 = vmatpush1.msra.mxu0 0.0
  %690 = vmatprep.subr.mxu0 0.0
  %691 = vmatpush1.msra.mxu0 0.0
  %692 = vmatprep.subr.mxu0 0.0
  %693 = vmatpush1.msra.mxu0 0.0
  %694 = vmatprep.subr.mxu0 0.0
  %695 = vmatpush1.msra.mxu0 0.0
  %696 = vmatprep.mubr.f32.mxu0 0.0
  %697 = vmatmul.mubr.f32.gmra.mrb[0].mxu0 %v630
  %v698 = vpop.f32.mrb[0].mxu0
  %v699 = vadd.f32 %v335, %v698
  %v700 = vpop.f32.mrb[0].mxu0
  %701 = vdwg.mxu0
  %v702 = vsel %vm219, %v525, 0
  %704 = vmatprep.subr.mxu0 0.0
  %705 = vmatpush1.msra.mxu0 %v53
  %706 = vmatprep.subr.mxu0 0.0
  %707 = vmatpush1.msra.mxu0 %v54
  %708 = vmatprep.subr.mxu0 0.0
  %709 = vmatpush1.msra.mxu0 %v55
  %710 = vmatprep.subr.mxu0 0.0
  %711 = vmatpush1.msra.mxu0 %v56
  %712 = vmatprep.subr.mxu0 0.0
  %713 = vmatpush1.msra.mxu0 0.0
  %714 = vmatprep.subr.mxu0 0.0
  %715 = vmatpush1.msra.mxu0 0.0
  %716 = vmatprep.subr.mxu0 0.0
  %717 = vmatpush1.msra.mxu0 0.0
  %718 = vmatprep.subr.mxu0 0.0
  %719 = vmatpush1.msra.mxu0 0.0
  %720 = vmatprep.subr.mxu0 0.0
  %721 = vmatpush1.msra.mxu0 0.0
  %722 = vmatprep.subr.mxu0 0.0
  %723 = vmatpush1.msra.mxu0 0.0
  %724 = vmatprep.subr.mxu0 0.0
  %725 = vmatpush1.msra.mxu0 0.0
  %726 = vmatprep.subr.mxu0 0.0
  %727 = vmatpush1.msra.mxu0 0.0
  %728 = vmatprep.subr.mxu0 0.0
  %729 = vmatpush1.msra.mxu0 0.0
  %730 = vmatprep.subr.mxu0 0.0
  %731 = vmatpush1.msra.mxu0 0.0
  %732 = vmatprep.subr.mxu0 0.0
  %733 = vmatpush1.msra.mxu0 0.0
  %734 = vmatprep.subr.mxu0 0.0
  %735 = vmatpush1.msra.mxu0 0.0
  %736 = vmatprep.subr.mxu0 0.0
  %737 = vmatpush1.msra.mxu0 0.0
  %738 = vmatprep.subr.mxu0 0.0
  %739 = vmatpush1.msra.mxu0 0.0
  %740 = vmatprep.subr.mxu0 0.0
  %741 = vmatpush1.msra.mxu0 0.0
  %742 = vmatprep.subr.mxu0 0.0
  %743 = vmatpush1.msra.mxu0 0.0
  %744 = vmatprep.subr.mxu0 0.0
  %745 = vmatpush1.msra.mxu0 0.0
  %746 = vmatprep.subr.mxu0 0.0
  %747 = vmatpush1.msra.mxu0 0.0
  %748 = vmatprep.subr.mxu0 0.0
  %749 = vmatpush1.msra.mxu0 0.0
  %750 = vmatprep.subr.mxu0 0.0
  %751 = vmatpush1.msra.mxu0 0.0
  %752 = vmatprep.subr.mxu0 0.0
  %753 = vmatpush1.msra.mxu0 0.0
  %754 = vmatprep.subr.mxu0 0.0
  %755 = vmatpush1.msra.mxu0 0.0
  %756 = vmatprep.subr.mxu0 0.0
  %757 = vmatpush1.msra.mxu0 0.0
  %758 = vmatprep.subr.mxu0 0.0
  %759 = vmatpush1.msra.mxu0 0.0
  %760 = vmatprep.subr.mxu0 0.0
  %761 = vmatpush1.msra.mxu0 0.0
  %762 = vmatprep.subr.mxu0 0.0
  %763 = vmatpush1.msra.mxu0 0.0
  %764 = vmatprep.subr.mxu0 0.0
  %765 = vmatpush1.msra.mxu0 0.0
  %766 = vmatprep.subr.mxu0 0.0
  %767 = vmatpush1.msra.mxu0 0.0
  %768 = vmatprep.mubr.f32.mxu0 0.0
  %769 = vmatmul.mubr.f32.gmra.mrb[0].mxu0 %v702
  %v770 = vpop.f32.mrb[0].mxu0
  %v771 = vadd.f32 0.0, %v770
  %v772 = vpop.f32.mrb[0].mxu0
  %773 = vdwg.mxu0
  %v774 = vadd.f32 %v699, %v771
  %v775 = vxor.u32 %v774, 2147483648
  %v776 = vmul.f32 %v775, 1.442695
  %v777 = vpow.pop %v776
  %v778 = vadd.f32 %v777, 1.0
  %v779 = vrcp.pop %v778
  %v780 = vmul.f32 1.0, %v779
  %v781 = vadd.f32 %v771, %v498
  %783 = vrot.lane.b32.xlu0 %v781, 64
  %v784 = vpop.permute.xlu0 %783
  %v786 = vmul.f32 %v780, %v784
  %788 = vrot.lane.b32.xlu0 %v786, 64
  %v789 = vpop.permute.xlu0 %788
  %v791 = vadd.f32 %v699, %v789
  %v792 = vtanh.pop %v791
  %v793 = vsub.f32 1.0, %v780
  %795 = vrot.lane.b32.xlu0 %v792, 96
  %v796 = vpop.permute.xlu0 %795
  %v798 = vmul.f32 %v793, %v796
  %v799 = vmul.f32 %v780, %v522
  %v800 = vadd.f32 %v798, %v799
  %802 = vrot.lane.b32.xlu0 %v800, 96
  %v803 = vpop.permute.xlu0 %802
  %s805 = scalar_lea.vmem [#allocation5], 8
  %806 = vst.msk [vmem:[%s805] sm:$0xff] %vm219, %v803
  %s807 = scalar_lea.vmem [#allocation4], 16
  %v808 = vld [vmem:[%s807] sm:$0xff]
  %809 = vmatprep.subr.mxu0 0.0
  %810 = vmatpush1.msra.mxu0 %v45
  %811 = vmatprep.subr.mxu0 0.0
  %812 = vmatpush1.msra.mxu0 %v46
  %813 = vmatprep.subr.mxu0 0.0
  %814 = vmatpush1.msra.mxu0 %v47
  %815 = vmatprep.subr.mxu0 0.0
  %816 = vmatpush1.msra.mxu0 %v48
  %817 = vmatprep.subr.mxu0 0.0
  %818 = vmatpush1.msra.mxu0 0.0
  %819 = vmatprep.subr.mxu0 0.0
  %820 = vmatpush1.msra.mxu0 0.0
  %821 = vmatprep.subr.mxu0 0.0
  %822 = vmatpush1.msra.mxu0 0.0
  %823 = vmatprep.subr.mxu0 0.0
  %824 = vmatpush1.msra.mxu0 0.0
  %825 = vmatprep.subr.mxu0 0.0
  %826 = vmatpush1.msra.mxu0 0.0
  %827 = vmatprep.subr.mxu0 0.0
  %828 = vmatpush1.msra.mxu0 0.0
  %829 = vmatprep.subr.mxu0 0.0
  %830 = vmatpush1.msra.mxu0 0.0
  %831 = vmatprep.subr.mxu0 0.0
  %832 = vmatpush1.msra.mxu0 0.0
  %833 = vmatprep.subr.mxu0 0.0
  %834 = vmatpush1.msra.mxu0 0.0
  %835 = vmatprep.subr.mxu0 0.0
  %836 = vmatpush1.msra.mxu0 0.0
  %837 = vmatprep.subr.mxu0 0.0
  %838 = vmatpush1.msra.mxu0 0.0
  %839 = vmatprep.subr.mxu0 0.0
  %840 = vmatpush1.msra.mxu0 0.0
  %841 = vmatprep.subr.mxu0 0.0
  %842 = vmatpush1.msra.mxu0 0.0
  %843 = vmatprep.subr.mxu0 0.0
  %844 = vmatpush1.msra.mxu0 0.0
  %845 = vmatprep.subr.mxu0 0.0
  %846 = vmatpush1.msra.mxu0 0.0
  %847 = vmatprep.subr.mxu0 0.0
  %848 = vmatpush1.msra.mxu0 0.0
  %849 = vmatprep.subr.mxu0 0.0
  %850 = vmatpush1.msra.mxu0 0.0
  %851 = vmatprep.subr.mxu0 0.0
  %852 = vmatpush1.msra.mxu0 0.0
  %853 = vmatprep.subr.mxu0 0.0
  %854 = vmatpush1.msra.mxu0 0.0
  %855 = vmatprep.subr.mxu0 0.0
  %856 = vmatpush1.msra.mxu0 0.0
  %857 = vmatprep.subr.mxu0 0.0
  %858 = vmatpush1.msra.mxu0 0.0
  %859 = vmatprep.subr.mxu0 0.0
  %860 = vmatpush1.msra.mxu0 0.0
  %861 = vmatprep.subr.mxu0 0.0
  %862 = vmatpush1.msra.mxu0 0.0
  %863 = vmatprep.subr.mxu0 0.0
  %864 = vmatpush1.msra.mxu0 0.0
  %865 = vmatprep.subr.mxu0 0.0
  %866 = vmatpush1.msra.mxu0 0.0
  %867 = vmatprep.subr.mxu0 0.0
  %868 = vmatpush1.msra.mxu0 0.0
  %869 = vmatprep.subr.mxu0 0.0
  %870 = vmatpush1.msra.mxu0 0.0
  %871 = vmatprep.subr.mxu0 0.0
  %872 = vmatpush1.msra.mxu0 0.0
  %873 = vmatprep.mubr.f32.mxu0 0.0
  %874 = vmatmul.mubr.f32.gmra.mrb[0].mxu0 %v630
  %v875 = vpop.f32.mrb[0].mxu0
  %v876 = vadd.f32 0.0, %v875
  %v877 = vpop.f32.mrb[0].mxu0
  %878 = vdwg.mxu0
  %v879 = vadd.f32 %v808, %v876
  %v880 = vxor.u32 %v879, 2147483648
  %v881 = vmul.f32 %v880, 1.442695
  %v882 = vpow.pop %v881
  %v883 = vadd.f32 %v882, 1.0
  %v884 = vrcp.pop %v883
  %v885 = vmul.f32 1.0, %v884
  %v886 = vadd.f32 %v876, %v306
  %888 = vrot.lane.b32.xlu0 %v886, 64
  %v889 = vpop.permute.xlu0 %888
  %v891 = vmul.f32 %v885, %v889
  %893 = vrot.lane.b32.xlu0 %v891, 64
  %v894 = vpop.permute.xlu0 %893
  %v896 = vadd.f32 %v808, %v894
  %v897 = vtanh.pop %v896
  %v898 = vsub.f32 1.0, %v885
  %900 = vrot.lane.b32.xlu0 %v897, 96
  %v901 = vpop.permute.xlu0 %900
  %v903 = vmul.f32 %v898, %v901
  %v904 = vmul.f32 %v885, %v626
  %v905 = vadd.f32 %v903, %v904
  %907 = vrot.lane.b32.xlu0 %v905, 96
  %v908 = vpop.permute.xlu0 %907
  %v909 = vsel %vm219, %v908, 0
  %911 = vmatprep.subr.mxu0 0.0
  %912 = vmatpush1.msra.mxu0 %v49
  %913 = vmatprep.subr.mxu0 0.0
  %914 = vmatpush1.msra.mxu0 %v50
  %915 = vmatprep.subr.mxu0 0.0
  %916 = vmatpush1.msra.mxu0 %v51
  %917 = vmatprep.subr.mxu0 0.0
  %918 = vmatpush1.msra.mxu0 %v52
  %919 = vmatprep.subr.mxu0 0.0
  %920 = vmatpush1.msra.mxu0 0.0
  %921 = vmatprep.subr.mxu0 0.0
  %922 = vmatpush1.msra.mxu0 0.0
  %923 = vmatprep.subr.mxu0 0.0
  %924 = vmatpush1.msra.mxu0 0.0
  %925 = vmatprep.subr.mxu0 0.0
  %926 = vmatpush1.msra.mxu0 0.0
  %927 = vmatprep.subr.mxu0 0.0
  %928 = vmatpush1.msra.mxu0 0.0
  %929 = vmatprep.subr.mxu0 0.0
  %930 = vmatpush1.msra.mxu0 0.0
  %931 = vmatprep.subr.mxu0 0.0
  %932 = vmatpush1.msra.mxu0 0.0
  %933 = vmatprep.subr.mxu0 0.0
  %934 = vmatpush1.msra.mxu0 0.0
  %935 = vmatprep.subr.mxu0 0.0
  %936 = vmatpush1.msra.mxu0 0.0
  %937 = vmatprep.subr.mxu0 0.0
  %938 = vmatpush1.msra.mxu0 0.0
  %939 = vmatprep.subr.mxu0 0.0
  %940 = vmatpush1.msra.mxu0 0.0
  %941 = vmatprep.subr.mxu0 0.0
  %942 = vmatpush1.msra.mxu0 0.0
  %943 = vmatprep.subr.mxu0 0.0
  %944 = vmatpush1.msra.mxu0 0.0
  %945 = vmatprep.subr.mxu0 0.0
  %946 = vmatpush1.msra.mxu0 0.0
  %947 = vmatprep.subr.mxu0 0.0
  %948 = vmatpush1.msra.mxu0 0.0
  %949 = vmatprep.subr.mxu0 0.0
  %950 = vmatpush1.msra.mxu0 0.0
  %951 = vmatprep.subr.mxu0 0.0
  %952 = vmatpush1.msra.mxu0 0.0
  %953 = vmatprep.subr.mxu0 0.0
  %954 = vmatpush1.msra.mxu0 0.0
  %955 = vmatprep.subr.mxu0 0.0
  %956 = vmatpush1.msra.mxu0 0.0
  %957 = vmatprep.subr.mxu0 0.0
  %958 = vmatpush1.msra.mxu0 0.0
  %959 = vmatprep.subr.mxu0 0.0
  %960 = vmatpush1.msra.mxu0 0.0
  %961 = vmatprep.subr.mxu0 0.0
  %962 = vmatpush1.msra.mxu0 0.0
  %963 = vmatprep.subr.mxu0 0.0
  %964 = vmatpush1.msra.mxu0 0.0
  %965 = vmatprep.subr.mxu0 0.0
  %966 = vmatpush1.msra.mxu0 0.0
  %967 = vmatprep.subr.mxu0 0.0
  %968 = vmatpush1.msra.mxu0 0.0
  %969 = vmatprep.subr.mxu0 0.0
  %970 = vmatpush1.msra.mxu0 0.0
  %971 = vmatprep.subr.mxu0 0.0
  %972 = vmatpush1.msra.mxu0 0.0
  %973 = vmatprep.subr.mxu0 0.0
  %974 = vmatpush1.msra.mxu0 0.0
  %975 = vmatprep.mubr.f32.mxu0 0.0
  %976 = vmatmul.mubr.f32.gmra.mrb[0].mxu0 %v909
  %v977 = vpop.f32.mrb[0].mxu0
  %v978 = vadd.f32 %v335, %v977
  %v979 = vpop.f32.mrb[0].mxu0
  %980 = vdwg.mxu0
  %v981 = vsel %vm219, %v803, 0
  %983 = vmatprep.subr.mxu0 0.0
  %984 = vmatpush1.msra.mxu0 %v53
  %985 = vmatprep.subr.mxu0 0.0
  %986 = vmatpush1.msra.mxu0 %v54
  %987 = vmatprep.subr.mxu0 0.0
  %988 = vmatpush1.msra.mxu0 %v55
  %989 = vmatprep.subr.mxu0 0.0
  %990 = vmatpush1.msra.mxu0 %v56
  %991 = vmatprep.subr.mxu0 0.0
  %992 = vmatpush1.msra.mxu0 0.0
  %993 = vmatprep.subr.mxu0 0.0
  %994 = vmatpush1.msra.mxu0 0.0
  %995 = vmatprep.subr.mxu0 0.0
  %996 = vmatpush1.msra.mxu0 0.0
  %997 = vmatprep.subr.mxu0 0.0
  %998 = vmatpush1.msra.mxu0 0.0
  %999 = vmatprep.subr.mxu0 0.0
  %1000 = vmatpush1.msra.mxu0 0.0
  %1001 = vmatprep.subr.mxu0 0.0
  %1002 = vmatpush1.msra.mxu0 0.0
  %1003 = vmatprep.subr.mxu0 0.0
  %1004 = vmatpush1.msra.mxu0 0.0
  %1005 = vmatprep.subr.mxu0 0.0
  %1006 = vmatpush1.msra.mxu0 0.0
  %1007 = vmatprep.subr.mxu0 0.0
  %1008 = vmatpush1.msra.mxu0 0.0
  %1009 = vmatprep.subr.mxu0 0.0
  %1010 = vmatpush1.msra.mxu0 0.0
  %1011 = vmatprep.subr.mxu0 0.0
  %1012 = vmatpush1.msra.mxu0 0.0
  %1013 = vmatprep.subr.mxu0 0.0
  %1014 = vmatpush1.msra.mxu0 0.0
  %1015 = vmatprep.subr.mxu0 0.0
  %1016 = vmatpush1.msra.mxu0 0.0
  %1017 = vmatprep.subr.mxu0 0.0
  %1018 = vmatpush1.msra.mxu0 0.0
  %1019 = vmatprep.subr.mxu0 0.0
  %1020 = vmatpush1.msra.mxu0 0.0
  %1021 = vmatprep.subr.mxu0 0.0
  %1022 = vmatpush1.msra.mxu0 0.0
  %1023 = vmatprep.subr.mxu0 0.0
  %1024 = vmatpush1.msra.mxu0 0.0
  %1025 = vmatprep.subr.mxu0 0.0
  %1026 = vmatpush1.msra.mxu0 0.0
  %1027 = vmatprep.subr.mxu0 0.0
  %1028 = vmatpush1.msra.mxu0 0.0
  %1029 = vmatprep.subr.mxu0 0.0
  %1030 = vmatpush1.msra.mxu0 0.0
  %1031 = vmatprep.subr.mxu0 0.0
  %1032 = vmatpush1.msra.mxu0 0.0
  %1033 = vmatprep.subr.mxu0 0.0
  %1034 = vmatpush1.msra.mxu0 0.0
  %1035 = vmatprep.subr.mxu0 0.0
  %1036 = vmatpush1.msra.mxu0 0.0
  %1037 = vmatprep.subr.mxu0 0.0
  %1038 = vmatpush1.msra.mxu0 0.0
  %1039 = vmatprep.subr.mxu0 0.0
  %1040 = vmatpush1.msra.mxu0 0.0
  %1041 = vmatprep.subr.mxu0 0.0
  %1042 = vmatpush1.msra.mxu0 0.0
  %1043 = vmatprep.subr.mxu0 0.0
  %1044 = vmatpush1.msra.mxu0 0.0
  %1045 = vmatprep.subr.mxu0 0.0
  %1046 = vmatpush1.msra.mxu0 0.0
  %1047 = vmatprep.mubr.f32.mxu0 0.0
  %1048 = vmatmul.mubr.f32.gmra.mrb[0].mxu0 %v981
  %v1049 = vpop.f32.mrb[0].mxu0
  %v1050 = vadd.f32 0.0, %v1049
  %v1051 = vpop.f32.mrb[0].mxu0
  %1052 = vdwg.mxu0
  %v1053 = vadd.f32 %v978, %v1050
  %v1054 = vxor.u32 %v1053, 2147483648
  %v1055 = vmul.f32 %v1054, 1.442695
  %v1056 = vpow.pop %v1055
  %v1057 = vadd.f32 %v1056, 1.0
  %v1058 = vrcp.pop %v1057
  %v1059 = vmul.f32 1.0, %v1058
  %v1060 = vadd.f32 %v1050, %v498
  %1062 = vrot.lane.b32.xlu0 %v1060, 64
  %v1063 = vpop.permute.xlu0 %1062
  %v1065 = vmul.f32 %v1059, %v1063
  %1067 = vrot.lane.b32.xlu0 %v1065, 64
  %v1068 = vpop.permute.xlu0 %1067
  %v1070 = vadd.f32 %v978, %v1068
  %v1071 = vtanh.pop %v1070
  %v1072 = vsub.f32 1.0, %v1059
  %1074 = vrot.lane.b32.xlu0 %v1071, 96
  %v1075 = vpop.permute.xlu0 %1074
  %v1077 = vmul.f32 %v1072, %v1075
  %v1078 = vmul.f32 %v1059, %v800
  %v1079 = vadd.f32 %v1077, %v1078
  %1081 = vrot.lane.b32.xlu0 %v1079, 96
  %v1082 = vpop.permute.xlu0 %1081
  %s1084 = scalar_lea.vmem [#allocation5], 16
  %1085 = vst.msk [vmem:[%s1084] sm:$0xff] %vm219, %v1082
  %s1086 = scalar_lea.vmem [#allocation4], 24
  %v1087 = vld [vmem:[%s1086] sm:$0xff]
  %1088 = vmatprep.subr.mxu0 0.0
  %1089 = vmatpush1.msra.mxu0 %v45
  %1090 = vmatprep.subr.mxu0 0.0
  %1091 = vmatpush1.msra.mxu0 %v46
  %1092 = vmatprep.subr.mxu0 0.0
  %1093 = vmatpush1.msra.mxu0 %v47
  %1094 = vmatprep.subr.mxu0 0.0
  %1095 = vmatpush1.msra.mxu0 %v48
  %1096 = vmatprep.subr.mxu0 0.0
  %1097 = vmatpush1.msra.mxu0 0.0
  %1098 = vmatprep.subr.mxu0 0.0
  %1099 = vmatpush1.msra.mxu0 0.0
  %1100 = vmatprep.subr.mxu0 0.0
  %1101 = vmatpush1.msra.mxu0 0.0
  %1102 = vmatprep.subr.mxu0 0.0
  %1103 = vmatpush1.msra.mxu0 0.0
  %1104 = vmatprep.subr.mxu0 0.0
  %1105 = vmatpush1.msra.mxu0 0.0
  %1106 = vmatprep.subr.mxu0 0.0
  %1107 = vmatpush1.msra.mxu0 0.0
  %1108 = vmatprep.subr.mxu0 0.0
  %1109 = vmatpush1.msra.mxu0 0.0
  %1110 = vmatprep.subr.mxu0 0.0
  %1111 = vmatpush1.msra.mxu0 0.0
  %1112 = vmatprep.subr.mxu0 0.0
  %1113 = vmatpush1.msra.mxu0 0.0
  %1114 = vmatprep.subr.mxu0 0.0
  %1115 = vmatpush1.msra.mxu0 0.0
  %1116 = vmatprep.subr.mxu0 0.0
  %1117 = vmatpush1.msra.mxu0 0.0
  %1118 = vmatprep.subr.mxu0 0.0
  %1119 = vmatpush1.msra.mxu0 0.0
  %1120 = vmatprep.subr.mxu0 0.0
  %1121 = vmatpush1.msra.mxu0 0.0
  %1122 = vmatprep.subr.mxu0 0.0
  %1123 = vmatpush1.msra.mxu0 0.0
  %1124 = vmatprep.subr.mxu0 0.0
  %1125 = vmatpush1.msra.mxu0 0.0
  %1126 = vmatprep.subr.mxu0 0.0
  %1127 = vmatpush1.msra.mxu0 0.0
  %1128 = vmatprep.subr.mxu0 0.0
  %1129 = vmatpush1.msra.mxu0 0.0
  %1130 = vmatprep.subr.mxu0 0.0
  %1131 = vmatpush1.msra.mxu0 0.0
  %1132 = vmatprep.subr.mxu0 0.0
  %1133 = vmatpush1.msra.mxu0 0.0
  %1134 = vmatprep.subr.mxu0 0.0
  %1135 = vmatpush1.msra.mxu0 0.0
  %1136 = vmatprep.subr.mxu0 0.0
  %1137 = vmatpush1.msra.mxu0 0.0
  %1138 = vmatprep.subr.mxu0 0.0
  %1139 = vmatpush1.msra.mxu0 0.0
  %1140 = vmatprep.subr.mxu0 0.0
  %1141 = vmatpush1.msra.mxu0 0.0
  %1142 = vmatprep.subr.mxu0 0.0
  %1143 = vmatpush1.msra.mxu0 0.0
  %1144 = vmatprep.subr.mxu0 0.0
  %1145 = vmatpush1.msra.mxu0 0.0
  %1146 = vmatprep.subr.mxu0 0.0
  %1147 = vmatpush1.msra.mxu0 0.0
  %1148 = vmatprep.subr.mxu0 0.0
  %1149 = vmatpush1.msra.mxu0 0.0
  %1150 = vmatprep.subr.mxu0 0.0
  %1151 = vmatpush1.msra.mxu0 0.0
  %1152 = vmatprep.mubr.f32.mxu0 0.0
  %1153 = vmatmul.mubr.f32.gmra.mrb[0].mxu0 %v909
  %v1154 = vpop.f32.mrb[0].mxu0
  %v1155 = vadd.f32 0.0, %v1154
  %v1156 = vpop.f32.mrb[0].mxu0
  %1157 = vdwg.mxu0
  %v1158 = vadd.f32 %v1087, %v1155
  %v1159 = vxor.u32 %v1158, 2147483648
  %v1160 = vmul.f32 %v1159, 1.442695
  %v1161 = vpow.pop %v1160
  %v1162 = vadd.f32 %v1161, 1.0
  %v1163 = vrcp.pop %v1162
  %v1164 = vmul.f32 1.0, %v1163
  %v1165 = vadd.f32 %v1155, %v306
  %1167 = vrot.lane.b32.xlu0 %v1165, 64
  %v1168 = vpop.permute.xlu0 %1167
  %v1170 = vmul.f32 %v1164, %v1168
  %1172 = vrot.lane.b32.xlu0 %v1170, 64
  %v1173 = vpop.permute.xlu0 %1172
  %v1175 = vadd.f32 %v1087, %v1173
  %v1176 = vtanh.pop %v1175
  %v1177 = vsub.f32 1.0, %v1164
  %1179 = vrot.lane.b32.xlu0 %v1176, 96
  %v1180 = vpop.permute.xlu0 %1179
  %v1182 = vmul.f32 %v1177, %v1180
  %v1183 = vmul.f32 %v1164, %v905
  %v1184 = vadd.f32 %v1182, %v1183
  %1186 = vrot.lane.b32.xlu0 %v1184, 96
  %v1187 = vpop.permute.xlu0 %1186
  %v1188 = vsel %vm219, %v1187, 0
  %1190 = vmatprep.subr.mxu0 0.0
  %1191 = vmatpush1.msra.mxu0 %v49
  %1192 = vmatprep.subr.mxu0 0.0
  %1193 = vmatpush1.msra.mxu0 %v50
  %1194 = vmatprep.subr.mxu0 0.0
  %1195 = vmatpush1.msra.mxu0 %v51
  %1196 = vmatprep.subr.mxu0 0.0
  %1197 = vmatpush1.msra.mxu0 %v52
  %1198 = vmatprep.subr.mxu0 0.0
  %1199 = vmatpush1.msra.mxu0 0.0
  %1200 = vmatprep.subr.mxu0 0.0
  %1201 = vmatpush1.msra.mxu0 0.0
  %1202 = vmatprep.subr.mxu0 0.0
  %1203 = vmatpush1.msra.mxu0 0.0
  %1204 = vmatprep.subr.mxu0 0.0
  %1205 = vmatpush1.msra.mxu0 0.0
  %1206 = vmatprep.subr.mxu0 0.0
  %1207 = vmatpush1.msra.mxu0 0.0
  %1208 = vmatprep.subr.mxu0 0.0
  %1209 = vmatpush1.msra.mxu0 0.0
  %1210 = vmatprep.subr.mxu0 0.0
  %1211 = vmatpush1.msra.mxu0 0.0
  %1212 = vmatprep.subr.mxu0 0.0
  %1213 = vmatpush1.msra.mxu0 0.0
  %1214 = vmatprep.subr.mxu0 0.0
  %1215 = vmatpush1.msra.mxu0 0.0
  %1216 = vmatprep.subr.mxu0 0.0
  %1217 = vmatpush1.msra.mxu0 0.0
  %1218 = vmatprep.subr.mxu0 0.0
  %1219 = vmatpush1.msra.mxu0 0.0
  %1220 = vmatprep.subr.mxu0 0.0
  %1221 = vmatpush1.msra.mxu0 0.0
  %1222 = vmatprep.subr.mxu0 0.0
  %1223 = vmatpush1.msra.mxu0 0.0
  %1224 = vmatprep.subr.mxu0 0.0
  %1225 = vmatpush1.msra.mxu0 0.0
  %1226 = vmatprep.subr.mxu0 0.0
  %1227 = vmatpush1.msra.mxu0 0.0
  %1228 = vmatprep.subr.mxu0 0.0
  %1229 = vmatpush1.msra.mxu0 0.0
  %1230 = vmatprep.subr.mxu0 0.0
  %1231 = vmatpush1.msra.mxu0 0.0
  %1232 = vmatprep.subr.mxu0 0.0
  %1233 = vmatpush1.msra.mxu0 0.0
  %1234 = vmatprep.subr.mxu0 0.0
  %1235 = vmatpush1.msra.mxu0 0.0
  %1236 = vmatprep.subr.mxu0 0.0
  %1237 = vmatpush1.msra.mxu0 0.0
  %1238 = vmatprep.subr.mxu0 0.0
  %1239 = vmatpush1.msra.mxu0 0.0
  %1240 = vmatprep.subr.mxu0 0.0
  %1241 = vmatpush1.msra.mxu0 0.0
  %1242 = vmatprep.subr.mxu0 0.0
  %1243 = vmatpush1.msra.mxu0 0.0
  %1244 = vmatprep.subr.mxu0 0.0
  %1245 = vmatpush1.msra.mxu0 0.0
  %1246 = vmatprep.subr.mxu0 0.0
  %1247 = vmatpush1.msra.mxu0 0.0
  %1248 = vmatprep.subr.mxu0 0.0
  %1249 = vmatpush1.msra.mxu0 0.0
  %1250 = vmatprep.subr.mxu0 0.0
  %1251 = vmatpush1.msra.mxu0 0.0
  %1252 = vmatprep.subr.mxu0 0.0
  %1253 = vmatpush1.msra.mxu0 0.0
  %1254 = vmatprep.mubr.f32.mxu0 0.0
  %1255 = vmatmul.mubr.f32.gmra.mrb[0].mxu0 %v1188
  %v1256 = vpop.f32.mrb[0].mxu0
  %v1257 = vadd.f32 %v335, %v1256
  %v1258 = vpop.f32.mrb[0].mxu0
  %1259 = vdwg.mxu0
  %v1260 = vsel %vm219, %v1082, 0
  %1262 = vmatprep.subr.mxu0 0.0
  %1263 = vmatpush1.msra.mxu0 %v53
  %1264 = vmatprep.subr.mxu0 0.0
  %1265 = vmatpush1.msra.mxu0 %v54
  %1266 = vmatprep.subr.mxu0 0.0
  %1267 = vmatpush1.msra.mxu0 %v55
  %1268 = vmatprep.subr.mxu0 0.0
  %1269 = vmatpush1.msra.mxu0 %v56
  %1270 = vmatprep.subr.mxu0 0.0
  %1271 = vmatpush1.msra.mxu0 0.0
  %1272 = vmatprep.subr.mxu0 0.0
  %1273 = vmatpush1.msra.mxu0 0.0
  %1274 = vmatprep.subr.mxu0 0.0
  %1275 = vmatpush1.msra.mxu0 0.0
  %1276 = vmatprep.subr.mxu0 0.0
  %1277 = vmatpush1.msra.mxu0 0.0
  %1278 = vmatprep.subr.mxu0 0.0
  %1279 = vmatpush1.msra.mxu0 0.0
  %1280 = vmatprep.subr.mxu0 0.0
  %1281 = vmatpush1.msra.mxu0 0.0
  %1282 = vmatprep.subr.mxu0 0.0
  %1283 = vmatpush1.msra.mxu0 0.0
  %1284 = vmatprep.subr.mxu0 0.0
  %1285 = vmatpush1.msra.mxu0 0.0
  %1286 = vmatprep.subr.mxu0 0.0
  %1287 = vmatpush1.msra.mxu0 0.0
  %1288 = vmatprep.subr.mxu0 0.0
  %1289 = vmatpush1.msra.mxu0 0.0
  %1290 = vmatprep.subr.mxu0 0.0
  %1291 = vmatpush1.msra.mxu0 0.0
  %1292 = vmatprep.subr.mxu0 0.0
  %1293 = vmatpush1.msra.mxu0 0.0
  %1294 = vmatprep.subr.mxu0 0.0
  %1295 = vmatpush1.msra.mxu0 0.0
  %1296 = vmatprep.subr.mxu0 0.0
  %1297 = vmatpush1.msra.mxu0 0.0
  %1298 = vmatprep.subr.mxu0 0.0
  %1299 = vmatpush1.msra.mxu0 0.0
  %1300 = vmatprep.subr.mxu0 0.0
  %1301 = vmatpush1.msra.mxu0 0.0
  %1302 = vmatprep.subr.mxu0 0.0
  %1303 = vmatpush1.msra.mxu0 0.0
  %1304 = vmatprep.subr.mxu0 0.0
  %1305 = vmatpush1.msra.mxu0 0.0
  %1306 = vmatprep.subr.mxu0 0.0
  %1307 = vmatpush1.msra.mxu0 0.0
  %1308 = vmatprep.subr.mxu0 0.0
  %1309 = vmatpush1.msra.mxu0 0.0
  %1310 = vmatprep.subr.mxu0 0.0
  %1311 = vmatpush1.msra.mxu0 0.0
  %1312 = vmatprep.subr.mxu0 0.0
  %1313 = vmatpush1.msra.mxu0 0.0
  %1314 = vmatprep.subr.mxu0 0.0
  %1315 = vmatpush1.msra.mxu0 0.0
  %1316 = vmatprep.subr.mxu0 0.0
  %1317 = vmatpush1.msra.mxu0 0.0
  %1318 = vmatprep.subr.mxu0 0.0
  %1319 = vmatpush1.msra.mxu0 0.0
  %1320 = vmatprep.subr.mxu0 0.0
  %1321 = vmatpush1.msra.mxu0 0.0
  %1322 = vmatprep.subr.mxu0 0.0
  %1323 = vmatpush1.msra.mxu0 0.0
  %1324 = vmatprep.subr.mxu0 0.0
  %1325 = vmatpush1.msra.mxu0 0.0
  %1326 = vmatprep.mubr.f32.mxu0 0.0
  %1327 = vmatmul.mubr.f32.gmra.mrb[0].mxu0 %v1260
  %v1328 = vpop.f32.mrb[0].mxu0
  %v1329 = vadd.f32 0.0, %v1328
  %v1330 = vpop.f32.mrb[0].mxu0
  %1331 = vdwg.mxu0
  %v1332 = vadd.f32 %v1257, %v1329
  %v1333 = vxor.u32 %v1332, 2147483648
  %v1334 = vmul.f32 %v1333, 1.442695
  %v1335 = vpow.pop %v1334
  %v1336 = vadd.f32 %v1335, 1.0
  %v1337 = vrcp.pop %v1336
  %v1338 = vmul.f32 1.0, %v1337
  %v1339 = vadd.f32 %v1329, %v498
  %1341 = vrot.lane.b32.xlu0 %v1339, 64
  %v1342 = vpop.permute.xlu0 %1341
  %v1344 = vmul.f32 %v1338, %v1342
  %1346 = vrot.lane.b32.xlu0 %v1344, 64
  %v1347 = vpop.permute.xlu0 %1346
  %v1349 = vadd.f32 %v1257, %v1347
  %v1350 = vtanh.pop %v1349
  %v1351 = vsub.f32 1.0, %v1338
  %1353 = vrot.lane.b32.xlu0 %v1350, 96
  %v1354 = vpop.permute.xlu0 %1353
  %v1356 = vmul.f32 %v1351, %v1354
  %v1357 = vmul.f32 %v1338, %v1079
  %v1358 = vadd.f32 %v1356, %v1357
  %1360 = vrot.lane.b32.xlu0 %v1358, 96
  %v1361 = vpop.permute.xlu0 %1360
  %s1363 = scalar_lea.vmem [#allocation5], 24
  %1364 = vst.msk [vmem:[%s1363] sm:$0xff] %vm219, %v1361
  %s1365 = scalar_lea.vmem [#allocation4], 32
  %v1366 = vld [vmem:[%s1365] sm:$0xff]
  %1367 = vmatprep.subr.mxu0 0.0
  %1368 = vmatpush1.msra.mxu0 %v45
  %1369 = vmatprep.subr.mxu0 0.0
  %1370 = vmatpush1.msra.mxu0 %v46
  %1371 = vmatprep.subr.mxu0 0.0
  %1372 = vmatpush1.msra.mxu0 %v47
  %1373 = vmatprep.subr.mxu0 0.0
  %1374 = vmatpush1.msra.mxu0 %v48
  %1375 = vmatprep.subr.mxu0 0.0
  %1376 = vmatpush1.msra.mxu0 0.0
  %1377 = vmatprep.subr.mxu0 0.0
  %1378 = vmatpush1.msra.mxu0 0.0
  %1379 = vmatprep.subr.mxu0 0.0
  %1380 = vmatpush1.msra.mxu0 0.0
  %1381 = vmatprep.subr.mxu0 0.0
  %1382 = vmatpush1.msra.mxu0 0.0
  %1383 = vmatprep.subr.mxu0 0.0
  %1384 = vmatpush1.msra.mxu0 0.0
  %1385 = vmatprep.subr.mxu0 0.0
  %1386 = vmatpush1.msra.mxu0 0.0
  %1387 = vmatprep.subr.mxu0 0.0
  %1388 = vmatpush1.msra.mxu0 0.0
  %1389 = vmatprep.subr.mxu0 0.0
  %1390 = vmatpush1.msra.mxu0 0.0
  %1391 = vmatprep.subr.mxu0 0.0
  %1392 = vmatpush1.msra.mxu0 0.0
  %1393 = vmatprep.subr.mxu0 0.0
  %1394 = vmatpush1.msra.mxu0 0.0
  %1395 = vmatprep.subr.mxu0 0.0
  %1396 = vmatpush1.msra.mxu0 0.0
  %1397 = vmatprep.subr.mxu0 0.0
  %1398 = vmatpush1.msra.mxu0 0.0
  %1399 = vmatprep.subr.mxu0 0.0
  %1400 = vmatpush1.msra.mxu0 0.0
  %1401 = vmatprep.subr.mxu0 0.0
  %1402 = vmatpush1.msra.mxu0 0.0
  %1403 = vmatprep.subr.mxu0 0.0
  %1404 = vmatpush1.msra.mxu0 0.0
  %1405 = vmatprep.subr.mxu0 0.0
  %1406 = vmatpush1.msra.mxu0 0.0
  %1407 = vmatprep.subr.mxu0 0.0
  %1408 = vmatpush1.msra.mxu0 0.0
  %1409 = vmatprep.subr.mxu0 0.0
  %1410 = vmatpush1.msra.mxu0 0.0
  %1411 = vmatprep.subr.mxu0 0.0
  %1412 = vmatpush1.msra.mxu0 0.0
  %1413 = vmatprep.subr.mxu0 0.0
  %1414 = vmatpush1.msra.mxu0 0.0
  %1415 = vmatprep.subr.mxu0 0.0
  %1416 = vmatpush1.msra.mxu0 0.0
  %1417 = vmatprep.subr.mxu0 0.0
  %1418 = vmatpush1.msra.mxu0 0.0
  %1419 = vmatprep.subr.mxu0 0.0
  %1420 = vmatpush1.msra.mxu0 0.0
  %1421 = vmatprep.subr.mxu0 0.0
  %1422 = vmatpush1.msra.mxu0 0.0
  %1423 = vmatprep.subr.mxu0 0.0
  %1424 = vmatpush1.msra.mxu0 0.0
  %1425 = vmatprep.subr.mxu0 0.0
  %1426 = vmatpush1.msra.mxu0 0.0
  %1427 = vmatprep.subr.mxu0 0.0
  %1428 = vmatpush1.msra.mxu0 0.0
  %1429 = vmatprep.subr.mxu0 0.0
  %1430 = vmatpush1.msra.mxu0 0.0
  %1431 = vmatprep.mubr.f32.mxu0 0.0
  %1432 = vmatmul.mubr.f32.gmra.mrb[0].mxu0 %v1188
  %v1433 = vpop.f32.mrb[0].mxu0
  %v1434 = vadd.f32 0.0, %v1433
  %v1435 = vpop.f32.mrb[0].mxu0
  %1436 = vdwg.mxu0
  %v1437 = vadd.f32 %v1366, %v1434
  %v1438 = vxor.u32 %v1437, 2147483648
  %v1439 = vmul.f32 %v1438, 1.442695
  %v1440 = vpow.pop %v1439
  %v1441 = vadd.f32 %v1440, 1.0
  %v1442 = vrcp.pop %v1441
  %v1443 = vmul.f32 1.0, %v1442
  %v1444 = vadd.f32 %v1434, %v306
  %1446 = vrot.lane.b32.xlu0 %v1444, 64
  %v1447 = vpop.permute.xlu0 %1446
  %v1449 = vmul.f32 %v1443, %v1447
  %1451 = vrot.lane.b32.xlu0 %v1449, 64
  %v1452 = vpop.permute.xlu0 %1451
  %v1454 = vadd.f32 %v1366, %v1452
  %v1455 = vtanh.pop %v1454
  %v1456 = vsub.f32 1.0, %v1443
  %1458 = vrot.lane.b32.xlu0 %v1455, 96
  %v1459 = vpop.permute.xlu0 %1458
  %v1461 = vmul.f32 %v1456, %v1459
  %v1462 = vmul.f32 %v1443, %v1184
  %v1463 = vadd.f32 %v1461, %v1462
  %1465 = vrot.lane.b32.xlu0 %v1463, 96
  %v1466 = vpop.permute.xlu0 %1465
  %v1467 = vsel %vm219, %v1466, 0
  %1469 = vmatprep.subr.mxu0 0.0
  %1470 = vmatpush1.msra.mxu0 %v49
  %1471 = vmatprep.subr.mxu0 0.0
  %1472 = vmatpush1.msra.mxu0 %v50
  %1473 = vmatprep.subr.mxu0 0.0
  %1474 = vmatpush1.msra.mxu0 %v51
  %1475 = vmatprep.subr.mxu0 0.0
  %1476 = vmatpush1.msra.mxu0 %v52
  %1477 = vmatprep.subr.mxu0 0.0
  %1478 = vmatpush1.msra.mxu0 0.0
  %1479 = vmatprep.subr.mxu0 0.0
  %1480 = vmatpush1.msra.mxu0 0.0
  %1481 = vmatprep.subr.mxu0 0.0
  %1482 = vmatpush1.msra.mxu0 0.0
  %1483 = vmatprep.subr.mxu0 0.0
  %1484 = vmatpush1.msra.mxu0 0.0
  %1485 = vmatprep.subr.mxu0 0.0
  %1486 = vmatpush1.msra.mxu0 0.0
  %1487 = vmatprep.subr.mxu0 0.0
  %1488 = vmatpush1.msra.mxu0 0.0
  %1489 = vmatprep.subr.mxu0 0.0
  %1490 = vmatpush1.msra.mxu0 0.0
  %1491 = vmatprep.subr.mxu0 0.0
  %1492 = vmatpush1.msra.mxu0 0.0
  %1493 = vmatprep.subr.mxu0 0.0
  %1494 = vmatpush1.msra.mxu0 0.0
  %1495 = vmatprep.subr.mxu0 0.0
  %1496 = vmatpush1.msra.mxu0 0.0
  %1497 = vmatprep.subr.mxu0 0.0
  %1498 = vmatpush1.msra.mxu0 0.0
  %1499 = vmatprep.subr.mxu0 0.0
  %1500 = vmatpush1.msra.mxu0 0.0
  %1501 = vmatprep.subr.mxu0 0.0
  %1502 = vmatpush1.msra.mxu0 0.0
  %1503 = vmatprep.subr.mxu0 0.0
  %1504 = vmatpush1.msra.mxu0 0.0
  %1505 = vmatprep.subr.mxu0 0.0
  %1506 = vmatpush1.msra.mxu0 0.0
  %1507 = vmatprep.subr.mxu0 0.0
  %1508 = vmatpush1.msra.mxu0 0.0
  %1509 = vmatprep.subr.mxu0 0.0
  %1510 = vmatpush1.msra.mxu0 0.0
  %1511 = vmatprep.subr.mxu0 0.0
  %1512 = vmatpush1.msra.mxu0 0.0
  %1513 = vmatprep.subr.mxu0 0.0
  %1514 = vmatpush1.msra.mxu0 0.0
  %1515 = vmatprep.subr.mxu0 0.0
  %1516 = vmatpush1.msra.mxu0 0.0
  %1517 = vmatprep.subr.mxu0 0.0
  %1518 = vmatpush1.msra.mxu0 0.0
  %1519 = vmatprep.subr.mxu0 0.0
  %1520 = vmatpush1.msra.mxu0 0.0
  %1521 = vmatprep.subr.mxu0 0.0
  %1522 = vmatpush1.msra.mxu0 0.0
  %1523 = vmatprep.subr.mxu0 0.0
  %1524 = vmatpush1.msra.mxu0 0.0
  %1525 = vmatprep.subr.mxu0 0.0
  %1526 = vmatpush1.msra.mxu0 0.0
  %1527 = vmatprep.subr.mxu0 0.0
  %1528 = vmatpush1.msra.mxu0 0.0
  %1529 = vmatprep.subr.mxu0 0.0
  %1530 = vmatpush1.msra.mxu0 0.0
  %1531 = vmatprep.subr.mxu0 0.0
  %1532 = vmatpush1.msra.mxu0 0.0
  %1533 = vmatprep.mubr.f32.mxu0 0.0
  %1534 = vmatmul.mubr.f32.gmra.mrb[0].mxu0 %v1467
  %v1535 = vpop.f32.mrb[0].mxu0
  %v1536 = vadd.f32 %v335, %v1535
  %v1537 = vpop.f32.mrb[0].mxu0
  %1538 = vdwg.mxu0
  %v1539 = vsel %vm219, %v1361, 0
  %1541 = vmatprep.subr.mxu0 0.0
  %1542 = vmatpush1.msra.mxu0 %v53
  %1543 = vmatprep.subr.mxu0 0.0
  %1544 = vmatpush1.msra.mxu0 %v54
  %1545 = vmatprep.subr.mxu0 0.0
  %1546 = vmatpush1.msra.mxu0 %v55
  %1547 = vmatprep.subr.mxu0 0.0
  %1548 = vmatpush1.msra.mxu0 %v56
  %1549 = vmatprep.subr.mxu0 0.0
  %1550 = vmatpush1.msra.mxu0 0.0
  %1551 = vmatprep.subr.mxu0 0.0
  %1552 = vmatpush1.msra.mxu0 0.0
  %1553 = vmatprep.subr.mxu0 0.0
  %1554 = vmatpush1.msra.mxu0 0.0
  %1555 = vmatprep.subr.mxu0 0.0
  %1556 = vmatpush1.msra.mxu0 0.0
  %1557 = vmatprep.subr.mxu0 0.0
  %1558 = vmatpush1.msra.mxu0 0.0
  %1559 = vmatprep.subr.mxu0 0.0
  %1560 = vmatpush1.msra.mxu0 0.0
  %1561 = vmatprep.subr.mxu0 0.0
  %1562 = vmatpush1.msra.mxu0 0.0
  %1563 = vmatprep.subr.mxu0 0.0
  %1564 = vmatpush1.msra.mxu0 0.0
  %1565 = vmatprep.subr.mxu0 0.0
  %1566 = vmatpush1.msra.mxu0 0.0
  %1567 = vmatprep.subr.mxu0 0.0
  %1568 = vmatpush1.msra.mxu0 0.0
  %1569 = vmatprep.subr.mxu0 0.0
  %1570 = vmatpush1.msra.mxu0 0.0
  %1571 = vmatprep.subr.mxu0 0.0
  %1572 = vmatpush1.msra.mxu0 0.0
  %1573 = vmatprep.subr.mxu0 0.0
  %1574 = vmatpush1.msra.mxu0 0.0
  %1575 = vmatprep.subr.mxu0 0.0
  %1576 = vmatpush1.msra.mxu0 0.0
  %1577 = vmatprep.subr.mxu0 0.0
  %1578 = vmatpush1.msra.mxu0 0.0
  %1579 = vmatprep.subr.mxu0 0.0
  %1580 = vmatpush1.msra.mxu0 0.0
  %1581 = vmatprep.subr.mxu0 0.0
  %1582 = vmatpush1.msra.mxu0 0.0
  %1583 = vmatprep.subr.mxu0 0.0
  %1584 = vmatpush1.msra.mxu0 0.0
  %1585 = vmatprep.subr.mxu0 0.0
  %1586 = vmatpush1.msra.mxu0 0.0
  %1587 = vmatprep.subr.mxu0 0.0
  %1588 = vmatpush1.msra.mxu0 0.0
  %1589 = vmatprep.subr.mxu0 0.0
  %1590 = vmatpush1.msra.mxu0 0.0
  %1591 = vmatprep.subr.mxu0 0.0
  %1592 = vmatpush1.msra.mxu0 0.0
  %1593 = vmatprep.subr.mxu0 0.0
  %1594 = vmatpush1.msra.mxu0 0.0
  %1595 = vmatprep.subr.mxu0 0.0
  %1596 = vmatpush1.msra.mxu0 0.0
  %1597 = vmatprep.subr.mxu0 0.0
  %1598 = vmatpush1.msra.mxu0 0.0
  %1599 = vmatprep.subr.mxu0 0.0
  %1600 = vmatpush1.msra.mxu0 0.0
  %1601 = vmatprep.subr.mxu0 0.0
  %1602 = vmatpush1.msra.mxu0 0.0
  %1603 = vmatprep.subr.mxu0 0.0
  %1604 = vmatpush1.msra.mxu0 0.0
  %1605 = vmatprep.mubr.f32.mxu0 0.0
  %1606 = vmatmul.mubr.f32.gmra.mrb[0].mxu0 %v1539
  %v1607 = vpop.f32.mrb[0].mxu0
  %v1608 = vadd.f32 0.0, %v1607
  %v1609 = vpop.f32.mrb[0].mxu0
  %1610 = vdwg.mxu0
  %v1611 = vadd.f32 %v1536, %v1608
  %v1612 = vxor.u32 %v1611, 2147483648
  %v1613 = vmul.f32 %v1612, 1.442695
  %v1614 = vpow.pop %v1613
  %v1615 = vadd.f32 %v1614, 1.0
  %v1616 = vrcp.pop %v1615
  %v1617 = vmul.f32 1.0, %v1616
  %v1618 = vadd.f32 %v1608, %v498
  %1620 = vrot.lane.b32.xlu0 %v1618, 64
  %v1621 = vpop.permute.xlu0 %1620
  %v1623 = vmul.f32 %v1617, %v1621
  %1625 = vrot.lane.b32.xlu0 %v1623, 64
  %v1626 = vpop.permute.xlu0 %1625
  %v1628 = vadd.f32 %v1536, %v1626
  %v1629 = vtanh.pop %v1628
  %v1630 = vsub.f32 1.0, %v1617
  %1632 = vrot.lane.b32.xlu0 %v1629, 96
  %v1633 = vpop.permute.xlu0 %1632
  %v1635 = vmul.f32 %v1630, %v1633
  %v1636 = vmul.f32 %v1617, %v1358
  %v1637 = vadd.f32 %v1635, %v1636
  %1639 = vrot.lane.b32.xlu0 %v1637, 96
  %v1640 = vpop.permute.xlu0 %1639
  %s1642 = scalar_lea.vmem [#allocation5], 32
  %1643 = vst.msk [vmem:[%s1642] sm:$0xff] %vm219, %v1640
  %s1644 = scalar_lea.vmem [#allocation4], 40
  %v1645 = vld [vmem:[%s1644] sm:$0xff]
  %1646 = vmatprep.subr.mxu0 0.0
  %1647 = vmatpush1.msra.mxu0 %v45
  %1648 = vmatprep.subr.mxu0 0.0
  %1649 = vmatpush1.msra.mxu0 %v46
  %1650 = vmatprep.subr.mxu0 0.0
  %1651 = vmatpush1.msra.mxu0 %v47
  %1652 = vmatprep.subr.mxu0 0.0
  %1653 = vmatpush1.msra.mxu0 %v48
  %1654 = vmatprep.subr.mxu0 0.0
  %1655 = vmatpush1.msra.mxu0 0.0
  %1656 = vmatprep.subr.mxu0 0.0
  %1657 = vmatpush1.msra.mxu0 0.0
  %1658 = vmatprep.subr.mxu0 0.0
  %1659 = vmatpush1.msra.mxu0 0.0
  %1660 = vmatprep.subr.mxu0 0.0
  %1661 = vmatpush1.msra.mxu0 0.0
  %1662 = vmatprep.subr.mxu0 0.0
  %1663 = vmatpush1.msra.mxu0 0.0
  %1664 = vmatprep.subr.mxu0 0.0
  %1665 = vmatpush1.msra.mxu0 0.0
  %1666 = vmatprep.subr.mxu0 0.0
  %1667 = vmatpush1.msra.mxu0 0.0
  %1668 = vmatprep.subr.mxu0 0.0
  %1669 = vmatpush1.msra.mxu0 0.0
  %1670 = vmatprep.subr.mxu0 0.0
  %1671 = vmatpush1.msra.mxu0 0.0
  %1672 = vmatprep.subr.mxu0 0.0
  %1673 = vmatpush1.msra.mxu0 0.0
  %1674 = vmatprep.subr.mxu0 0.0
  %1675 = vmatpush1.msra.mxu0 0.0
  %1676 = vmatprep.subr.mxu0 0.0
  %1677 = vmatpush1.msra.mxu0 0.0
  %1678 = vmatprep.subr.mxu0 0.0
  %1679 = vmatpush1.msra.mxu0 0.0
  %1680 = vmatprep.subr.mxu0 0.0
  %1681 = vmatpush1.msra.mxu0 0.0
  %1682 = vmatprep.subr.mxu0 0.0
  %1683 = vmatpush1.msra.mxu0 0.0
  %1684 = vmatprep.subr.mxu0 0.0
  %1685 = vmatpush1.msra.mxu0 0.0
  %1686 = vmatprep.subr.mxu0 0.0
  %1687 = vmatpush1.msra.mxu0 0.0
  %1688 = vmatprep.subr.mxu0 0.0
  %1689 = vmatpush1.msra.mxu0 0.0
  %1690 = vmatprep.subr.mxu0 0.0
  %1691 = vmatpush1.msra.mxu0 0.0
  %1692 = vmatprep.subr.mxu0 0.0
  %1693 = vmatpush1.msra.mxu0 0.0
  %1694 = vmatprep.subr.mxu0 0.0
  %1695 = vmatpush1.msra.mxu0 0.0
  %1696 = vmatprep.subr.mxu0 0.0
  %1697 = vmatpush1.msra.mxu0 0.0
  %1698 = vmatprep.subr.mxu0 0.0
  %1699 = vmatpush1.msra.mxu0 0.0
  %1700 = vmatprep.subr.mxu0 0.0
  %1701 = vmatpush1.msra.mxu0 0.0
  %1702 = vmatprep.subr.mxu0 0.0
  %1703 = vmatpush1.msra.mxu0 0.0
  %1704 = vmatprep.subr.mxu0 0.0
  %1705 = vmatpush1.msra.mxu0 0.0
  %1706 = vmatprep.subr.mxu0 0.0
  %1707 = vmatpush1.msra.mxu0 0.0
  %1708 = vmatprep.subr.mxu0 0.0
  %1709 = vmatpush1.msra.mxu0 0.0
  %1710 = vmatprep.mubr.f32.mxu0 0.0
  %1711 = vmatmul.mubr.f32.gmra.mrb[0].mxu0 %v1467
  %v1712 = vpop.f32.mrb[0].mxu0
  %v1713 = vadd.f32 0.0, %v1712
  %v1714 = vpop.f32.mrb[0].mxu0
  %1715 = vdwg.mxu0
  %v1716 = vadd.f32 %v1645, %v1713
  %v1717 = vxor.u32 %v1716, 2147483648
  %v1718 = vmul.f32 %v1717, 1.442695
  %v1719 = vpow.pop %v1718
  %v1720 = vadd.f32 %v1719, 1.0
  %v1721 = vrcp.pop %v1720
  %v1722 = vmul.f32 1.0, %v1721
  %v1723 = vadd.f32 %v1713, %v306
  %1725 = vrot.lane.b32.xlu0 %v1723, 64
  %v1726 = vpop.permute.xlu0 %1725
  %v1728 = vmul.f32 %v1722, %v1726
  %1730 = vrot.lane.b32.xlu0 %v1728, 64
  %v1731 = vpop.permute.xlu0 %1730
  %v1733 = vadd.f32 %v1645, %v1731
  %v1734 = vtanh.pop %v1733
  %v1735 = vsub.f32 1.0, %v1722
  %1737 = vrot.lane.b32.xlu0 %v1734, 96
  %v1738 = vpop.permute.xlu0 %1737
  %v1740 = vmul.f32 %v1735, %v1738
  %v1741 = vmul.f32 %v1722, %v1463
  %v1742 = vadd.f32 %v1740, %v1741
  %1744 = vrot.lane.b32.xlu0 %v1742, 96
  %v1745 = vpop.permute.xlu0 %1744
  %v1746 = vsel %vm219, %v1745, 0
  %1748 = vmatprep.subr.mxu0 0.0
  %1749 = vmatpush1.msra.mxu0 %v49
  %1750 = vmatprep.subr.mxu0 0.0
  %1751 = vmatpush1.msra.mxu0 %v50
  %1752 = vmatprep.subr.mxu0 0.0
  %1753 = vmatpush1.msra.mxu0 %v51
  %1754 = vmatprep.subr.mxu0 0.0
  %1755 = vmatpush1.msra.mxu0 %v52
  %1756 = vmatprep.subr.mxu0 0.0
  %1757 = vmatpush1.msra.mxu0 0.0
  %1758 = vmatprep.subr.mxu0 0.0
  %1759 = vmatpush1.msra.mxu0 0.0
  %1760 = vmatprep.subr.mxu0 0.0
  %1761 = vmatpush1.msra.mxu0 0.0
  %1762 = vmatprep.subr.mxu0 0.0
  %1763 = vmatpush1.msra.mxu0 0.0
  %1764 = vmatprep.subr.mxu0 0.0
  %1765 = vmatpush1.msra.mxu0 0.0
  %1766 = vmatprep.subr.mxu0 0.0
  %1767 = vmatpush1.msra.mxu0 0.0
  %1768 = vmatprep.subr.mxu0 0.0
  %1769 = vmatpush1.msra.mxu0 0.0
  %1770 = vmatprep.subr.mxu0 0.0
  %1771 = vmatpush1.msra.mxu0 0.0
  %1772 = vmatprep.subr.mxu0 0.0
  %1773 = vmatpush1.msra.mxu0 0.0
  %1774 = vmatprep.subr.mxu0 0.0
  %1775 = vmatpush1.msra.mxu0 0.0
  %1776 = vmatprep.subr.mxu0 0.0
  %1777 = vmatpush1.msra.mxu0 0.0
  %1778 = vmatprep.subr.mxu0 0.0
  %1779 = vmatpush1.msra.mxu0 0.0
  %1780 = vmatprep.subr.mxu0 0.0
  %1781 = vmatpush1.msra.mxu0 0.0
  %1782 = vmatprep.subr.mxu0 0.0
  %1783 = vmatpush1.msra.mxu0 0.0
  %1784 = vmatprep.subr.mxu0 0.0
  %1785 = vmatpush1.msra.mxu0 0.0
  %1786 = vmatprep.subr.mxu0 0.0
  %1787 = vmatpush1.msra.mxu0 0.0
  %1788 = vmatprep.subr.mxu0 0.0
  %1789 = vmatpush1.msra.mxu0 0.0
  %1790 = vmatprep.subr.mxu0 0.0
  %1791 = vmatpush1.msra.mxu0 0.0
  %1792 = vmatprep.subr.mxu0 0.0
  %1793 = vmatpush1.msra.mxu0 0.0
  %1794 = vmatprep.subr.mxu0 0.0
  %1795 = vmatpush1.msra.mxu0 0.0
  %1796 = vmatprep.subr.mxu0 0.0
  %1797 = vmatpush1.msra.mxu0 0.0
  %1798 = vmatprep.subr.mxu0 0.0
  %1799 = vmatpush1.msra.mxu0 0.0
  %1800 = vmatprep.subr.mxu0 0.0
  %1801 = vmatpush1.msra.mxu0 0.0
  %1802 = vmatprep.subr.mxu0 0.0
  %1803 = vmatpush1.msra.mxu0 0.0
  %1804 = vmatprep.subr.mxu0 0.0
  %1805 = vmatpush1.msra.mxu0 0.0
  %1806 = vmatprep.subr.mxu0 0.0
  %1807 = vmatpush1.msra.mxu0 0.0
  %1808 = vmatprep.subr.mxu0 0.0
  %1809 = vmatpush1.msra.mxu0 0.0
  %1810 = vmatprep.subr.mxu0 0.0
  %1811 = vmatpush1.msra.mxu0 0.0
  %1812 = vmatprep.mubr.f32.mxu0 0.0
  %1813 = vmatmul.mubr.f32.gmra.mrb[0].mxu0 %v1746
  %v1814 = vpop.f32.mrb[0].mxu0
  %v1815 = vadd.f32 %v335, %v1814
  %v1816 = vpop.f32.mrb[0].mxu0
  %1817 = vdwg.mxu0
  %v1818 = vsel %vm219, %v1640, 0
  %1820 = vmatprep.subr.mxu0 0.0
  %1821 = vmatpush1.msra.mxu0 %v53
  %1822 = vmatprep.subr.mxu0 0.0
  %1823 = vmatpush1.msra.mxu0 %v54
  %1824 = vmatprep.subr.mxu0 0.0
  %1825 = vmatpush1.msra.mxu0 %v55
  %1826 = vmatprep.subr.mxu0 0.0
  %1827 = vmatpush1.msra.mxu0 %v56
  %1828 = vmatprep.subr.mxu0 0.0
  %1829 = vmatpush1.msra.mxu0 0.0
  %1830 = vmatprep.subr.mxu0 0.0
  %1831 = vmatpush1.msra.mxu0 0.0
  %1832 = vmatprep.subr.mxu0 0.0
  %1833 = vmatpush1.msra.mxu0 0.0
  %1834 = vmatprep.subr.mxu0 0.0
  %1835 = vmatpush1.msra.mxu0 0.0
  %1836 = vmatprep.subr.mxu0 0.0
  %1837 = vmatpush1.msra.mxu0 0.0
  %1838 = vmatprep.subr.mxu0 0.0
  %1839 = vmatpush1.msra.mxu0 0.0
  %1840 = vmatprep.subr.mxu0 0.0
  %1841 = vmatpush1.msra.mxu0 0.0
  %1842 = vmatprep.subr.mxu0 0.0
  %1843 = vmatpush1.msra.mxu0 0.0
  %1844 = vmatprep.subr.mxu0 0.0
  %1845 = vmatpush1.msra.mxu0 0.0
  %1846 = vmatprep.subr.mxu0 0.0
  %1847 = vmatpush1.msra.mxu0 0.0
  %1848 = vmatprep.subr.mxu0 0.0
  %1849 = vmatpush1.msra.mxu0 0.0
  %1850 = vmatprep.subr.mxu0 0.0
  %1851 = vmatpush1.msra.mxu0 0.0
  %1852 = vmatprep.subr.mxu0 0.0
  %1853 = vmatpush1.msra.mxu0 0.0
  %1854 = vmatprep.subr.mxu0 0.0
  %1855 = vmatpush1.msra.mxu0 0.0
  %1856 = vmatprep.subr.mxu0 0.0
  %1857 = vmatpush1.msra.mxu0 0.0
  %1858 = vmatprep.subr.mxu0 0.0
  %1859 = vmatpush1.msra.mxu0 0.0
  %1860 = vmatprep.subr.mxu0 0.0
  %1861 = vmatpush1.msra.mxu0 0.0
  %1862 = vmatprep.subr.mxu0 0.0
  %1863 = vmatpush1.msra.mxu0 0.0
  %1864 = vmatprep.subr.mxu0 0.0
  %1865 = vmatpush1.msra.mxu0 0.0
  %1866 = vmatprep.subr.mxu0 0.0
  %1867 = vmatpush1.msra.mxu0 0.0
  %1868 = vmatprep.subr.mxu0 0.0
  %1869 = vmatpush1.msra.mxu0 0.0
  %1870 = vmatprep.subr.mxu0 0.0
  %1871 = vmatpush1.msra.mxu0 0.0
  %1872 = vmatprep.subr.mxu0 0.0
  %1873 = vmatpush1.msra.mxu0 0.0
  %1874 = vmatprep.subr.mxu0 0.0
  %1875 = vmatpush1.msra.mxu0 0.0
  %1876 = vmatprep.subr.mxu0 0.0
  %1877 = vmatpush1.msra.mxu0 0.0
  %1878 = vmatprep.subr.mxu0 0.0
  %1879 = vmatpush1.msra.mxu0 0.0
  %1880 = vmatprep.subr.mxu0 0.0
  %1881 = vmatpush1.msra.mxu0 0.0
  %1882 = vmatprep.subr.mxu0 0.0
  %1883 = vmatpush1.msra.mxu0 0.0
  %1884 = vmatprep.mubr.f32.mxu0 0.0
  %1885 = vmatmul.mubr.f32.gmra.mrb[0].mxu0 %v1818
  %v1886 = vpop.f32.mrb[0].mxu0
  %v1887 = vadd.f32 0.0, %v1886
  %v1888 = vpop.f32.mrb[0].mxu0
  %1889 = vdwg.mxu0
  %v1890 = vadd.f32 %v1815, %v1887
  %v1891 = vxor.u32 %v1890, 2147483648
  %v1892 = vmul.f32 %v1891, 1.442695
  %v1893 = vpow.pop %v1892
  %v1894 = vadd.f32 %v1893, 1.0
  %v1895 = vrcp.pop %v1894
  %v1896 = vmul.f32 1.0, %v1895
  %v1897 = vadd.f32 %v1887, %v498
  %1899 = vrot.lane.b32.xlu0 %v1897, 64
  %v1900 = vpop.permute.xlu0 %1899
  %v1902 = vmul.f32 %v1896, %v1900
  %1904 = vrot.lane.b32.xlu0 %v1902, 64
  %v1905 = vpop.permute.xlu0 %1904
  %v1907 = vadd.f32 %v1815, %v1905
  %v1908 = vtanh.pop %v1907
  %v1909 = vsub.f32 1.0, %v1896
  %1911 = vrot.lane.b32.xlu0 %v1908, 96
  %v1912 = vpop.permute.xlu0 %1911
  %v1914 = vmul.f32 %v1909, %v1912
  %v1915 = vmul.f32 %v1896, %v1637
  %v1916 = vadd.f32 %v1914, %v1915
  %1918 = vrot.lane.b32.xlu0 %v1916, 96
  %v1919 = vpop.permute.xlu0 %1918
  %s1921 = scalar_lea.vmem [#allocation5], 40
  %1922 = vst.msk [vmem:[%s1921] sm:$0xff] %vm219, %v1919
  %s1923 = scalar_lea.vmem [#allocation4], 48
  %v1924 = vld [vmem:[%s1923] sm:$0xff]
  %1925 = vmatprep.subr.mxu0 0.0
  %1926 = vmatpush1.msra.mxu0 %v45
  %1927 = vmatprep.subr.mxu0 0.0
  %1928 = vmatpush1.msra.mxu0 %v46
  %1929 = vmatprep.subr.mxu0 0.0
  %1930 = vmatpush1.msra.mxu0 %v47
  %1931 = vmatprep.subr.mxu0 0.0
  %1932 = vmatpush1.msra.mxu0 %v48
  %1933 = vmatprep.subr.mxu0 0.0
  %1934 = vmatpush1.msra.mxu0 0.0
  %1935 = vmatprep.subr.mxu0 0.0
  %1936 = vmatpush1.msra.mxu0 0.0
  %1937 = vmatprep.subr.mxu0 0.0
  %1938 = vmatpush1.msra.mxu0 0.0
  %1939 = vmatprep.subr.mxu0 0.0
  %1940 = vmatpush1.msra.mxu0 0.0
  %1941 = vmatprep.subr.mxu0 0.0
  %1942 = vmatpush1.msra.mxu0 0.0
  %1943 = vmatprep.subr.mxu0 0.0
  %1944 = vmatpush1.msra.mxu0 0.0
  %1945 = vmatprep.subr.mxu0 0.0
  %1946 = vmatpush1.msra.mxu0 0.0
  %1947 = vmatprep.subr.mxu0 0.0
  %1948 = vmatpush1.msra.mxu0 0.0
  %1949 = vmatprep.subr.mxu0 0.0
  %1950 = vmatpush1.msra.mxu0 0.0
  %1951 = vmatprep.subr.mxu0 0.0
  %1952 = vmatpush1.msra.mxu0 0.0
  %1953 = vmatprep.subr.mxu0 0.0
  %1954 = vmatpush1.msra.mxu0 0.0
  %1955 = vmatprep.subr.mxu0 0.0
  %1956 = vmatpush1.msra.mxu0 0.0
  %1957 = vmatprep.subr.mxu0 0.0
  %1958 = vmatpush1.msra.mxu0 0.0
  %1959 = vmatprep.subr.mxu0 0.0
  %1960 = vmatpush1.msra.mxu0 0.0
  %1961 = vmatprep.subr.mxu0 0.0
  %1962 = vmatpush1.msra.mxu0 0.0
  %1963 = vmatprep.subr.mxu0 0.0
  %1964 = vmatpush1.msra.mxu0 0.0
  %1965 = vmatprep.subr.mxu0 0.0
  %1966 = vmatpush1.msra.mxu0 0.0
  %1967 = vmatprep.subr.mxu0 0.0
  %1968 = vmatpush1.msra.mxu0 0.0
  %1969 = vmatprep.subr.mxu0 0.0
  %1970 = vmatpush1.msra.mxu0 0.0
  %1971 = vmatprep.subr.mxu0 0.0
  %1972 = vmatpush1.msra.mxu0 0.0
  %1973 = vmatprep.subr.mxu0 0.0
  %1974 = vmatpush1.msra.mxu0 0.0
  %1975 = vmatprep.subr.mxu0 0.0
  %1976 = vmatpush1.msra.mxu0 0.0
  %1977 = vmatprep.subr.mxu0 0.0
  %1978 = vmatpush1.msra.mxu0 0.0
  %1979 = vmatprep.subr.mxu0 0.0
  %1980 = vmatpush1.msra.mxu0 0.0
  %1981 = vmatprep.subr.mxu0 0.0
  %1982 = vmatpush1.msra.mxu0 0.0
  %1983 = vmatprep.subr.mxu0 0.0
  %1984 = vmatpush1.msra.mxu0 0.0
  %1985 = vmatprep.subr.mxu0 0.0
  %1986 = vmatpush1.msra.mxu0 0.0
  %1987 = vmatprep.subr.mxu0 0.0
  %1988 = vmatpush1.msra.mxu0 0.0
  %1989 = vmatprep.mubr.f32.mxu0 0.0
  %1990 = vmatmul.mubr.f32.gmra.mrb[0].mxu0 %v1746
  %v1991 = vpop.f32.mrb[0].mxu0
  %v1992 = vadd.f32 0.0, %v1991
  %v1993 = vpop.f32.mrb[0].mxu0
  %1994 = vdwg.mxu0
  %v1995 = vadd.f32 %v1924, %v1992
  %v1996 = vxor.u32 %v1995, 2147483648
  %v1997 = vmul.f32 %v1996, 1.442695
  %v1998 = vpow.pop %v1997
  %v1999 = vadd.f32 %v1998, 1.0
  %v2000 = vrcp.pop %v1999
  %v2001 = vmul.f32 1.0, %v2000
  %v2002 = vadd.f32 %v1992, %v306
  %2004 = vrot.lane.b32.xlu0 %v2002, 64
  %v2005 = vpop.permute.xlu0 %2004
  %v2007 = vmul.f32 %v2001, %v2005
  %2009 = vrot.lane.b32.xlu0 %v2007, 64
  %v2010 = vpop.permute.xlu0 %2009
  %v2012 = vadd.f32 %v1924, %v2010
  %v2013 = vtanh.pop %v2012
  %v2014 = vsub.f32 1.0, %v2001
  %2016 = vrot.lane.b32.xlu0 %v2013, 96
  %v2017 = vpop.permute.xlu0 %2016
  %v2019 = vmul.f32 %v2014, %v2017
  %v2020 = vmul.f32 %v2001, %v1742
  %v2021 = vadd.f32 %v2019, %v2020
  %2023 = vrot.lane.b32.xlu0 %v2021, 96
  %v2024 = vpop.permute.xlu0 %2023
  %v2025 = vsel %vm219, %v2024, 0
  %2027 = vmatprep.subr.mxu0 0.0
  %2028 = vmatpush1.msra.mxu0 %v49
  %2029 = vmatprep.subr.mxu0 0.0
  %2030 = vmatpush1.msra.mxu0 %v50
  %2031 = vmatprep.subr.mxu0 0.0
  %2032 = vmatpush1.msra.mxu0 %v51
  %2033 = vmatprep.subr.mxu0 0.0
  %2034 = vmatpush1.msra.mxu0 %v52
  %2035 = vmatprep.subr.mxu0 0.0
  %2036 = vmatpush1.msra.mxu0 0.0
  %2037 = vmatprep.subr.mxu0 0.0
  %2038 = vmatpush1.msra.mxu0 0.0
  %2039 = vmatprep.subr.mxu0 0.0
  %2040 = vmatpush1.msra.mxu0 0.0
  %2041 = vmatprep.subr.mxu0 0.0
  %2042 = vmatpush1.msra.mxu0 0.0
  %2043 = vmatprep.subr.mxu0 0.0
  %2044 = vmatpush1.msra.mxu0 0.0
  %2045 = vmatprep.subr.mxu0 0.0
  %2046 = vmatpush1.msra.mxu0 0.0
  %2047 = vmatprep.subr.mxu0 0.0
  %2048 = vmatpush1.msra.mxu0 0.0
  %2049 = vmatprep.subr.mxu0 0.0
  %2050 = vmatpush1.msra.mxu0 0.0
  %2051 = vmatprep.subr.mxu0 0.0
  %2052 = vmatpush1.msra.mxu0 0.0
  %2053 = vmatprep.subr.mxu0 0.0
  %2054 = vmatpush1.msra.mxu0 0.0
  %2055 = vmatprep.subr.mxu0 0.0
  %2056 = vmatpush1.msra.mxu0 0.0
  %2057 = vmatprep.subr.mxu0 0.0
  %2058 = vmatpush1.msra.mxu0 0.0
  %2059 = vmatprep.subr.mxu0 0.0
  %2060 = vmatpush1.msra.mxu0 0.0
  %2061 = vmatprep.subr.mxu0 0.0
  %2062 = vmatpush1.msra.mxu0 0.0
  %2063 = vmatprep.subr.mxu0 0.0
  %2064 = vmatpush1.msra.mxu0 0.0
  %2065 = vmatprep.subr.mxu0 0.0
  %2066 = vmatpush1.msra.mxu0 0.0
  %2067 = vmatprep.subr.mxu0 0.0
  %2068 = vmatpush1.msra.mxu0 0.0
  %2069 = vmatprep.subr.mxu0 0.0
  %2070 = vmatpush1.msra.mxu0 0.0
  %2071 = vmatprep.subr.mxu0 0.0
  %2072 = vmatpush1.msra.mxu0 0.0
  %2073 = vmatprep.subr.mxu0 0.0
  %2074 = vmatpush1.msra.mxu0 0.0
  %2075 = vmatprep.subr.mxu0 0.0
  %2076 = vmatpush1.msra.mxu0 0.0
  %2077 = vmatprep.subr.mxu0 0.0
  %2078 = vmatpush1.msra.mxu0 0.0
  %2079 = vmatprep.subr.mxu0 0.0
  %2080 = vmatpush1.msra.mxu0 0.0
  %2081 = vmatprep.subr.mxu0 0.0
  %2082 = vmatpush1.msra.mxu0 0.0
  %2083 = vmatprep.subr.mxu0 0.0
  %2084 = vmatpush1.msra.mxu0 0.0
  %2085 = vmatprep.subr.mxu0 0.0
  %2086 = vmatpush1.msra.mxu0 0.0
  %2087 = vmatprep.subr.mxu0 0.0
  %2088 = vmatpush1.msra.mxu0 0.0
  %2089 = vmatprep.subr.mxu0 0.0
  %2090 = vmatpush1.msra.mxu0 0.0
  %2091 = vmatprep.mubr.f32.mxu0 0.0
  %2092 = vmatmul.mubr.f32.gmra.mrb[0].mxu0 %v2025
  %v2093 = vpop.f32.mrb[0].mxu0
  %v2094 = vadd.f32 %v335, %v2093
  %v2095 = vpop.f32.mrb[0].mxu0
  %2096 = vdwg.mxu0
  %v2097 = vsel %vm219, %v1919, 0
  %2099 = vmatprep.subr.mxu0 0.0
  %2100 = vmatpush1.msra.mxu0 %v53
  %2101 = vmatprep.subr.mxu0 0.0
  %2102 = vmatpush1.msra.mxu0 %v54
  %2103 = vmatprep.subr.mxu0 0.0
  %2104 = vmatpush1.msra.mxu0 %v55
  %2105 = vmatprep.subr.mxu0 0.0
  %2106 = vmatpush1.msra.mxu0 %v56
  %2107 = vmatprep.subr.mxu0 0.0
  %2108 = vmatpush1.msra.mxu0 0.0
  %2109 = vmatprep.subr.mxu0 0.0
  %2110 = vmatpush1.msra.mxu0 0.0
  %2111 = vmatprep.subr.mxu0 0.0
  %2112 = vmatpush1.msra.mxu0 0.0
  %2113 = vmatprep.subr.mxu0 0.0
  %2114 = vmatpush1.msra.mxu0 0.0
  %2115 = vmatprep.subr.mxu0 0.0
  %2116 = vmatpush1.msra.mxu0 0.0
  %2117 = vmatprep.subr.mxu0 0.0
  %2118 = vmatpush1.msra.mxu0 0.0
  %2119 = vmatprep.subr.mxu0 0.0
  %2120 = vmatpush1.msra.mxu0 0.0
  %2121 = vmatprep.subr.mxu0 0.0
  %2122 = vmatpush1.msra.mxu0 0.0
  %2123 = vmatprep.subr.mxu0 0.0
  %2124 = vmatpush1.msra.mxu0 0.0
  %2125 = vmatprep.subr.mxu0 0.0
  %2126 = vmatpush1.msra.mxu0 0.0
  %2127 = vmatprep.subr.mxu0 0.0
  %2128 = vmatpush1.msra.mxu0 0.0
  %2129 = vmatprep.subr.mxu0 0.0
  %2130 = vmatpush1.msra.mxu0 0.0
  %2131 = vmatprep.subr.mxu0 0.0
  %2132 = vmatpush1.msra.mxu0 0.0
  %2133 = vmatprep.subr.mxu0 0.0
  %2134 = vmatpush1.msra.mxu0 0.0
  %2135 = vmatprep.subr.mxu0 0.0
  %2136 = vmatpush1.msra.mxu0 0.0
  %2137 = vmatprep.subr.mxu0 0.0
  %2138 = vmatpush1.msra.mxu0 0.0
  %2139 = vmatprep.subr.mxu0 0.0
  %2140 = vmatpush1.msra.mxu0 0.0
  %2141 = vmatprep.subr.mxu0 0.0
  %2142 = vmatpush1.msra.mxu0 0.0
  %2143 = vmatprep.subr.mxu0 0.0
  %2144 = vmatpush1.msra.mxu0 0.0
  %2145 = vmatprep.subr.mxu0 0.0
  %2146 = vmatpush1.msra.mxu0 0.0
  %2147 = vmatprep.subr.mxu0 0.0
  %2148 = vmatpush1.msra.mxu0 0.0
  %2149 = vmatprep.subr.mxu0 0.0
  %2150 = vmatpush1.msra.mxu0 0.0
  %2151 = vmatprep.subr.mxu0 0.0
  %2152 = vmatpush1.msra.mxu0 0.0
  %2153 = vmatprep.subr.mxu0 0.0
  %2154 = vmatpush1.msra.mxu0 0.0
  %2155 = vmatprep.subr.mxu0 0.0
  %2156 = vmatpush1.msra.mxu0 0.0
  %2157 = vmatprep.subr.mxu0 0.0
  %2158 = vmatpush1.msra.mxu0 0.0
  %2159 = vmatprep.subr.mxu0 0.0
  %2160 = vmatpush1.msra.mxu0 0.0
  %2161 = vmatprep.subr.mxu0 0.0
  %2162 = vmatpush1.msra.mxu0 0.0
  %2163 = vmatprep.mubr.f32.mxu0 0.0
  %2164 = vmatmul.mubr.f32.gmra.mrb[0].mxu0 %v2097
  %v2165 = vpop.f32.mrb[0].mxu0
  %v2166 = vadd.f32 0.0, %v2165
  %v2167 = vpop.f32.mrb[0].mxu0
  %2168 = vdwg.mxu0
  %v2169 = vadd.f32 %v2094, %v2166
  %v2170 = vxor.u32 %v2169, 2147483648
  %v2171 = vmul.f32 %v2170, 1.442695
  %v2172 = vpow.pop %v2171
  %v2173 = vadd.f32 %v2172, 1.0
  %v2174 = vrcp.pop %v2173
  %v2175 = vmul.f32 1.0, %v2174
  %v2176 = vadd.f32 %v2166, %v498
  %2178 = vrot.lane.b32.xlu0 %v2176, 64
  %v2179 = vpop.permute.xlu0 %2178
  %v2181 = vmul.f32 %v2175, %v2179
  %2183 = vrot.lane.b32.xlu0 %v2181, 64
  %v2184 = vpop.permute.xlu0 %2183
  %v2186 = vadd.f32 %v2094, %v2184
  %v2187 = vtanh.pop %v2186
  %v2188 = vsub.f32 1.0, %v2175
  %2190 = vrot.lane.b32.xlu0 %v2187, 96
  %v2191 = vpop.permute.xlu0 %2190
  %v2193 = vmul.f32 %v2188, %v2191
  %v2194 = vmul.f32 %v2175, %v1916
  %v2195 = vadd.f32 %v2193, %v2194
  %2197 = vrot.lane.b32.xlu0 %v2195, 96
  %v2198 = vpop.permute.xlu0 %2197
  %s2200 = scalar_lea.vmem [#allocation5], 48
  %2201 = vst.msk [vmem:[%s2200] sm:$0xff] %vm219, %v2198
  %s2202 = scalar_lea.vmem [#allocation4], 56
  %v2203 = vld [vmem:[%s2202] sm:$0xff]
  %2204 = vmatprep.subr.mxu0 0.0
  %2205 = vmatpush1.msra.mxu0 %v45
  %2206 = vmatprep.subr.mxu0 0.0
  %2207 = vmatpush1.msra.mxu0 %v46
  %2208 = vmatprep.subr.mxu0 0.0
  %2209 = vmatpush1.msra.mxu0 %v47
  %2210 = vmatprep.subr.mxu0 0.0
  %2211 = vmatpush1.msra.mxu0 %v48
  %2212 = vmatprep.subr.mxu0 0.0
  %2213 = vmatpush1.msra.mxu0 0.0
  %2214 = vmatprep.subr.mxu0 0.0
  %2215 = vmatpush1.msra.mxu0 0.0
  %2216 = vmatprep.subr.mxu0 0.0
  %2217 = vmatpush1.msra.mxu0 0.0
  %2218 = vmatprep.subr.mxu0 0.0
  %2219 = vmatpush1.msra.mxu0 0.0
  %2220 = vmatprep.subr.mxu0 0.0
  %2221 = vmatpush1.msra.mxu0 0.0
  %2222 = vmatprep.subr.mxu0 0.0
  %2223 = vmatpush1.msra.mxu0 0.0
  %2224 = vmatprep.subr.mxu0 0.0
  %2225 = vmatpush1.msra.mxu0 0.0
  %2226 = vmatprep.subr.mxu0 0.0
  %2227 = vmatpush1.msra.mxu0 0.0
  %2228 = vmatprep.subr.mxu0 0.0
  %2229 = vmatpush1.msra.mxu0 0.0
  %2230 = vmatprep.subr.mxu0 0.0
  %2231 = vmatpush1.msra.mxu0 0.0
  %2232 = vmatprep.subr.mxu0 0.0
  %2233 = vmatpush1.msra.mxu0 0.0
  %2234 = vmatprep.subr.mxu0 0.0
  %2235 = vmatpush1.msra.mxu0 0.0
  %2236 = vmatprep.subr.mxu0 0.0
  %2237 = vmatpush1.msra.mxu0 0.0
  %2238 = vmatprep.subr.mxu0 0.0
  %2239 = vmatpush1.msra.mxu0 0.0
  %2240 = vmatprep.subr.mxu0 0.0
  %2241 = vmatpush1.msra.mxu0 0.0
  %2242 = vmatprep.subr.mxu0 0.0
  %2243 = vmatpush1.msra.mxu0 0.0
  %2244 = vmatprep.subr.mxu0 0.0
  %2245 = vmatpush1.msra.mxu0 0.0
  %2246 = vmatprep.subr.mxu0 0.0
  %2247 = vmatpush1.msra.mxu0 0.0
  %2248 = vmatprep.subr.mxu0 0.0
  %2249 = vmatpush1.msra.mxu0 0.0
  %2250 = vmatprep.subr.mxu0 0.0
  %2251 = vmatpush1.msra.mxu0 0.0
  %2252 = vmatprep.subr.mxu0 0.0
  %2253 = vmatpush1.msra.mxu0 0.0
  %2254 = vmatprep.subr.mxu0 0.0
  %2255 = vmatpush1.msra.mxu0 0.0
  %2256 = vmatprep.subr.mxu0 0.0
  %2257 = vmatpush1.msra.mxu0 0.0
  %2258 = vmatprep.subr.mxu0 0.0
  %2259 = vmatpush1.msra.mxu0 0.0
  %2260 = vmatprep.subr.mxu0 0.0
  %2261 = vmatpush1.msra.mxu0 0.0
  %2262 = vmatprep.subr.mxu0 0.0
  %2263 = vmatpush1.msra.mxu0 0.0
  %2264 = vmatprep.subr.mxu0 0.0
  %2265 = vmatpush1.msra.mxu0 0.0
  %2266 = vmatprep.subr.mxu0 0.0
  %2267 = vmatpush1.msra.mxu0 0.0
  %2268 = vmatprep.mubr.f32.mxu0 0.0
  %2269 = vmatmul.mubr.f32.gmra.mrb[0].mxu0 %v2025
  %v2270 = vpop.f32.mrb[0].mxu0
  %v2271 = vadd.f32 0.0, %v2270
  %v2272 = vpop.f32.mrb[0].mxu0
  %2273 = vdwg.mxu0
  %v2274 = vadd.f32 %v2203, %v2271
  %v2275 = vxor.u32 %v2274, 2147483648
  %v2276 = vmul.f32 %v2275, 1.442695
  %v2277 = vpow.pop %v2276
  %v2278 = vadd.f32 %v2277, 1.0
  %v2279 = vrcp.pop %v2278
  %v2280 = vmul.f32 1.0, %v2279
  %v2281 = vadd.f32 %v2271, %v306
  %2283 = vrot.lane.b32.xlu0 %v2281, 64
  %v2284 = vpop.permute.xlu0 %2283
  %v2286 = vmul.f32 %v2280, %v2284
  %2288 = vrot.lane.b32.xlu0 %v2286, 64
  %v2289 = vpop.permute.xlu0 %2288
  %v2291 = vadd.f32 %v2203, %v2289
  %v2292 = vtanh.pop %v2291
  %v2293 = vsub.f32 1.0, %v2280
  %2295 = vrot.lane.b32.xlu0 %v2292, 96
  %v2296 = vpop.permute.xlu0 %2295
  %v2298 = vmul.f32 %v2293, %v2296
  %v2299 = vmul.f32 %v2280, %v2021
  %v2300 = vadd.f32 %v2298, %v2299
  %2302 = vrot.lane.b32.xlu0 %v2300, 96
  %v2303 = vpop.permute.xlu0 %2302
  %v2304 = vsel %vm219, %v2303, 0
  %2306 = vmatprep.subr.mxu0 0.0
  %2307 = vmatpush1.msra.mxu0 %v49
  %2308 = vmatprep.subr.mxu0 0.0
  %2309 = vmatpush1.msra.mxu0 %v50
  %2310 = vmatprep.subr.mxu0 0.0
  %2311 = vmatpush1.msra.mxu0 %v51
  %2312 = vmatprep.subr.mxu0 0.0
  %2313 = vmatpush1.msra.mxu0 %v52
  %2314 = vmatprep.subr.mxu0 0.0
  %2315 = vmatpush1.msra.mxu0 0.0
  %2316 = vmatprep.subr.mxu0 0.0
  %2317 = vmatpush1.msra.mxu0 0.0
  %2318 = vmatprep.subr.mxu0 0.0
  %2319 = vmatpush1.msra.mxu0 0.0
  %2320 = vmatprep.subr.mxu0 0.0
  %2321 = vmatpush1.msra.mxu0 0.0
  %2322 = vmatprep.subr.mxu0 0.0
  %2323 = vmatpush1.msra.mxu0 0.0
  %2324 = vmatprep.subr.mxu0 0.0
  %2325 = vmatpush1.msra.mxu0 0.0
  %2326 = vmatprep.subr.mxu0 0.0
  %2327 = vmatpush1.msra.mxu0 0.0
  %2328 = vmatprep.subr.mxu0 0.0
  %2329 = vmatpush1.msra.mxu0 0.0
  %2330 = vmatprep.subr.mxu0 0.0
  %2331 = vmatpush1.msra.mxu0 0.0
  %2332 = vmatprep.subr.mxu0 0.0
  %2333 = vmatpush1.msra.mxu0 0.0
  %2334 = vmatprep.subr.mxu0 0.0
  %2335 = vmatpush1.msra.mxu0 0.0
  %2336 = vmatprep.subr.mxu0 0.0
  %2337 = vmatpush1.msra.mxu0 0.0
  %2338 = vmatprep.subr.mxu0 0.0
  %2339 = vmatpush1.msra.mxu0 0.0
  %2340 = vmatprep.subr.mxu0 0.0
  %2341 = vmatpush1.msra.mxu0 0.0
  %2342 = vmatprep.subr.mxu0 0.0
  %2343 = vmatpush1.msra.mxu0 0.0
  %2344 = vmatprep.subr.mxu0 0.0
  %2345 = vmatpush1.msra.mxu0 0.0
  %2346 = vmatprep.subr.mxu0 0.0
  %2347 = vmatpush1.msra.mxu0 0.0
  %2348 = vmatprep.subr.mxu0 0.0
  %2349 = vmatpush1.msra.mxu0 0.0
  %2350 = vmatprep.subr.mxu0 0.0
  %2351 = vmatpush1.msra.mxu0 0.0
  %2352 = vmatprep.subr.mxu0 0.0
  %2353 = vmatpush1.msra.mxu0 0.0
  %2354 = vmatprep.subr.mxu0 0.0
  %2355 = vmatpush1.msra.mxu0 0.0
  %2356 = vmatprep.subr.mxu0 0.0
  %2357 = vmatpush1.msra.mxu0 0.0
  %2358 = vmatprep.subr.mxu0 0.0
  %2359 = vmatpush1.msra.mxu0 0.0
  %2360 = vmatprep.subr.mxu0 0.0
  %2361 = vmatpush1.msra.mxu0 0.0
  %2362 = vmatprep.subr.mxu0 0.0
  %2363 = vmatpush1.msra.mxu0 0.0
  %2364 = vmatprep.subr.mxu0 0.0
  %2365 = vmatpush1.msra.mxu0 0.0
  %2366 = vmatprep.subr.mxu0 0.0
  %2367 = vmatpush1.msra.mxu0 0.0
  %2368 = vmatprep.subr.mxu0 0.0
  %2369 = vmatpush1.msra.mxu0 0.0
  %2370 = vmatprep.mubr.f32.mxu0 0.0
  %2371 = vmatmul.mubr.f32.gmra.mrb[0].mxu0 %v2304
  %v2372 = vpop.f32.mrb[0].mxu0
  %v2373 = vadd.f32 %v335, %v2372
  %v2374 = vpop.f32.mrb[0].mxu0
  %2375 = vdwg.mxu0
  %v2376 = vsel %vm219, %v2198, 0
  %2378 = vmatprep.subr.mxu0 0.0
  %2379 = vmatpush1.msra.mxu0 %v53
  %2380 = vmatprep.subr.mxu0 0.0
  %2381 = vmatpush1.msra.mxu0 %v54
  %2382 = vmatprep.subr.mxu0 0.0
  %2383 = vmatpush1.msra.mxu0 %v55
  %2384 = vmatprep.subr.mxu0 0.0
  %2385 = vmatpush1.msra.mxu0 %v56
  %2386 = vmatprep.subr.mxu0 0.0
  %2387 = vmatpush1.msra.mxu0 0.0
  %2388 = vmatprep.subr.mxu0 0.0
  %2389 = vmatpush1.msra.mxu0 0.0
  %2390 = vmatprep.subr.mxu0 0.0
  %2391 = vmatpush1.msra.mxu0 0.0
  %2392 = vmatprep.subr.mxu0 0.0
  %2393 = vmatpush1.msra.mxu0 0.0
  %2394 = vmatprep.subr.mxu0 0.0
  %2395 = vmatpush1.msra.mxu0 0.0
  %2396 = vmatprep.subr.mxu0 0.0
  %2397 = vmatpush1.msra.mxu0 0.0
  %2398 = vmatprep.subr.mxu0 0.0
  %2399 = vmatpush1.msra.mxu0 0.0
  %2400 = vmatprep.subr.mxu0 0.0
  %2401 = vmatpush1.msra.mxu0 0.0
  %2402 = vmatprep.subr.mxu0 0.0
  %2403 = vmatpush1.msra.mxu0 0.0
  %2404 = vmatprep.subr.mxu0 0.0
  %2405 = vmatpush1.msra.mxu0 0.0
  %2406 = vmatprep.subr.mxu0 0.0
  %2407 = vmatpush1.msra.mxu0 0.0
  %2408 = vmatprep.subr.mxu0 0.0
  %2409 = vmatpush1.msra.mxu0 0.0
  %2410 = vmatprep.subr.mxu0 0.0
  %2411 = vmatpush1.msra.mxu0 0.0
  %2412 = vmatprep.subr.mxu0 0.0
  %2413 = vmatpush1.msra.mxu0 0.0
  %2414 = vmatprep.subr.mxu0 0.0
  %2415 = vmatpush1.msra.mxu0 0.0
  %2416 = vmatprep.subr.mxu0 0.0
  %2417 = vmatpush1.msra.mxu0 0.0
  %2418 = vmatprep.subr.mxu0 0.0
  %2419 = vmatpush1.msra.mxu0 0.0
  %2420 = vmatprep.subr.mxu0 0.0
  %2421 = vmatpush1.msra.mxu0 0.0
  %2422 = vmatprep.subr.mxu0 0.0
  %2423 = vmatpush1.msra.mxu0 0.0
  %2424 = vmatprep.subr.mxu0 0.0
  %2425 = vmatpush1.msra.mxu0 0.0
  %2426 = vmatprep.subr.mxu0 0.0
  %2427 = vmatpush1.msra.mxu0 0.0
  %2428 = vmatprep.subr.mxu0 0.0
  %2429 = vmatpush1.msra.mxu0 0.0
  %2430 = vmatprep.subr.mxu0 0.0
  %2431 = vmatpush1.msra.mxu0 0.0
  %2432 = vmatprep.subr.mxu0 0.0
  %2433 = vmatpush1.msra.mxu0 0.0
  %2434 = vmatprep.subr.mxu0 0.0
  %2435 = vmatpush1.msra.mxu0 0.0
  %2436 = vmatprep.subr.mxu0 0.0
  %2437 = vmatpush1.msra.mxu0 0.0
  %2438 = vmatprep.subr.mxu0 0.0
  %2439 = vmatpush1.msra.mxu0 0.0
  %2440 = vmatprep.subr.mxu0 0.0
  %2441 = vmatpush1.msra.mxu0 0.0
  %2442 = vmatprep.mubr.f32.mxu0 0.0
  %2443 = vmatmul.mubr.f32.gmra.mrb[0].mxu0 %v2376
  %v2444 = vpop.f32.mrb[0].mxu0
  %v2445 = vadd.f32 0.0, %v2444
  %v2446 = vpop.f32.mrb[0].mxu0
  %2447 = vdwg.mxu0
  %v2448 = vadd.f32 %v2373, %v2445
  %v2449 = vxor.u32 %v2448, 2147483648
  %v2450 = vmul.f32 %v2449, 1.442695
  %v2451 = vpow.pop %v2450
  %v2452 = vadd.f32 %v2451, 1.0
  %v2453 = vrcp.pop %v2452
  %v2454 = vmul.f32 1.0, %v2453
  %v2455 = vadd.f32 %v2445, %v498
  %2457 = vrot.lane.b32.xlu0 %v2455, 64
  %v2458 = vpop.permute.xlu0 %2457
  %v2460 = vmul.f32 %v2454, %v2458
  %2462 = vrot.lane.b32.xlu0 %v2460, 64
  %v2463 = vpop.permute.xlu0 %2462
  %v2465 = vadd.f32 %v2373, %v2463
  %v2466 = vtanh.pop %v2465
  %v2467 = vsub.f32 1.0, %v2454
  %2469 = vrot.lane.b32.xlu0 %v2466, 96
  %v2470 = vpop.permute.xlu0 %2469
  %v2472 = vmul.f32 %v2467, %v2470
  %v2473 = vmul.f32 %v2454, %v2195
  %v2474 = vadd.f32 %v2472, %v2473
  %2476 = vrot.lane.b32.xlu0 %v2474, 96
  %v2477 = vpop.permute.xlu0 %2476
  %s2479 = scalar_lea.vmem [#allocation5], 56
  %2480 = vst.msk [vmem:[%s2479] sm:$0xff] %vm219, %v2477
  %2482 = vst.msk [vmem:[#allocation2] sm:$0xff] %vm219, %v2303
  %2483 = vst.msk [vmem:[#allocation3] sm:$0xff] %vm219, %v2477
  %v2484 = vld [vmem:[#allocation5] sm:$0xff]
  %v2485 = vld [vmem:[#allocation5 + $0x8] sm:$0xff]
  %v2486 = vld [vmem:[#allocation5 + $0x10] sm:$0xff]
  %v2487 = vld [vmem:[#allocation5 + $0x18] sm:$0xff]
  %v2488 = vld [vmem:[#allocation5 + $0x20] sm:$0xff]
  %v2489 = vld [vmem:[#allocation5 + $0x28] sm:$0xff]
  %v2490 = vld [vmem:[#allocation5 + $0x30] sm:$0xff]
  %v2491 = vld [vmem:[#allocation5 + $0x38] sm:$0xff]
  %v2492 = vld [vmem:[%s9] sm:$0xff]
  %v2493 = vld [vmem:[%s9 + $0x8] sm:$0xff]
  %v2494 = vld [vmem:[%s9 + $0x10] sm:$0xff]
  %v2495 = vld [vmem:[%s9 + $0x18] sm:$0xff]
  %v2496 = vld [vmem:[%s10] sm:$0x1]
  %v2498 = vlaneseq
  %v2499 = vshrl.u32 %v2498, 7
  %v2500 = vsub.s32 0, %v2499
  %v2501 = vrot.slane %v2496, %v2500
  %v2504 = vsel %vm219, %v2484, 0
  %v2507 = vsel %vm219, %v2485, 0
  %v2510 = vsel %vm219, %v2486, 0
  %v2513 = vsel %vm219, %v2487, 0
  %v2516 = vsel %vm219, %v2488, 0
  %v2519 = vsel %vm219, %v2489, 0
  %v2522 = vsel %vm219, %v2490, 0
  %v2525 = vsel %vm219, %v2491, 0
  %2527 = vmatprep.subr.mxu0 0.0
  %2528 = vmatpush1.msra.mxu0 %v2492
  %2529 = vmatprep.subr.mxu0 0.0
  %2530 = vmatpush1.msra.mxu0 %v2493
  %2531 = vmatprep.subr.mxu0 0.0
  %2532 = vmatpush1.msra.mxu0 %v2494
  %2533 = vmatprep.subr.mxu0 0.0
  %2534 = vmatpush1.msra.mxu0 %v2495
  %2535 = vmatprep.subr.mxu0 0.0
  %2536 = vmatpush1.msra.mxu0 0.0
  %2537 = vmatprep.subr.mxu0 0.0
  %2538 = vmatpush1.msra.mxu0 0.0
  %2539 = vmatprep.subr.mxu0 0.0
  %2540 = vmatpush1.msra.mxu0 0.0
  %2541 = vmatprep.subr.mxu0 0.0
  %2542 = vmatpush1.msra.mxu0 0.0
  %2543 = vmatprep.subr.mxu0 0.0
  %2544 = vmatpush1.msra.mxu0 0.0
  %2545 = vmatprep.subr.mxu0 0.0
  %2546 = vmatpush1.msra.mxu0 0.0
  %2547 = vmatprep.subr.mxu0 0.0
  %2548 = vmatpush1.msra.mxu0 0.0
  %2549 = vmatprep.subr.mxu0 0.0
  %2550 = vmatpush1.msra.mxu0 0.0
  %2551 = vmatprep.subr.mxu0 0.0
  %2552 = vmatpush1.msra.mxu0 0.0
  %2553 = vmatprep.subr.mxu0 0.0
  %2554 = vmatpush1.msra.mxu0 0.0
  %2555 = vmatprep.subr.mxu0 0.0
  %2556 = vmatpush1.msra.mxu0 0.0
  %2557 = vmatprep.subr.mxu0 0.0
  %2558 = vmatpush1.msra.mxu0 0.0
  %2559 = vmatprep.subr.mxu0 0.0
  %2560 = vmatpush1.msra.mxu0 0.0
  %2561 = vmatprep.subr.mxu0 0.0
  %2562 = vmatpush1.msra.mxu0 0.0
  %2563 = vmatprep.subr.mxu0 0.0
  %2564 = vmatpush1.msra.mxu0 0.0
  %2565 = vmatprep.subr.mxu0 0.0
  %2566 = vmatpush1.msra.mxu0 0.0
  %2567 = vmatprep.subr.mxu0 0.0
  %2568 = vmatpush1.msra.mxu0 0.0
  %2569 = vmatprep.subr.mxu0 0.0
  %2570 = vmatpush1.msra.mxu0 0.0
  %2571 = vmatprep.subr.mxu0 0.0
  %2572 = vmatpush1.msra.mxu0 0.0
  %2573 = vmatprep.subr.mxu0 0.0
  %2574 = vmatpush1.msra.mxu0 0.0
  %2575 = vmatprep.subr.mxu0 0.0
  %2576 = vmatpush1.msra.mxu0 0.0
  %2577 = vmatprep.subr.mxu0 0.0
  %2578 = vmatpush1.msra.mxu0 0.0
  %2579 = vmatprep.subr.mxu0 0.0
  %2580 = vmatpush1.msra.mxu0 0.0
  %2581 = vmatprep.subr.mxu0 0.0
  %2582 = vmatpush1.msra.mxu0 0.0
  %2583 = vmatprep.subr.mxu0 0.0
  %2584 = vmatpush1.msra.mxu0 0.0
  %2585 = vmatprep.subr.mxu0 0.0
  %2586 = vmatpush1.msra.mxu0 0.0
  %2587 = vmatprep.subr.mxu0 0.0
  %2588 = vmatpush1.msra.mxu0 0.0
  %2589 = vmatprep.subr.mxu0 0.0
  %2590 = vmatpush1.msra.mxu0 0.0
  %2591 = vmatprep.mubr.f32.mxu0 0.0
  %2592 = vmatmul.mubr.f32.gmra.mrb[0].mxu0 %v2504
  %v2593 = vpop.f32.mrb[0].mxu0
  %v2594 = vadd.f32 %v2501, %v2593
  %v2595 = vpop.f32.mrb[0].mxu0
  %2596 = vmatprep.mubr.f32.mxu0 0.0
  %2597 = vmatmul.mubr.f32.gmra.mrb[0].mxu0 %v2507
  %v2598 = vpop.f32.mrb[0].mxu0
  %v2599 = vadd.f32 %v2501, %v2598
  %v2600 = vpop.f32.mrb[0].mxu0
  %2601 = vmatprep.mubr.f32.mxu0 0.0
  %2602 = vmatmul.mubr.f32.gmra.mrb[0].mxu0 %v2510
  %v2603 = vpop.f32.mrb[0].mxu0
  %v2604 = vadd.f32 %v2501, %v2603
  %v2605 = vpop.f32.mrb[0].mxu0
  %2606 = vmatprep.mubr.f32.mxu0 0.0
  %2607 = vmatmul.mubr.f32.gmra.mrb[0].mxu0 %v2513
  %v2608 = vpop.f32.mrb[0].mxu0
  %v2609 = vadd.f32 %v2501, %v2608
  %v2610 = vpop.f32.mrb[0].mxu0
  %2611 = vmatprep.mubr.f32.mxu0 0.0
  %2612 = vmatmul.mubr.f32.gmra.mrb[0].mxu0 %v2516
  %v2613 = vpop.f32.mrb[0].mxu0
  %v2614 = vadd.f32 %v2501, %v2613
  %v2615 = vpop.f32.mrb[0].mxu0
  %2616 = vmatprep.mubr.f32.mxu0 0.0
  %2617 = vmatmul.mubr.f32.gmra.mrb[0].mxu0 %v2519
  %v2618 = vpop.f32.mrb[0].mxu0
  %v2619 = vadd.f32 %v2501, %v2618
  %v2620 = vpop.f32.mrb[0].mxu0
  %2621 = vmatprep.mubr.f32.mxu0 0.0
  %2622 = vmatmul.mubr.f32.gmra.mrb[0].mxu0 %v2522
  %v2623 = vpop.f32.mrb[0].mxu0
  %v2624 = vadd.f32 %v2501, %v2623
  %v2625 = vpop.f32.mrb[0].mxu0
  %2626 = vmatprep.mubr.f32.mxu0 0.0
  %2627 = vmatmul.mubr.f32.gmra.mrb[0].mxu0 %v2525
  %v2628 = vpop.f32.mrb[0].mxu0
  %v2629 = vadd.f32 %v2501, %v2628
  %v2630 = vpop.f32.mrb[0].mxu0
  %2631 = vdwg.mxu0
  %v2632 = vtanh.pop %v2594
  %v2633 = vtanh.pop %v2599
  %v2634 = vtanh.pop %v2604
  %v2635 = vtanh.pop %v2609
  %v2636 = vtanh.pop %v2614
  %v2637 = vtanh.pop %v2619
  %v2638 = vtanh.pop %v2624
  %v2639 = vtanh.pop %v2629
  %vm2640 = vcmask 31744
  %2641 = vst.msk [vmem:[%s11] sm:$0xff] %vm2640, %v2632
  %2642 = vst.msk [vmem:[%s11 + $0x8] sm:$0xff] %vm2640, %v2633
  %2643 = vst.msk [vmem:[%s11 + $0x10] sm:$0xff] %vm2640, %v2634
  %2644 = vst.msk [vmem:[%s11 + $0x18] sm:$0xff] %vm2640, %v2635
  %2645 = vst.msk [vmem:[%s11 + $0x20] sm:$0xff] %vm2640, %v2636
  %2646 = vst.msk [vmem:[%s11 + $0x28] sm:$0xff] %vm2640, %v2637
  %2647 = vst.msk [vmem:[%s11 + $0x30] sm:$0xff] %vm2640, %v2638
  %2648 = vst.msk [vmem:[%s11 + $0x38] sm:$0xff] %vm2640, %v2639
  // Predicated region
  $region50: #{subband_sequence_wrapper_forward.1} parent=0 // pred_check
    _
  $region51: #{subband_sequence_wrapper_forward.1} parent=0 // pred_check_branch
    %2650 = sbr.rel (0) target = $region53
  $region52: #{subband_sequence_wrapper_forward.1} parent=0 // pred_region
    _
  $region53: #{subband_sequence_wrapper_forward.1} parent=0 // pred_fallthru
    _
  // Predicated region
  $region54: #{subband_sequence_wrapper_forward.1} parent=0 // pred_check
    _
  $region55: #{subband_sequence_wrapper_forward.1} parent=0 // pred_check_branch
    %2652 = sbr.rel (0) target = $region57
  $region56: #{subband_sequence_wrapper_forward.1} parent=0 // pred_region
    _
  $region57: #{subband_sequence_wrapper_forward.1} parent=0 // pred_fallthru
    _

</llo_original>
